<compile_context>
chip_gen: v6e
topology: v6e:2x2x1
jax: 0.10.0
libtpu: 0.0.40
codegen_flags: <defaults>
</compile_context>

<pallas_src>
import functools

import jax
import jax.numpy as jnp
from jax.experimental import pallas as pl
from jax.experimental.pallas import tpu as pltpu

BN_EPS = 1e-5
HEAD_MID = 16                   # Head() default mid_channels
HEAD_OUT_CHANNELS = (3, 3, 2)   # head1, head2, head3 out_channels
N_OUT = sum(HEAD_OUT_CHANNELS)  # 8 total head outputs / channels
_PAD = 128                      # lane guard band around the scratch interior
_OUT_L = 128                    # lane-dense per-sample output stripe width


def _round_up(x, m):
    return ((x + m - 1) // m) * m


# ------------------------------- fused kernel --------------------------------

def _make_heads_kernel(wp0, wp1):
    """Build the fused per-sample Heads kernel (padded widths wp0=W+2, wp1=W/2+2)."""

    def kernel(a0_ref, mask_ref,
               tw0_ref, tb0_ref, tw1_ref, tb1_ref, tw2_ref, tb2_ref,
               tw3_ref, tb3_ref,
               hw1_ref, hb1_ref, sel1_ref,
               hw2_ref, hb2_ref, sel2_ref,
               wl_ref, bl_ref,
               o_ref, ext_ref):
        cin_pad = a0_ref.shape[0]
        mid = tb0_ref.shape[0]           # trunk channels (16)
        c_h1 = hb1_ref.shape[0]          # 48 = 3 heads * HEAD_MID
        c_h2 = hb2_ref.shape[0]          # 8  = total head output channels
        ls0 = a0_ref.shape[1]            # per-sample stage-0 flat length
        ls1 = sel1_ref.shape[1]          # per-sample stage-1 flat length

        # Zero the guard-banded scratch every step: guard bands (and any lane a
        # halo tap can reach) must be exact zeros, on BOTH megacore halves.
        # ~60 KB bf16 -> a handful of vector stores.
        ext_ref[...] = jnp.zeros_like(ext_ref)

        def put(x):
            """Store an activation into the scratch interior (bf16, lane-aligned)."""
            c, l = x.shape
            ext_ref[0:c, _PAD:_PAD + l] = x.astype(jnp.bfloat16)

        def conv3x3(cin, l, w_ref, b_ref, wp):
            """3x3 'same' conv + bias + ReLU; im2col taps read from the scratch."""
            taps = [ext_ref[0:cin, _PAD + dy * wp + dx:_PAD + dy * wp + dx + l]
                    for dy in (-1, 0, 1) for dx in (-1, 0, 1)]
            patches = jnp.concatenate(taps, axis=0)              # (9*cin, l) bf16
            y = jnp.dot(w_ref[...], patches,
                        preferred_element_type=jnp.float32) + b_ref[...]
            return jnp.maximum(y, 0.0)

        def maxpool2x2(c, l, wp, sel_ref):
            """2x2/stride-2 max pool + re-layout.

            One 4-way shifted max over the scratch reduces every 2x2 window onto
            its top-left anchor; one 0/1 bf16 selection GEMM gathers the anchors
            into the next stage's (zero-haloed / dense) layout.  Anchors only read
            interior lanes; non-anchor columns hit all-zero selection rows.
            """
            t = ext_ref[0:c, _PAD:_PAD + l]
            for off in (1, wp, wp + 1):
                t = jnp.maximum(t, ext_ref[0:c, _PAD + off:_PAD + off + l])
            return jnp.dot(t, sel_ref[...], preferred_element_type=jnp.float32)

        put(a0_ref[...])

        # Hoisted once (JAX does not CSE broadcast_in_dim): interior mask that
        # re-zeroes halo / filler lanes so they act as padding for the next conv.
        mask_b = jnp.broadcast_to(mask_ref[...], (mid, ls0))

        # Trunk: DoubleConv(in, mid) + DoubleConv(mid, mid) = 4x (conv+BN+ReLU).
        for cin, w_ref, b_ref in ((cin_pad, tw0_ref, tb0_ref),
                                  (mid, tw1_ref, tb1_ref),
                                  (mid, tw2_ref, tb2_ref),
                                  (mid, tw3_ref, tb3_ref)):
            put(conv3x3(cin, ls0, w_ref, b_ref, wp0) * mask_b)

        # Three heads jointly: conv1 channel-concatenated, conv2 block-diagonal.
        put(conv3x3(mid, ls0, hw1_ref, hb1_ref, wp0))          # (48, ls0)
        put(maxpool2x2(c_h1, ls0, wp0, sel1_ref))              # (48, ls1) zero-haloed
        put(conv3x3(c_h1, ls1, hw2_ref, hb2_ref, wp1))         # (8,  ls1)
        hd = maxpool2x2(c_h2, ls1, wp1, sel2_ref)              # (8,  ls2) dense, f32

        # All three Linear+ReLU layers at once on the VPU/XLU (no MXU pushes):
        #   out[j] = relu( sum_{r,s} wl[r*8 + j, s] * hd[r, s] + bl[j] )
        prod = wl_ref[0:c_h2, :] * hd[0:1, :]
        for r in range(1, c_h2):
            prod = prod + wl_ref[r * c_h2:(r + 1) * c_h2, :] * hd[r:r + 1, :]
        col = jnp.sum(prod, axis=1, keepdims=True) + bl_ref[...]   # (8, 1)
        o_ref[...] = jnp.broadcast_to(jnp.maximum(col, 0.0), o_ref.shape)

    return kernel


# ------------------------- layout constants (host side) ----------------------

@functools.lru_cache(maxsize=None)
def _layout_plan(size):
    """Per-sample masks / pooling selection matrices for a given spatial size."""
    wp0 = size + 2
    assert wp0 + 1 <= _PAD, "guard band too small for this spatial size"
    ls0 = _round_up(wp0 * wp0, 128)            # per-sample flat length, stage 0
    h1 = size // 2
    wp1 = h1 + 2
    ls1 = _round_up(wp1 * wp1, 128)            # per-sample flat length, stage 1
    h2 = h1 // 2
    ls2 = h2 * h2                              # per-sample length after 2nd pool

    yy = jnp.arange(wp0)[:, None]
    xx = jnp.arange(wp0)[None, :]
    interior = ((yy >= 1) & (yy <= size) & (xx >= 1) & (xx <= size)).astype(jnp.float32)
    mask0 = jnp.zeros((1, ls0), jnp.float32).at[0, :wp0 * wp0].set(interior.reshape(-1))

    def pool_selection(ls_in, wp_in, ls_out, wp_out, n_out, pad_out):
        # Per-sample 0/1 matrix: pooled-window anchor (padded coords 2i+1, 2j+1)
        # -> its slot in the next stage's layout.  Exact in bf16.
        ii, jj = jnp.meshgrid(jnp.arange(n_out), jnp.arange(n_out), indexing="ij")
        src = (2 * ii + 1) * wp_in + (2 * jj + 1)
        dst = (ii + 1) * wp_out + (jj + 1) if pad_out else ii * wp_out + jj
        sel = jnp.zeros((ls_in, ls_out), jnp.float32)
        sel = sel.at[src.reshape(-1), dst.reshape(-1)].set(1.0)
        return sel.astype(jnp.bfloat16)

    sel1 = pool_selection(ls0, wp0, ls1, wp1, h1, pad_out=True)    # (ls0, ls1)
    sel2 = pool_selection(ls1, wp1, ls2, h2, h2, pad_out=False)    # (ls1, ls2)

    return {"wp0": wp0, "wp1": wp1, "ls0": ls0, "ls1": ls1, "ls2": ls2,
            "mask0": mask0, "sel1": sel1, "sel2": sel2}


# ------------------------------ parameter packing ----------------------------

def _conv_params(key, cin, cout):
    kw, kb = jax.random.split(key)
    w = jax.random.normal(kw, (cout, cin, 3, 3), jnp.float32) / float(9 * cin) ** 0.5
    b = 0.1 * jax.random.normal(kb, (cout,), jnp.float32)
    return w, b                      # torch Conv2d layout: (Cout, Cin, kH, kW), (Cout,)


def _bn_params(key, c):
    k1, k2, k3, k4 = jax.random.split(key, 4)
    gamma = 1.0 + 0.1 * jax.random.normal(k1, (c,), jnp.float32)
    beta = 0.1 * jax.random.normal(k2, (c,), jnp.float32)
    mean = 0.1 * jax.random.normal(k3, (c,), jnp.float32)
    var = jax.random.uniform(k4, (c,), jnp.float32, minval=0.5, maxval=1.5)
    return gamma, beta, mean, var


def _fold_bn(w, b, bn):
    """Fold inference-mode BatchNorm into the preceding conv (w, b)."""
    gamma, beta, mean, var = bn
    scale = gamma / jnp.sqrt(var + BN_EPS)
    return w * scale[:, None, None, None], beta + (b - mean) * scale


def _gemm_weight(w, cin_pad=None):
    """(Cout, Cin, 3, 3) torch conv weight -> (Cout, 9*Cin[_pad]) GEMM weight.

    Column order is (ky*3 + kx)*Cin + ci, matching the kernel's tap ordering.
    """
    cout, cin = w.shape[:2]
    if cin_pad is not None and cin_pad > cin:
        w = jnp.pad(w, ((0, 0), (0, cin_pad - cin), (0, 0), (0, 0)))
    return jnp.transpose(w, (0, 2, 3, 1)).reshape(cout, -1)


def init_heads_params(key, size=16, in_channels=3, mid_channels=16):
    assert size % 4 == 0, "Heads needs H = W divisible by 4 (two 2x2 max-pools)."
    assert mid_channels % 8 == 0, "mid_channels must be a multiple of 8."
    n_heads = len(HEAD_OUT_CHANNELS)
    n_out = N_OUT
    feat_s = (size // 4) ** 2               # spatial features per channel after pools
    cin_pad = _round_up(in_channels, 16)    # 16-row alignment for bf16 sublane tiles

    keys = jax.random.split(key, 8 + 4 * n_heads)
    p = {}

    # Trunk: DoubleConv(in, mid) + DoubleConv(mid, mid) = 4 x (conv + BN + ReLU).
    trunk_cfg = [(in_channels, mid_channels)] + [(mid_channels, mid_channels)] * 3
    for i, (ci, co) in enumerate(trunk_cfg):
        w, b = _conv_params(keys[2 * i], ci, co)
        wf, shift = _fold_bn(w, b, _bn_params(keys[2 * i + 1], co))
        p[f"tw{i}"] = _gemm_weight(wf, cin_pad if i == 0 else None).astype(jnp.bfloat16)
        p[f"tb{i}"] = shift.reshape(co, 1)

    # Heads: conv1 channel-concatenated, conv2 block-diagonal, linears packed.
    w1_list, b1_list, b2_list = [], [], []
    w2_all = jnp.zeros((n_out, n_heads * HEAD_MID, 3, 3), jnp.float32)
    wl = jnp.zeros((n_out, n_out, feat_s), jnp.float32)
    bl = jnp.zeros((n_out,), jnp.float32)
    r0 = 0
    for hidx, oc in enumerate(HEAD_OUT_CHANNELS):
        k1, k2, k3, k4 = keys[8 + 4 * hidx: 12 + 4 * hidx]
        w1, b1 = _conv_params(k1, mid_channels, HEAD_MID)
        w2, b2 = _conv_params(k2, HEAD_MID, oc)
        # torch Linear layout: weight (out_features, in_features), in = c*feat_s + s.
        lw = jax.random.normal(k3, (oc, oc * feat_s), jnp.float32) / float(oc * feat_s) ** 0.5
        lb = 0.1 * jax.random.normal(k4, (oc,), jnp.float32)

        w1_list.append(_gemm_weight(w1))
        b1_list.append(b1)
        w2_all = w2_all.at[r0:r0 + oc, HEAD_MID * hidx:HEAD_MID * (hidx + 1)].set(w2)
        b2_list.append(b2)
        # wl[r, j, s] = lin_weight[j - j0, (r - r0)*feat_s + s] inside this head's block.
        wl = wl.at[r0:r0 + oc, r0:r0 + oc, :].set(
            jnp.transpose(lw.reshape(oc, oc, feat_s), (1, 0, 2)))
        bl = bl.at[r0:r0 + oc].set(lb)
        r0 += oc

    p["hw1"] = jnp.concatenate(w1_list, axis=0).astype(jnp.bfloat16)   # (48, 9*16)
    p["hb1"] = jnp.concatenate(b1_list, axis=0).reshape(-1, 1)         # (48, 1)
    p["hw2"] = _gemm_weight(w2_all).astype(jnp.bfloat16)               # (8, 9*48)
    p["hb2"] = jnp.concatenate(b2_list, axis=0).reshape(-1, 1)         # (8, 1)
    p["wl"] = wl.reshape(n_out * n_out, feat_s)                        # (64, 16) f32
    p["bl"] = bl.reshape(-1, 1)                                        # (8, 1)
    return p


# --------------------------------- forward -----------------------------------

def heads_forward(params, x):
    """Forward pass of Heads; x is NCHW.  Returns (betaD, betaB, Scale)."""
    n, cin, h, w = x.shape
    assert h == w and h % 4 == 0
    plan = _layout_plan(h)
    ls0 = plan["ls0"]
    cin_pad = params["tw0"].shape[1] // 9
    n_out = params["bl"].shape[0]
    c_scr = max(params["hb1"].shape[0], params["tb0"].shape[0], cin_pad)

    # Pack NCHW into the per-sample kernel layout: (channels, 128-lane-aligned
    # flattened zero-padded plane), channels padded to 16, bf16 (halves the DMA).
    xp = jnp.pad(x, ((0, 0), (0, cin_pad - cin), (1, 1), (1, 1)))
    xp = jnp.transpose(xp, (1, 0, 2, 3)).reshape(cin_pad, n, (h + 2) * (w + 2))
    xp = jnp.pad(xp, ((0, 0), (0, 0), (0, ls0 - (h + 2) * (w + 2))))
    a0 = xp.reshape(cin_pad, n * ls0).astype(jnp.bfloat16)

    consts = [plan["mask0"],
              params["tw0"], params["tb0"], params["tw1"], params["tb1"],
              params["tw2"], params["tb2"], params["tw3"], params["tb3"],
              params["hw1"], params["hb1"], plan["sel1"],
              params["hw2"], params["hb2"], plan["sel2"],
              params["wl"], params["bl"]]
    in_specs = ([pl.BlockSpec((cin_pad, ls0), lambda b: (0, b))]       # per-sample block
                + [pl.BlockSpec(c.shape, lambda b: (0, 0)) for c in consts])  # resident

    out = pl.pallas_call(
        _make_heads_kernel(plan["wp0"], plan["wp1"]),
        out_shape=jax.ShapeDtypeStruct((n_out, n * _OUT_L), jnp.float32),
        grid_spec=pltpu.PrefetchScalarGridSpec(
            num_scalar_prefetch=0,
            grid=(n,),
            in_specs=in_specs,
            out_specs=pl.BlockSpec((n_out, _OUT_L), lambda b: (0, b)),
            scratch_shapes=[pltpu.VMEM((c_scr, _PAD + ls0 + _PAD), jnp.bfloat16)]),
        compiler_params=pltpu.CompilerParams(dimension_semantics=("parallel",)),
    )(a0, *consts)

    outc = out[:, ::_OUT_L]                 # (n_out, batch): lane 0 of each stripe
    o1, o2, _ = HEAD_OUT_CHANNELS
    betaD = outc[:o1].T
    betaB = outc[o1:o1 + o2].T
    Scale = outc[o1 + o2:].T
    return betaD, betaB, Scale


# ----------------------------------- main -------------------------------------

if __name__ == "__main__":
    key = jax.random.PRNGKey(0)
    kp, kx = jax.random.split(key)

    batch, in_channels, mid_channels, size = 2, 3, 16, 16
    params = init_heads_params(kp, size=size, in_channels=in_channels,
                               mid_channels=mid_channels)
    x = jax.random.normal(kx, (batch, in_channels, size, size), jnp.float32)

    fwd = jax.jit(heads_forward)
    betaD, betaB, Scale = fwd(params, x)
    jax.block_until_ready((betaD, betaB, Scale))

    assert betaD.shape == (batch, 3)
    assert betaB.shape == (batch, 3)
    assert Scale.shape == (batch, 2)
    assert bool(jnp.all(jnp.isfinite(betaD)))
    assert bool(jnp.all(jnp.isfinite(betaB)))
    assert bool(jnp.all(jnp.isfinite(Scale)))

    print("KERNEL_OK")
</pallas_src>

<mosaic_0001>
module attributes {stable_mosaic.version = 11 : i64} {
  func.func @kernel(%arg0: i32, %arg1: memref<16x384xbf16, #tpu.memory_space<vmem>>, %arg2: memref<1x384xf32, #tpu.memory_space<vmem>>, %arg3: memref<16x144xbf16, #tpu.memory_space<vmem>>, %arg4: memref<16x1xf32, #tpu.memory_space<vmem>>, %arg5: memref<16x144xbf16, #tpu.memory_space<vmem>>, %arg6: memref<16x1xf32, #tpu.memory_space<vmem>>, %arg7: memref<16x144xbf16, #tpu.memory_space<vmem>>, %arg8: memref<16x1xf32, #tpu.memory_space<vmem>>, %arg9: memref<16x144xbf16, #tpu.memory_space<vmem>>, %arg10: memref<16x1xf32, #tpu.memory_space<vmem>>, %arg11: memref<48x144xbf16, #tpu.memory_space<vmem>>, %arg12: memref<48x1xf32, #tpu.memory_space<vmem>>, %arg13: memref<384x128xbf16, #tpu.memory_space<vmem>>, %arg14: memref<8x432xbf16, #tpu.memory_space<vmem>>, %arg15: memref<8x1xf32, #tpu.memory_space<vmem>>, %arg16: memref<128x16xbf16, #tpu.memory_space<vmem>>, %arg17: memref<64x16xf32, #tpu.memory_space<vmem>>, %arg18: memref<8x1xf32, #tpu.memory_space<vmem>>, %arg19: memref<8x128xf32, #tpu.memory_space<vmem>>, %arg20: memref<48x640xbf16, #tpu.memory_space<vmem>>) attributes {dimension_semantics = [#tpu.dimension_semantics<parallel>], iteration_bounds = array<i64: 2>, scalar_prefetch = 0 : i64, scratch_operands = 1 : i64, tpu.core_type = #tpu.core_type<tc>, window_params = [{transform_indices = @transform_0, window_bounds = array<i64: 16, 384>}, {pipeline_mode = #tpu.pipeline_mode<synchronous>, transform_indices = @transform_1, window_bounds = array<i64: 1, 384>}, {pipeline_mode = #tpu.pipeline_mode<synchronous>, transform_indices = @transform_2, window_bounds = array<i64: 16, 144>}, {pipeline_mode = #tpu.pipeline_mode<synchronous>, transform_indices = @transform_3, window_bounds = array<i64: 16, 1>}, {pipeline_mode = #tpu.pipeline_mode<synchronous>, transform_indices = @transform_4, window_bounds = array<i64: 16, 144>}, {pipeline_mode = #tpu.pipeline_mode<synchronous>, transform_indices = @transform_5, window_bounds = array<i64: 16, 1>}, {pipeline_mode = #tpu.pipeline_mode<synchronous>, transform_indices = @transform_6, window_bounds = array<i64: 16, 144>}, {pipeline_mode = #tpu.pipeline_mode<synchronous>, transform_indices = @transform_7, window_bounds = array<i64: 16, 1>}, {pipeline_mode = #tpu.pipeline_mode<synchronous>, transform_indices = @transform_8, window_bounds = array<i64: 16, 144>}, {pipeline_mode = #tpu.pipeline_mode<synchronous>, transform_indices = @transform_9, window_bounds = array<i64: 16, 1>}, {pipeline_mode = #tpu.pipeline_mode<synchronous>, transform_indices = @transform_10, window_bounds = array<i64: 48, 144>}, {pipeline_mode = #tpu.pipeline_mode<synchronous>, transform_indices = @transform_11, window_bounds = array<i64: 48, 1>}, {pipeline_mode = #tpu.pipeline_mode<synchronous>, transform_indices = @transform_12, window_bounds = array<i64: 384, 128>}, {pipeline_mode = #tpu.pipeline_mode<synchronous>, transform_indices = @transform_13, window_bounds = array<i64: 8, 432>}, {pipeline_mode = #tpu.pipeline_mode<synchronous>, transform_indices = @transform_14, window_bounds = array<i64: 8, 1>}, {pipeline_mode = #tpu.pipeline_mode<synchronous>, transform_indices = @transform_15, window_bounds = array<i64: 128, 16>}, {pipeline_mode = #tpu.pipeline_mode<synchronous>, transform_indices = @transform_16, window_bounds = array<i64: 64, 16>}, {pipeline_mode = #tpu.pipeline_mode<synchronous>, transform_indices = @transform_17, window_bounds = array<i64: 8, 1>}, {transform_indices = @transform_18, window_bounds = array<i64: 8, 128>}]} {
    %cst = arith.constant 0.000000e+00 : bf16
    %0 = vector.broadcast %cst : bf16 to vector<48x640xbf16>
    %c0 = arith.constant 0 : index
    %c0_0 = arith.constant 0 : index
    %1 = vector.load %arg20[%c0, %c0_0] : memref<48x640xbf16, #tpu.memory_space<vmem>>, vector<48x640xbf16>
    tpu.vector_store %arg20[%c0, %c0_0], %0 {strides = array<i32>} : memref<48x640xbf16, #tpu.memory_space<vmem>>, vector<48x640xbf16>,
    %c0_1 = arith.constant 0 : index
    %c0_2 = arith.constant 0 : index
    %2 = vector.load %arg1[%c0_1, %c0_2] : memref<16x384xbf16, #tpu.memory_space<vmem>>, vector<16x384xbf16>
    %c0_3 = arith.constant 0 : index
    %c128 = arith.constant 128 : index
    %3 = vector.load %arg20[%c0_3, %c128] : memref<48x640xbf16, #tpu.memory_space<vmem>>, vector<16x384xbf16>
    tpu.vector_store %arg20[%c0_3, %c128], %2 {strides = array<i32>} : memref<48x640xbf16, #tpu.memory_space<vmem>>, vector<16x384xbf16>,
    %c0_4 = arith.constant 0 : index
    %c0_5 = arith.constant 0 : index
    %4 = vector.load %arg2[%c0_4, %c0_5] : memref<1x384xf32, #tpu.memory_space<vmem>>, vector<1x384xf32>
    %5 = vector.shape_cast %4 : vector<1x384xf32> to vector<1x384xf32>
    %6 = vector.broadcast %5 : vector<1x384xf32> to vector<16x384xf32>
    %c0_6 = arith.constant 0 : index
    %c109 = arith.constant 109 : index
    %7 = vector.load %arg20[%c0_6, %c109] : memref<48x640xbf16, #tpu.memory_space<vmem>>, vector<16x384xbf16>
    %c0_7 = arith.constant 0 : index
    %c110 = arith.constant 110 : index
    %8 = vector.load %arg20[%c0_7, %c110] : memref<48x640xbf16, #tpu.memory_space<vmem>>, vector<16x384xbf16>
    %c0_8 = arith.constant 0 : index
    %c111 = arith.constant 111 : index
    %9 = vector.load %arg20[%c0_8, %c111] : memref<48x640xbf16, #tpu.memory_space<vmem>>, vector<16x384xbf16>
    %c0_9 = arith.constant 0 : index
    %c127 = arith.constant 127 : index
    %10 = vector.load %arg20[%c0_9, %c127] : memref<48x640xbf16, #tpu.memory_space<vmem>>, vector<16x384xbf16>
    %c0_10 = arith.constant 0 : index
    %c128_11 = arith.constant 128 : index
    %11 = vector.load %arg20[%c0_10, %c128_11] : memref<48x640xbf16, #tpu.memory_space<vmem>>, vector<16x384xbf16>
    %c0_12 = arith.constant 0 : index
    %c129 = arith.constant 129 : index
    %12 = vector.load %arg20[%c0_12, %c129] : memref<48x640xbf16, #tpu.memory_space<vmem>>, vector<16x384xbf16>
    %c0_13 = arith.constant 0 : index
    %c145 = arith.constant 145 : index
    %13 = vector.load %arg20[%c0_13, %c145] : memref<48x640xbf16, #tpu.memory_space<vmem>>, vector<16x384xbf16>
    %c0_14 = arith.constant 0 : index
    %c146 = arith.constant 146 : index
    %14 = vector.load %arg20[%c0_14, %c146] : memref<48x640xbf16, #tpu.memory_space<vmem>>, vector<16x384xbf16>
    %c0_15 = arith.constant 0 : index
    %c147 = arith.constant 147 : index
    %15 = vector.load %arg20[%c0_15, %c147] : memref<48x640xbf16, #tpu.memory_space<vmem>>, vector<16x384xbf16>
    %16 = tpu.concatenate %7, %8, %9, %10, %11, %12, %13, %14, %15 in 0 : vector<16x384xbf16>, vector<16x384xbf16>, vector<16x384xbf16>, vector<16x384xbf16>, vector<16x384xbf16>, vector<16x384xbf16>, vector<16x384xbf16>, vector<16x384xbf16>, vector<16x384xbf16> -> vector<144x384xbf16>
    %c0_16 = arith.constant 0 : index
    %c0_17 = arith.constant 0 : index
    %17 = vector.load %arg3[%c0_16, %c0_17] : memref<16x144xbf16, #tpu.memory_space<vmem>>, vector<16x144xbf16>
    %cst_18 = arith.constant dense<0.000000e+00> : vector<16x384xf32>
    %18 = tpu.matmul %17, %16, %cst_18 {dimension_numbers = #tpu.dot_dimension_numbers<[1], [0], [0], [1], [0, 0, 1, 1], [], []>} : vector<16x144xbf16>, vector<144x384xbf16>, vector<16x384xf32> -> vector<16x384xf32>
    %c0_19 = arith.constant 0 : index
    %c0_20 = arith.constant 0 : index
    %19 = vector.load %arg4[%c0_19, %c0_20] : memref<16x1xf32, #tpu.memory_space<vmem>>, vector<16x1xf32>
    %20 = vector.broadcast %19 : vector<16x1xf32> to vector<16x384xf32>
    %21 = arith.addf %18, %20 : vector<16x384xf32>
    %cst_21 = arith.constant 0.000000e+00 : f32
    %22 = vector.broadcast %cst_21 : f32 to vector<16x384xf32>
    %23 = arith.maximumf %21, %22 : vector<16x384xf32>
    %24 = arith.mulf %23, %6 : vector<16x384xf32>
    %25 = arith.truncf %24 : vector<16x384xf32> to vector<16x384xbf16>
    %c0_22 = arith.constant 0 : index
    %c128_23 = arith.constant 128 : index
    %26 = vector.load %arg20[%c0_22, %c128_23] : memref<48x640xbf16, #tpu.memory_space<vmem>>, vector<16x384xbf16>
    tpu.vector_store %arg20[%c0_22, %c128_23], %25 {strides = array<i32>} : memref<48x640xbf16, #tpu.memory_space<vmem>>, vector<16x384xbf16>,
    %c0_24 = arith.constant 0 : index
    %c109_25 = arith.constant 109 : index
    %27 = vector.load %arg20[%c0_24, %c109_25] : memref<48x640xbf16, #tpu.memory_space<vmem>>, vector<16x384xbf16>
    %c0_26 = arith.constant 0 : index
    %c110_27 = arith.constant 110 : index
    %28 = vector.load %arg20[%c0_26, %c110_27] : memref<48x640xbf16, #tpu.memory_space<vmem>>, vector<16x384xbf16>
    %c0_28 = arith.constant 0 : index
    %c111_29 = arith.constant 111 : index
    %29 = vector.load %arg20[%c0_28, %c111_29] : memref<48x640xbf16, #tpu.memory_space<vmem>>, vector<16x384xbf16>
    %c0_30 = arith.constant 0 : index
    %c127_31 = arith.constant 127 : index
    %30 = vector.load %arg20[%c0_30, %c127_31] : memref<48x640xbf16, #tpu.memory_space<vmem>>, vector<16x384xbf16>
    %c0_32 = arith.constant 0 : index
    %c128_33 = arith.constant 128 : index
    %31 = vector.load %arg20[%c0_32, %c128_33] : memref<48x640xbf16, #tpu.memory_space<vmem>>, vector<16x384xbf16>
    %c0_34 = arith.constant 0 : index
    %c129_35 = arith.constant 129 : index
    %32 = vector.load %arg20[%c0_34, %c129_35] : memref<48x640xbf16, #tpu.memory_space<vmem>>, vector<16x384xbf16>
    %c0_36 = arith.constant 0 : index
    %c145_37 = arith.constant 145 : index
    %33 = vector.load %arg20[%c0_36, %c145_37] : memref<48x640xbf16, #tpu.memory_space<vmem>>, vector<16x384xbf16>
    %c0_38 = arith.constant 0 : index
    %c146_39 = arith.constant 146 : index
    %34 = vector.load %arg20[%c0_38, %c146_39] : memref<48x640xbf16, #tpu.memory_space<vmem>>, vector<16x384xbf16>
    %c0_40 = arith.constant 0 : index
    %c147_41 = arith.constant 147 : index
    %35 = vector.load %arg20[%c0_40, %c147_41] : memref<48x640xbf16, #tpu.memory_space<vmem>>, vector<16x384xbf16>
    %36 = tpu.concatenate %27, %28, %29, %30, %31, %32, %33, %34, %35 in 0 : vector<16x384xbf16>, vector<16x384xbf16>, vector<16x384xbf16>, vector<16x384xbf16>, vector<16x384xbf16>, vector<16x384xbf16>, vector<16x384xbf16>, vector<16x384xbf16>, vector<16x384xbf16> -> vector<144x384xbf16>
    %c0_42 = arith.constant 0 : index
    %c0_43 = arith.constant 0 : index
    %37 = vector.load %arg5[%c0_42, %c0_43] : memref<16x144xbf16, #tpu.memory_space<vmem>>, vector<16x144xbf16>
    %cst_44 = arith.constant dense<0.000000e+00> : vector<16x384xf32>
    %38 = tpu.matmul %37, %36, %cst_44 {dimension_numbers = #tpu.dot_dimension_numbers<[1], [0], [0], [1], [0, 0, 1, 1], [], []>} : vector<16x144xbf16>, vector<144x384xbf16>, vector<16x384xf32> -> vector<16x384xf32>
    %c0_45 = arith.constant 0 : index
    %c0_46 = arith.constant 0 : index
    %39 = vector.load %arg6[%c0_45, %c0_46] : memref<16x1xf32, #tpu.memory_space<vmem>>, vector<16x1xf32>
    %40 = vector.broadcast %39 : vector<16x1xf32> to vector<16x384xf32>
    %41 = arith.addf %38, %40 : vector<16x384xf32>
    %cst_47 = arith.constant 0.000000e+00 : f32
    %42 = vector.broadcast %cst_47 : f32 to vector<16x384xf32>
    %43 = arith.maximumf %41, %42 : vector<16x384xf32>
    %44 = arith.mulf %43, %6 : vector<16x384xf32>
    %45 = arith.truncf %44 : vector<16x384xf32> to vector<16x384xbf16>
    %c0_48 = arith.constant 0 : index
    %c128_49 = arith.constant 128 : index
    %46 = vector.load %arg20[%c0_48, %c128_49] : memref<48x640xbf16, #tpu.memory_space<vmem>>, vector<16x384xbf16>
    tpu.vector_store %arg20[%c0_48, %c128_49], %45 {strides = array<i32>} : memref<48x640xbf16, #tpu.memory_space<vmem>>, vector<16x384xbf16>,
    %c0_50 = arith.constant 0 : index
    %c109_51 = arith.constant 109 : index
    %47 = vector.load %arg20[%c0_50, %c109_51] : memref<48x640xbf16, #tpu.memory_space<vmem>>, vector<16x384xbf16>
    %c0_52 = arith.constant 0 : index
    %c110_53 = arith.constant 110 : index
    %48 = vector.load %arg20[%c0_52, %c110_53] : memref<48x640xbf16, #tpu.memory_space<vmem>>, vector<16x384xbf16>
    %c0_54 = arith.constant 0 : index
    %c111_55 = arith.constant 111 : index
    %49 = vector.load %arg20[%c0_54, %c111_55] : memref<48x640xbf16, #tpu.memory_space<vmem>>, vector<16x384xbf16>
    %c0_56 = arith.constant 0 : index
    %c127_57 = arith.constant 127 : index
    %50 = vector.load %arg20[%c0_56, %c127_57] : memref<48x640xbf16, #tpu.memory_space<vmem>>, vector<16x384xbf16>
    %c0_58 = arith.constant 0 : index
    %c128_59 = arith.constant 128 : index
    %51 = vector.load %arg20[%c0_58, %c128_59] : memref<48x640xbf16, #tpu.memory_space<vmem>>, vector<16x384xbf16>
    %c0_60 = arith.constant 0 : index
    %c129_61 = arith.constant 129 : index
    %52 = vector.load %arg20[%c0_60, %c129_61] : memref<48x640xbf16, #tpu.memory_space<vmem>>, vector<16x384xbf16>
    %c0_62 = arith.constant 0 : index
    %c145_63 = arith.constant 145 : index
    %53 = vector.load %arg20[%c0_62, %c145_63] : memref<48x640xbf16, #tpu.memory_space<vmem>>, vector<16x384xbf16>
    %c0_64 = arith.constant 0 : index
    %c146_65 = arith.constant 146 : index
    %54 = vector.load %arg20[%c0_64, %c146_65] : memref<48x640xbf16, #tpu.memory_space<vmem>>, vector<16x384xbf16>
    %c0_66 = arith.constant 0 : index
    %c147_67 = arith.constant 147 : index
    %55 = vector.load %arg20[%c0_66, %c147_67] : memref<48x640xbf16, #tpu.memory_space<vmem>>, vector<16x384xbf16>
    %56 = tpu.concatenate %47, %48, %49, %50, %51, %52, %53, %54, %55 in 0 : vector<16x384xbf16>, vector<16x384xbf16>, vector<16x384xbf16>, vector<16x384xbf16>, vector<16x384xbf16>, vector<16x384xbf16>, vector<16x384xbf16>, vector<16x384xbf16>, vector<16x384xbf16> -> vector<144x384xbf16>
    %c0_68 = arith.constant 0 : index
    %c0_69 = arith.constant 0 : index
    %57 = vector.load %arg7[%c0_68, %c0_69] : memref<16x144xbf16, #tpu.memory_space<vmem>>, vector<16x144xbf16>
    %cst_70 = arith.constant dense<0.000000e+00> : vector<16x384xf32>
    %58 = tpu.matmul %57, %56, %cst_70 {dimension_numbers = #tpu.dot_dimension_numbers<[1], [0], [0], [1], [0, 0, 1, 1], [], []>} : vector<16x144xbf16>, vector<144x384xbf16>, vector<16x384xf32> -> vector<16x384xf32>
    %c0_71 = arith.constant 0 : index
    %c0_72 = arith.constant 0 : index
    %59 = vector.load %arg8[%c0_71, %c0_72] : memref<16x1xf32, #tpu.memory_space<vmem>>, vector<16x1xf32>
    %60 = vector.broadcast %59 : vector<16x1xf32> to vector<16x384xf32>
    %61 = arith.addf %58, %60 : vector<16x384xf32>
    %cst_73 = arith.constant 0.000000e+00 : f32
    %62 = vector.broadcast %cst_73 : f32 to vector<16x384xf32>
    %63 = arith.maximumf %61, %62 : vector<16x384xf32>
    %64 = arith.mulf %63, %6 : vector<16x384xf32>
    %65 = arith.truncf %64 : vector<16x384xf32> to vector<16x384xbf16>
    %c0_74 = arith.constant 0 : index
    %c128_75 = arith.constant 128 : index
    %66 = vector.load %arg20[%c0_74, %c128_75] : memref<48x640xbf16, #tpu.memory_space<vmem>>, vector<16x384xbf16>
    tpu.vector_store %arg20[%c0_74, %c128_75], %65 {strides = array<i32>} : memref<48x640xbf16, #tpu.memory_space<vmem>>, vector<16x384xbf16>,
    %c0_76 = arith.constant 0 : index
    %c109_77 = arith.constant 109 : index
    %67 = vector.load %arg20[%c0_76, %c109_77] : memref<48x640xbf16, #tpu.memory_space<vmem>>, vector<16x384xbf16>
    %c0_78 = arith.constant 0 : index
    %c110_79 = arith.constant 110 : index
    %68 = vector.load %arg20[%c0_78, %c110_79] : memref<48x640xbf16, #tpu.memory_space<vmem>>, vector<16x384xbf16>
    %c0_80 = arith.constant 0 : index
    %c111_81 = arith.constant 111 : index
    %69 = vector.load %arg20[%c0_80, %c111_81] : memref<48x640xbf16, #tpu.memory_space<vmem>>, vector<16x384xbf16>
    %c0_82 = arith.constant 0 : index
    %c127_83 = arith.constant 127 : index
    %70 = vector.load %arg20[%c0_82, %c127_83] : memref<48x640xbf16, #tpu.memory_space<vmem>>, vector<16x384xbf16>
    %c0_84 = arith.constant 0 : index
    %c128_85 = arith.constant 128 : index
    %71 = vector.load %arg20[%c0_84, %c128_85] : memref<48x640xbf16, #tpu.memory_space<vmem>>, vector<16x384xbf16>
    %c0_86 = arith.constant 0 : index
    %c129_87 = arith.constant 129 : index
    %72 = vector.load %arg20[%c0_86, %c129_87] : memref<48x640xbf16, #tpu.memory_space<vmem>>, vector<16x384xbf16>
    %c0_88 = arith.constant 0 : index
    %c145_89 = arith.constant 145 : index
    %73 = vector.load %arg20[%c0_88, %c145_89] : memref<48x640xbf16, #tpu.memory_space<vmem>>, vector<16x384xbf16>
    %c0_90 = arith.constant 0 : index
    %c146_91 = arith.constant 146 : index
    %74 = vector.load %arg20[%c0_90, %c146_91] : memref<48x640xbf16, #tpu.memory_space<vmem>>, vector<16x384xbf16>
    %c0_92 = arith.constant 0 : index
    %c147_93 = arith.constant 147 : index
    %75 = vector.load %arg20[%c0_92, %c147_93] : memref<48x640xbf16, #tpu.memory_space<vmem>>, vector<16x384xbf16>
    %76 = tpu.concatenate %67, %68, %69, %70, %71, %72, %73, %74, %75 in 0 : vector<16x384xbf16>, vector<16x384xbf16>, vector<16x384xbf16>, vector<16x384xbf16>, vector<16x384xbf16>, vector<16x384xbf16>, vector<16x384xbf16>, vector<16x384xbf16>, vector<16x384xbf16> -> vector<144x384xbf16>
    %c0_94 = arith.constant 0 : index
    %c0_95 = arith.constant 0 : index
    %77 = vector.load %arg9[%c0_94, %c0_95] : memref<16x144xbf16, #tpu.memory_space<vmem>>, vector<16x144xbf16>
    %cst_96 = arith.constant dense<0.000000e+00> : vector<16x384xf32>
    %78 = tpu.matmul %77, %76, %cst_96 {dimension_numbers = #tpu.dot_dimension_numbers<[1], [0], [0], [1], [0, 0, 1, 1], [], []>} : vector<16x144xbf16>, vector<144x384xbf16>, vector<16x384xf32> -> vector<16x384xf32>
    %c0_97 = arith.constant 0 : index
    %c0_98 = arith.constant 0 : index
    %79 = vector.load %arg10[%c0_97, %c0_98] : memref<16x1xf32, #tpu.memory_space<vmem>>, vector<16x1xf32>
    %80 = vector.broadcast %79 : vector<16x1xf32> to vector<16x384xf32>
    %81 = arith.addf %78, %80 : vector<16x384xf32>
    %cst_99 = arith.constant 0.000000e+00 : f32
    %82 = vector.broadcast %cst_99 : f32 to vector<16x384xf32>
    %83 = arith.maximumf %81, %82 : vector<16x384xf32>
    %84 = arith.mulf %83, %6 : vector<16x384xf32>
    %85 = arith.truncf %84 : vector<16x384xf32> to vector<16x384xbf16>
    %c0_100 = arith.constant 0 : index
    %c128_101 = arith.constant 128 : index
    %86 = vector.load %arg20[%c0_100, %c128_101] : memref<48x640xbf16, #tpu.memory_space<vmem>>, vector<16x384xbf16>
    tpu.vector_store %arg20[%c0_100, %c128_101], %85 {strides = array<i32>} : memref<48x640xbf16, #tpu.memory_space<vmem>>, vector<16x384xbf16>,
    %c0_102 = arith.constant 0 : index
    %c109_103 = arith.constant 109 : index
    %87 = vector.load %arg20[%c0_102, %c109_103] : memref<48x640xbf16, #tpu.memory_space<vmem>>, vector<16x384xbf16>
    %c0_104 = arith.constant 0 : index
    %c110_105 = arith.constant 110 : index
    %88 = vector.load %arg20[%c0_104, %c110_105] : memref<48x640xbf16, #tpu.memory_space<vmem>>, vector<16x384xbf16>
    %c0_106 = arith.constant 0 : index
    %c111_107 = arith.constant 111 : index
    %89 = vector.load %arg20[%c0_106, %c111_107] : memref<48x640xbf16, #tpu.memory_space<vmem>>, vector<16x384xbf16>
    %c0_108 = arith.constant 0 : index
    %c127_109 = arith.constant 127 : index
    %90 = vector.load %arg20[%c0_108, %c127_109] : memref<48x640xbf16, #tpu.memory_space<vmem>>, vector<16x384xbf16>
    %c0_110 = arith.constant 0 : index
    %c128_111 = arith.constant 128 : index
    %91 = vector.load %arg20[%c0_110, %c128_111] : memref<48x640xbf16, #tpu.memory_space<vmem>>, vector<16x384xbf16>
    %c0_112 = arith.constant 0 : index
    %c129_113 = arith.constant 129 : index
    %92 = vector.load %arg20[%c0_112, %c129_113] : memref<48x640xbf16, #tpu.memory_space<vmem>>, vector<16x384xbf16>
    %c0_114 = arith.constant 0 : index
    %c145_115 = arith.constant 145 : index
    %93 = vector.load %arg20[%c0_114, %c145_115] : memref<48x640xbf16, #tpu.memory_space<vmem>>, vector<16x384xbf16>
    %c0_116 = arith.constant 0 : index
    %c146_117 = arith.constant 146 : index
    %94 = vector.load %arg20[%c0_116, %c146_117] : memref<48x640xbf16, #tpu.memory_space<vmem>>, vector<16x384xbf16>
    %c0_118 = arith.constant 0 : index
    %c147_119 = arith.constant 147 : index
    %95 = vector.load %arg20[%c0_118, %c147_119] : memref<48x640xbf16, #tpu.memory_space<vmem>>, vector<16x384xbf16>
    %96 = tpu.concatenate %87, %88, %89, %90, %91, %92, %93, %94, %95 in 0 : vector<16x384xbf16>, vector<16x384xbf16>, vector<16x384xbf16>, vector<16x384xbf16>, vector<16x384xbf16>, vector<16x384xbf16>, vector<16x384xbf16>, vector<16x384xbf16>, vector<16x384xbf16> -> vector<144x384xbf16>
    %c0_120 = arith.constant 0 : index
    %c0_121 = arith.constant 0 : index
    %97 = vector.load %arg11[%c0_120, %c0_121] : memref<48x144xbf16, #tpu.memory_space<vmem>>, vector<48x144xbf16>
    %cst_122 = arith.constant dense<0.000000e+00> : vector<48x384xf32>
    %98 = tpu.matmul %97, %96, %cst_122 {dimension_numbers = #tpu.dot_dimension_numbers<[1], [0], [0], [1], [0, 0, 1, 1], [], []>} : vector<48x144xbf16>, vector<144x384xbf16>, vector<48x384xf32> -> vector<48x384xf32>
    %c0_123 = arith.constant 0 : index
    %c0_124 = arith.constant 0 : index
    %99 = vector.load %arg12[%c0_123, %c0_124] : memref<48x1xf32, #tpu.memory_space<vmem>>, vector<48x1xf32>
    %100 = vector.broadcast %99 : vector<48x1xf32> to vector<48x384xf32>
    %101 = arith.addf %98, %100 : vector<48x384xf32>
    %cst_125 = arith.constant 0.000000e+00 : f32
    %102 = vector.broadcast %cst_125 : f32 to vector<48x384xf32>
    %103 = arith.maximumf %101, %102 : vector<48x384xf32>
    %104 = arith.truncf %103 : vector<48x384xf32> to vector<48x384xbf16>
    %c0_126 = arith.constant 0 : index
    %c128_127 = arith.constant 128 : index
    %105 = vector.load %arg20[%c0_126, %c128_127] : memref<48x640xbf16, #tpu.memory_space<vmem>>, vector<48x384xbf16>
    tpu.vector_store %arg20[%c0_126, %c128_127], %104 {strides = array<i32>} : memref<48x640xbf16, #tpu.memory_space<vmem>>, vector<48x384xbf16>,
    %c0_128 = arith.constant 0 : index
    %c128_129 = arith.constant 128 : index
    %106 = vector.load %arg20[%c0_128, %c128_129] : memref<48x640xbf16, #tpu.memory_space<vmem>>, vector<48x384xbf16>
    %c0_130 = arith.constant 0 : index
    %c129_131 = arith.constant 129 : index
    %107 = vector.load %arg20[%c0_130, %c129_131] : memref<48x640xbf16, #tpu.memory_space<vmem>>, vector<48x384xbf16>
    %108 = arith.maximumf %106, %107 : vector<48x384xbf16>
    %c0_132 = arith.constant 0 : index
    %c146_133 = arith.constant 146 : index
    %109 = vector.load %arg20[%c0_132, %c146_133] : memref<48x640xbf16, #tpu.memory_space<vmem>>, vector<48x384xbf16>
    %110 = arith.maximumf %108, %109 : vector<48x384xbf16>
    %c0_134 = arith.constant 0 : index
    %c147_135 = arith.constant 147 : index
    %111 = vector.load %arg20[%c0_134, %c147_135] : memref<48x640xbf16, #tpu.memory_space<vmem>>, vector<48x384xbf16>
    %112 = arith.maximumf %110, %111 : vector<48x384xbf16>
    %c0_136 = arith.constant 0 : index
    %c0_137 = arith.constant 0 : index
    %113 = vector.load %arg13[%c0_136, %c0_137] : memref<384x128xbf16, #tpu.memory_space<vmem>>, vector<384x128xbf16>
    %cst_138 = arith.constant dense<0.000000e+00> : vector<48x128xf32>
    %114 = tpu.matmul %112, %113, %cst_138 {dimension_numbers = #tpu.dot_dimension_numbers<[1], [0], [0], [1], [0, 0, 1, 1], [], []>} : vector<48x384xbf16>, vector<384x128xbf16>, vector<48x128xf32> -> vector<48x128xf32>
    %115 = arith.truncf %114 : vector<48x128xf32> to vector<48x128xbf16>
    %c0_139 = arith.constant 0 : index
    %c128_140 = arith.constant 128 : index
    %116 = vector.load %arg20[%c0_139, %c128_140] : memref<48x640xbf16, #tpu.memory_space<vmem>>, vector<48x128xbf16>
    tpu.vector_store %arg20[%c0_139, %c128_140], %115 {strides = array<i32>} : memref<48x640xbf16, #tpu.memory_space<vmem>>, vector<48x128xbf16>,
    %c0_141 = arith.constant 0 : index
    %c117 = arith.constant 117 : index
    %117 = vector.load %arg20[%c0_141, %c117] : memref<48x640xbf16, #tpu.memory_space<vmem>>, vector<48x128xbf16>
    %c0_142 = arith.constant 0 : index
    %c118 = arith.constant 118 : index
    %118 = vector.load %arg20[%c0_142, %c118] : memref<48x640xbf16, #tpu.memory_space<vmem>>, vector<48x128xbf16>
    %c0_143 = arith.constant 0 : index
    %c119 = arith.constant 119 : index
    %119 = vector.load %arg20[%c0_143, %c119] : memref<48x640xbf16, #tpu.memory_space<vmem>>, vector<48x128xbf16>
    %c0_144 = arith.constant 0 : index
    %c127_145 = arith.constant 127 : index
    %120 = vector.load %arg20[%c0_144, %c127_145] : memref<48x640xbf16, #tpu.memory_space<vmem>>, vector<48x128xbf16>
    %c0_146 = arith.constant 0 : index
    %c128_147 = arith.constant 128 : index
    %121 = vector.load %arg20[%c0_146, %c128_147] : memref<48x640xbf16, #tpu.memory_space<vmem>>, vector<48x128xbf16>
    %c0_148 = arith.constant 0 : index
    %c129_149 = arith.constant 129 : index
    %122 = vector.load %arg20[%c0_148, %c129_149] : memref<48x640xbf16, #tpu.memory_space<vmem>>, vector<48x128xbf16>
    %c0_150 = arith.constant 0 : index
    %c137 = arith.constant 137 : index
    %123 = vector.load %arg20[%c0_150, %c137] : memref<48x640xbf16, #tpu.memory_space<vmem>>, vector<48x128xbf16>
    %c0_151 = arith.constant 0 : index
    %c138 = arith.constant 138 : index
    %124 = vector.load %arg20[%c0_151, %c138] : memref<48x640xbf16, #tpu.memory_space<vmem>>, vector<48x128xbf16>
    %c0_152 = arith.constant 0 : index
    %c139 = arith.constant 139 : index
    %125 = vector.load %arg20[%c0_152, %c139] : memref<48x640xbf16, #tpu.memory_space<vmem>>, vector<48x128xbf16>
    %126 = tpu.concatenate %117, %118, %119, %120, %121, %122, %123, %124, %125 in 0 : vector<48x128xbf16>, vector<48x128xbf16>, vector<48x128xbf16>, vector<48x128xbf16>, vector<48x128xbf16>, vector<48x128xbf16>, vector<48x128xbf16>, vector<48x128xbf16>, vector<48x128xbf16> -> vector<432x128xbf16>
    %c0_153 = arith.constant 0 : index
    %c0_154 = arith.constant 0 : index
    %127 = vector.load %arg14[%c0_153, %c0_154] : memref<8x432xbf16, #tpu.memory_space<vmem>>, vector<8x432xbf16>
    %cst_155 = arith.constant dense<0.000000e+00> : vector<8x128xf32>
    %128 = tpu.matmul %127, %126, %cst_155 {dimension_numbers = #tpu.dot_dimension_numbers<[1], [0], [0], [1], [0, 0, 1, 1], [], []>} : vector<8x432xbf16>, vector<432x128xbf16>, vector<8x128xf32> -> vector<8x128xf32>
    %c0_156 = arith.constant 0 : index
    %c0_157 = arith.constant 0 : index
    %129 = vector.load %arg15[%c0_156, %c0_157] : memref<8x1xf32, #tpu.memory_space<vmem>>, vector<8x1xf32>
    %130 = vector.broadcast %129 : vector<8x1xf32> to vector<8x128xf32>
    %131 = arith.addf %128, %130 : vector<8x128xf32>
    %cst_158 = arith.constant 0.000000e+00 : f32
    %132 = vector.broadcast %cst_158 : f32 to vector<8x128xf32>
    %133 = arith.maximumf %131, %132 : vector<8x128xf32>
    %134 = arith.truncf %133 : vector<8x128xf32> to vector<8x128xbf16>
    %c0_159 = arith.constant 0 : index
    %c128_160 = arith.constant 128 : index
    %135 = vector.load %arg20[%c0_159, %c128_160] : memref<48x640xbf16, #tpu.memory_space<vmem>>, vector<8x128xbf16>
    tpu.vector_store %arg20[%c0_159, %c128_160], %134 {strides = array<i32>} : memref<48x640xbf16, #tpu.memory_space<vmem>>, vector<8x128xbf16>,
    %c0_161 = arith.constant 0 : index
    %c128_162 = arith.constant 128 : index
    %136 = vector.load %arg20[%c0_161, %c128_162] : memref<48x640xbf16, #tpu.memory_space<vmem>>, vector<8x128xbf16>
    %c0_163 = arith.constant 0 : index
    %c129_164 = arith.constant 129 : index
    %137 = vector.load %arg20[%c0_163, %c129_164] : memref<48x640xbf16, #tpu.memory_space<vmem>>, vector<8x128xbf16>
    %138 = arith.maximumf %136, %137 : vector<8x128xbf16>
    %c0_165 = arith.constant 0 : index
    %c138_166 = arith.constant 138 : index
    %139 = vector.load %arg20[%c0_165, %c138_166] : memref<48x640xbf16, #tpu.memory_space<vmem>>, vector<8x128xbf16>
    %140 = arith.maximumf %138, %139 : vector<8x128xbf16>
    %c0_167 = arith.constant 0 : index
    %c139_168 = arith.constant 139 : index
    %141 = vector.load %arg20[%c0_167, %c139_168] : memref<48x640xbf16, #tpu.memory_space<vmem>>, vector<8x128xbf16>
    %142 = arith.maximumf %140, %141 : vector<8x128xbf16>
    %c0_169 = arith.constant 0 : index
    %c0_170 = arith.constant 0 : index
    %143 = vector.load %arg16[%c0_169, %c0_170] : memref<128x16xbf16, #tpu.memory_space<vmem>>, vector<128x16xbf16>
    %cst_171 = arith.constant dense<0.000000e+00> : vector<8x16xf32>
    %144 = tpu.matmul %142, %143, %cst_171 {dimension_numbers = #tpu.dot_dimension_numbers<[1], [0], [0], [1], [0, 0, 1, 1], [], []>} : vector<8x128xbf16>, vector<128x16xbf16>, vector<8x16xf32> -> vector<8x16xf32>
    %c0_172 = arith.constant 0 : index
    %c0_173 = arith.constant 0 : index
    %145 = vector.load %arg17[%c0_172, %c0_173] : memref<64x16xf32, #tpu.memory_space<vmem>>, vector<8x16xf32>
    %146 = vector.extract_strided_slice %144 {offsets = [0, 0], sizes = [1, 16], strides = [1, 1]} : vector<8x16xf32> to vector<1x16xf32>
    %147 = vector.broadcast %146 : vector<1x16xf32> to vector<8x16xf32>
    %148 = arith.mulf %145, %147 : vector<8x16xf32>
    %c8 = arith.constant 8 : index
    %c0_174 = arith.constant 0 : index
    %149 = vector.load %arg17[%c8, %c0_174] : memref<64x16xf32, #tpu.memory_space<vmem>>, vector<8x16xf32>
    %150 = vector.extract_strided_slice %144 {offsets = [1, 0], sizes = [1, 16], strides = [1, 1]} : vector<8x16xf32> to vector<1x16xf32>
    %151 = vector.broadcast %150 : vector<1x16xf32> to vector<8x16xf32>
    %152 = arith.mulf %149, %151 : vector<8x16xf32>
    %153 = arith.addf %148, %152 : vector<8x16xf32>
    %c16 = arith.constant 16 : index
    %c0_175 = arith.constant 0 : index
    %154 = vector.load %arg17[%c16, %c0_175] : memref<64x16xf32, #tpu.memory_space<vmem>>, vector<8x16xf32>
    %155 = vector.extract_strided_slice %144 {offsets = [2, 0], sizes = [1, 16], strides = [1, 1]} : vector<8x16xf32> to vector<1x16xf32>
    %156 = vector.broadcast %155 : vector<1x16xf32> to vector<8x16xf32>
    %157 = arith.mulf %154, %156 : vector<8x16xf32>
    %158 = arith.addf %153, %157 : vector<8x16xf32>
    %c24 = arith.constant 24 : index
    %c0_176 = arith.constant 0 : index
    %159 = vector.load %arg17[%c24, %c0_176] : memref<64x16xf32, #tpu.memory_space<vmem>>, vector<8x16xf32>
    %160 = vector.extract_strided_slice %144 {offsets = [3, 0], sizes = [1, 16], strides = [1, 1]} : vector<8x16xf32> to vector<1x16xf32>
    %161 = vector.broadcast %160 : vector<1x16xf32> to vector<8x16xf32>
    %162 = arith.mulf %159, %161 : vector<8x16xf32>
    %163 = arith.addf %158, %162 : vector<8x16xf32>
    %c32 = arith.constant 32 : index
    %c0_177 = arith.constant 0 : index
    %164 = vector.load %arg17[%c32, %c0_177] : memref<64x16xf32, #tpu.memory_space<vmem>>, vector<8x16xf32>
    %165 = vector.extract_strided_slice %144 {offsets = [4, 0], sizes = [1, 16], strides = [1, 1]} : vector<8x16xf32> to vector<1x16xf32>
    %166 = vector.broadcast %165 : vector<1x16xf32> to vector<8x16xf32>
    %167 = arith.mulf %164, %166 : vector<8x16xf32>
    %168 = arith.addf %163, %167 : vector<8x16xf32>
    %c40 = arith.constant 40 : index
    %c0_178 = arith.constant 0 : index
    %169 = vector.load %arg17[%c40, %c0_178] : memref<64x16xf32, #tpu.memory_space<vmem>>, vector<8x16xf32>
    %170 = vector.extract_strided_slice %144 {offsets = [5, 0], sizes = [1, 16], strides = [1, 1]} : vector<8x16xf32> to vector<1x16xf32>
    %171 = vector.broadcast %170 : vector<1x16xf32> to vector<8x16xf32>
    %172 = arith.mulf %169, %171 : vector<8x16xf32>
    %173 = arith.addf %168, %172 : vector<8x16xf32>
    %c48 = arith.constant 48 : index
    %c0_179 = arith.constant 0 : index
    %174 = vector.load %arg17[%c48, %c0_179] : memref<64x16xf32, #tpu.memory_space<vmem>>, vector<8x16xf32>
    %175 = vector.extract_strided_slice %144 {offsets = [6, 0], sizes = [1, 16], strides = [1, 1]} : vector<8x16xf32> to vector<1x16xf32>
    %176 = vector.broadcast %175 : vector<1x16xf32> to vector<8x16xf32>
    %177 = arith.mulf %174, %176 : vector<8x16xf32>
    %178 = arith.addf %173, %177 : vector<8x16xf32>
    %c56 = arith.constant 56 : index
    %c0_180 = arith.constant 0 : index
    %179 = vector.load %arg17[%c56, %c0_180] : memref<64x16xf32, #tpu.memory_space<vmem>>, vector<8x16xf32>
    %180 = vector.extract_strided_slice %144 {offsets = [7, 0], sizes = [1, 16], strides = [1, 1]} : vector<8x16xf32> to vector<1x16xf32>
    %181 = vector.broadcast %180 : vector<1x16xf32> to vector<8x16xf32>
    %182 = arith.mulf %179, %181 : vector<8x16xf32>
    %183 = arith.addf %178, %182 : vector<8x16xf32>
    %cst_181 = arith.constant dense<0.000000e+00> : vector<8xf32>
    %184 = vector.multi_reduction <add>, %183, %cst_181 [1] : vector<8x16xf32> to vector<8xf32>
    %185 = vector.shape_cast %184 : vector<8xf32> to vector<8x1xf32>
    %c0_182 = arith.constant 0 : index
    %c0_183 = arith.constant 0 : index
    %186 = vector.load %arg18[%c0_182, %c0_183] : memref<8x1xf32, #tpu.memory_space<vmem>>, vector<8x1xf32>
    %187 = arith.addf %185, %186 : vector<8x1xf32>
    %cst_184 = arith.constant 0.000000e+00 : f32
    %188 = vector.broadcast %cst_184 : f32 to vector<8x1xf32>
    %189 = arith.maximumf %187, %188 : vector<8x1xf32>
    %190 = vector.shape_cast %189 : vector<8x1xf32> to vector<8x1xf32>
    %191 = vector.broadcast %190 : vector<8x1xf32> to vector<8x128xf32>
    %c0_185 = arith.constant 0 : index
    %c0_186 = arith.constant 0 : index
    %192 = vector.load %arg19[%c0_185, %c0_186] : memref<8x128xf32, #tpu.memory_space<vmem>>, vector<8x128xf32>
    tpu.vector_store %arg19[%c0_185, %c0_186], %191 {strides = array<i32>} : memref<8x128xf32, #tpu.memory_space<vmem>>, vector<8x128xf32>,
    return
  }
  func.func @transform_0(%arg0: i32) -> (i32, i32) {
    %c0_i32 = arith.constant 0 : i32
    %c0_i32_0 = arith.constant 0 : i32
    return %c0_i32, %arg0 : i32, i32
  }
  func.func @transform_1(%arg0: i32) -> (i32, i32) {
    %c0_i32 = arith.constant 0 : i32
    %c0_i32_0 = arith.constant 0 : i32
    %c0_i32_1 = arith.constant 0 : i32
    return %c0_i32, %c0_i32_0 : i32, i32
  }
  func.func @transform_2(%arg0: i32) -> (i32, i32) {
    %c0_i32 = arith.constant 0 : i32
    %c0_i32_0 = arith.constant 0 : i32
    %c0_i32_1 = arith.constant 0 : i32
    return %c0_i32, %c0_i32_0 : i32, i32
  }
  func.func @transform_3(%arg0: i32) -> (i32, i32) {
    %c0_i32 = arith.constant 0 : i32
    %c0_i32_0 = arith.constant 0 : i32
    %c0_i32_1 = arith.constant 0 : i32
    return %c0_i32, %c0_i32_0 : i32, i32
  }
  func.func @transform_4(%arg0: i32) -> (i32, i32) {
    %c0_i32 = arith.constant 0 : i32
    %c0_i32_0 = arith.constant 0 : i32
    %c0_i32_1 = arith.constant 0 : i32
    return %c0_i32, %c0_i32_0 : i32, i32
  }
  func.func @transform_5(%arg0: i32) -> (i32, i32) {
    %c0_i32 = arith.constant 0 : i32
    %c0_i32_0 = arith.constant 0 : i32
    %c0_i32_1 = arith.constant 0 : i32
    return %c0_i32, %c0_i32_0 : i32, i32
  }
  func.func @transform_6(%arg0: i32) -> (i32, i32) {
    %c0_i32 = arith.constant 0 : i32
    %c0_i32_0 = arith.constant 0 : i32
    %c0_i32_1 = arith.constant 0 : i32
    return %c0_i32, %c0_i32_0 : i32, i32
  }
  func.func @transform_7(%arg0: i32) -> (i32, i32) {
    %c0_i32 = arith.constant 0 : i32
    %c0_i32_0 = arith.constant 0 : i32
    %c0_i32_1 = arith.constant 0 : i32
    return %c0_i32, %c0_i32_0 : i32, i32
  }
  func.func @transform_8(%arg0: i32) -> (i32, i32) {
    %c0_i32 = arith.constant 0 : i32
    %c0_i32_0 = arith.constant 0 : i32
    %c0_i32_1 = arith.constant 0 : i32
    return %c0_i32, %c0_i32_0 : i32, i32
  }
  func.func @transform_9(%arg0: i32) -> (i32, i32) {
    %c0_i32 = arith.constant 0 : i32
    %c0_i32_0 = arith.constant 0 : i32
    %c0_i32_1 = arith.constant 0 : i32
    return %c0_i32, %c0_i32_0 : i32, i32
  }
  func.func @transform_10(%arg0: i32) -> (i32, i32) {
    %c0_i32 = arith.constant 0 : i32
    %c0_i32_0 = arith.constant 0 : i32
    %c0_i32_1 = arith.constant 0 : i32
    return %c0_i32, %c0_i32_0 : i32, i32
  }
  func.func @transform_11(%arg0: i32) -> (i32, i32) {
    %c0_i32 = arith.constant 0 : i32
    %c0_i32_0 = arith.constant 0 : i32
    %c0_i32_1 = arith.constant 0 : i32
    return %c0_i32, %c0_i32_0 : i32, i32
  }
  func.func @transform_12(%arg0: i32) -> (i32, i32) {
    %c0_i32 = arith.constant 0 : i32
    %c0_i32_0 = arith.constant 0 : i32
    %c0_i32_1 = arith.constant 0 : i32
    return %c0_i32, %c0_i32_0 : i32, i32
  }
  func.func @transform_13(%arg0: i32) -> (i32, i32) {
    %c0_i32 = arith.constant 0 : i32
    %c0_i32_0 = arith.constant 0 : i32
    %c0_i32_1 = arith.constant 0 : i32
    return %c0_i32, %c0_i32_0 : i32, i32
  }
  func.func @transform_14(%arg0: i32) -> (i32, i32) {
    %c0_i32 = arith.constant 0 : i32
    %c0_i32_0 = arith.constant 0 : i32
    %c0_i32_1 = arith.constant 0 : i32
    return %c0_i32, %c0_i32_0 : i32, i32
  }
  func.func @transform_15(%arg0: i32) -> (i32, i32) {
    %c0_i32 = arith.constant 0 : i32
    %c0_i32_0 = arith.constant 0 : i32
    %c0_i32_1 = arith.constant 0 : i32
    return %c0_i32, %c0_i32_0 : i32, i32
  }
  func.func @transform_16(%arg0: i32) -> (i32, i32) {
    %c0_i32 = arith.constant 0 : i32
    %c0_i32_0 = arith.constant 0 : i32
    %c0_i32_1 = arith.constant 0 : i32
    return %c0_i32, %c0_i32_0 : i32, i32
  }
  func.func @transform_17(%arg0: i32) -> (i32, i32) {
    %c0_i32 = arith.constant 0 : i32
    %c0_i32_0 = arith.constant 0 : i32
    %c0_i32_1 = arith.constant 0 : i32
    return %c0_i32, %c0_i32_0 : i32, i32
  }
  func.func @transform_18(%arg0: i32) -> (i32, i32) {
    %c0_i32 = arith.constant 0 : i32
    %c0_i32_0 = arith.constant 0 : i32
    return %c0_i32, %arg0 : i32, i32
  }
}

</mosaic_0001>

<llo_original>
// kernel: heads_forward.1
$region0: #{heads_forward.1}
  #allocation0 [shape = 'u32[]', space=smem, size = 0x4, offset = 0x4, fixed_abs, tag = 'smem constant byte address 0x4 - core index']
  #allocation1 [shape = 'u32[144,128]{1,0:T(1,128)}', space=vmem, size = 0x12000, scoped, tag = 'internal scratch']
  #allocation2 [shape = 'bf16[48,640]{1,0:T(8,128)(2,1)}', space=vmem, size = 0xf000, scoped, tag = 'scratch operand']
  %s0 = inlined_call_operand.vmem [shape: bf16[16,768], index: 0, kind: input, shape index: {}]
  %s1 = inlined_call_operand.vmem [shape: f32[1,384], index: 1, kind: input, shape index: {}]
  %s2 = inlined_call_operand.vmem [shape: bf16[16,144], index: 2, kind: input, shape index: {}]
  %s3 = inlined_call_operand.vmem [shape: f32[16,1], index: 3, kind: input, shape index: {}]
  %s4 = inlined_call_operand.vmem [shape: bf16[16,144], index: 4, kind: input, shape index: {}]
  %s5 = inlined_call_operand.vmem [shape: f32[16,1], index: 5, kind: input, shape index: {}]
  %s6 = inlined_call_operand.vmem [shape: bf16[16,144], index: 6, kind: input, shape index: {}]
  %s7 = inlined_call_operand.vmem [shape: f32[16,1], index: 7, kind: input, shape index: {}]
  %s8 = inlined_call_operand.vmem [shape: bf16[16,144], index: 8, kind: input, shape index: {}]
  %s9 = inlined_call_operand.vmem [shape: f32[16,1], index: 9, kind: input, shape index: {}]
  %s10 = inlined_call_operand.vmem [shape: bf16[48,144], index: 10, kind: input, shape index: {}]
  %s11 = inlined_call_operand.vmem [shape: f32[48,1], index: 11, kind: input, shape index: {}]
  %s12 = inlined_call_operand.vmem [shape: bf16[384,128], index: 12, kind: input, shape index: {}]
  %s13 = inlined_call_operand.vmem [shape: bf16[8,432], index: 13, kind: input, shape index: {}]
  %s14 = inlined_call_operand.vmem [shape: f32[8,1], index: 14, kind: input, shape index: {}]
  %s15 = inlined_call_operand.vmem [shape: bf16[128,16], index: 15, kind: input, shape index: {}]
  %s16 = inlined_call_operand.vmem [shape: f32[64,16], index: 16, kind: input, shape index: {}]
  %s17 = inlined_call_operand.vmem [shape: f32[8,1], index: 17, kind: input, shape index: {}]
  %s18 = inlined_call_operand.vmem [shape: f32[8,256], index: 18, kind: output, shape index: {}]
  %s19 = sld [smem:[#allocation0]]
  $region131: #{heads_forward.1} parent=0
    _
  %s21 = ssub.s32 1, %s19
  %s22 = scalar_select 0, %s21, %s19
  $region1: #{heads_forward.1} parent=0
    #allocation3 [shape = 'u8[24576]{0}', space=vmem, size = 0x6000, scoped, tag = 'input window, operand 0']
    loop: start=0, step=1, limit=4
    $region2: #{heads_forward.1} parent=1 // loop_pre_header
      _
    $region3: #{heads_forward.1} parent=1 // loop_header
      %s24 = sphi 0, %s28
      %p25 = scmp.ge.s32.totalorder %s24, 4
      %s34 = sphi 0, %s36
      %s37 = sphi 0, %s34
      %s38 = sphi 0, %s37
      %s54 = sphi 0, %s38
      %s58 = sphi 0, %s58
      %s60 = sphi 0, %s58
      %s61 = sphi 0, %s60
      %s75 = sphi 0, %s61
      %s79 = sphi 0, %s79
      %s81 = sphi 0, %s79
      %s82 = sphi 0, %s81
      %s96 = sphi 0, %s82
      %s100 = sphi 0, %s100
      %s102 = sphi 0, %s100
      %s103 = sphi 0, %s102
      %s117 = sphi 0, %s103
      %s121 = sphi 0, %s121
      %s123 = sphi 0, %s121
      %s124 = sphi 0, %s123
      %s138 = sphi 0, %s124
      %s142 = sphi 0, %s142
      %s144 = sphi 0, %s142
      %s145 = sphi 0, %s144
      %s159 = sphi 0, %s145
      %s163 = sphi 0, %s163
      %s165 = sphi 0, %s163
      %s166 = sphi 0, %s165
      %s180 = sphi 0, %s166
      %s184 = sphi 0, %s184
      %s186 = sphi 0, %s184
      %s187 = sphi 0, %s186
      %s201 = sphi 0, %s187
      %s205 = sphi 0, %s205
      %s207 = sphi 0, %s205
      %s208 = sphi 0, %s207
      %s222 = sphi 0, %s208
      %s226 = sphi 0, %s226
      %s228 = sphi 0, %s226
      %s229 = sphi 0, %s228
      %s243 = sphi 0, %s229
      %s247 = sphi 0, %s247
      %s249 = sphi 0, %s247
      %s250 = sphi 0, %s249
      %s264 = sphi 0, %s250
      %s268 = sphi 0, %s268
      %s270 = sphi 0, %s268
      %s271 = sphi 0, %s270
      %s285 = sphi 0, %s271
      %s289 = sphi 0, %s289
      %s291 = sphi 0, %s289
      %s292 = sphi 0, %s291
      %s306 = sphi 0, %s292
      %s310 = sphi 0, %s310
      %s312 = sphi 0, %s310
      %s313 = sphi 0, %s312
      %s327 = sphi 0, %s313
      %s331 = sphi 0, %s331
      %s333 = sphi 0, %s331
      %s334 = sphi 0, %s333
      %s348 = sphi 0, %s334
      %s352 = sphi 0, %s352
      %s354 = sphi 0, %s352
      %s355 = sphi 0, %s354
      %s369 = sphi 0, %s355
      %s373 = sphi 0, %s373
      %s375 = sphi 0, %s373
      %s376 = sphi 0, %s375
      %s390 = sphi 0, %s376
      %s394 = sphi 0, %s394
      %s396 = sphi 0, %s394
      %s397 = sphi 0, %s396
      %s411 = sphi 0, %s397
      %s417 = sphi 0, %s419
      %s420 = sphi 0, %s417
      %s421 = sphi 0, %s420
      %s437 = sphi 0, %s421
    $region4: #{heads_forward.1} parent=1 // loop_header_branch
      %27 = sbr.rel (%p25) target = $region8
    $region5: #{heads_forward.1} parent=1 // loop_body
      %s29 = ssub.s32 %s24, 1
      %s30 = ssub.s32 %s24, 2
      %s31 = sadd.s32 %s24, 1
      %s32 = ssub.s32 %s24, %s31
      %p33 = scmp.eq.s32.totalorder %s32, 0
      %s35 = sadd.s32 %s34, 1
      %s36 = scalar_select %p33, %s34, %s35
      %p39 = pneg %p33
      %p40 = scmp.eq.s32.totalorder %s24, 1
      %p41 = por %p39, %p40
      %p42 = scmp.ne.s32.totalorder %s34, %s37
      %p43 = scmp.eq.s32.totalorder %s24, 0
      %p44 = por %p42, %p43
      %p45 = scmp.ne.s32.totalorder %s34, %s37
      %p46 = scmp.eq.s32.totalorder %s29, 1
      %p47 = por %p45, %p46
      %p48 = scmp.ne.s32.totalorder %s37, %s38
      %p49 = scmp.eq.s32.totalorder %s29, 0
      %p50 = por %p48, %p49
      %p51 = scmp.ne.s32.totalorder %s37, %s38
      %p52 = scmp.eq.s32.totalorder %s30, 1
      %p53 = por %p51, %p52
      %p55 = scmp.ne.s32.totalorder %s38, %s54
      %p56 = scmp.eq.s32.totalorder %s30, 0
      %p57 = por %p55, %p56
      %s59 = sadd.s32 %s58, 1
      %p62 = scmp.eq.s32.totalorder %s24, 1
      %p63 = scmp.ne.s32.totalorder %s58, %s60
      %p64 = scmp.eq.s32.totalorder %s24, 0
      %p65 = por %p63, %p64
      %p66 = scmp.ne.s32.totalorder %s58, %s60
      %p67 = scmp.eq.s32.totalorder %s29, 1
      %p68 = por %p66, %p67
      %p69 = scmp.ne.s32.totalorder %s60, %s61
      %p70 = scmp.eq.s32.totalorder %s29, 0
      %p71 = por %p69, %p70
      %p72 = scmp.ne.s32.totalorder %s60, %s61
      %p73 = scmp.eq.s32.totalorder %s30, 1
      %p74 = por %p72, %p73
      %p76 = scmp.ne.s32.totalorder %s61, %s75
      %p77 = scmp.eq.s32.totalorder %s30, 0
      %p78 = por %p76, %p77
      %s80 = sadd.s32 %s79, 1
      %p83 = scmp.eq.s32.totalorder %s24, 1
      %p84 = scmp.ne.s32.totalorder %s79, %s81
      %p85 = scmp.eq.s32.totalorder %s24, 0
      %p86 = por %p84, %p85
      %p87 = scmp.ne.s32.totalorder %s79, %s81
      %p88 = scmp.eq.s32.totalorder %s29, 1
      %p89 = por %p87, %p88
      %p90 = scmp.ne.s32.totalorder %s81, %s82
      %p91 = scmp.eq.s32.totalorder %s29, 0
      %p92 = por %p90, %p91
      %p93 = scmp.ne.s32.totalorder %s81, %s82
      %p94 = scmp.eq.s32.totalorder %s30, 1
      %p95 = por %p93, %p94
      %p97 = scmp.ne.s32.totalorder %s82, %s96
      %p98 = scmp.eq.s32.totalorder %s30, 0
      %p99 = por %p97, %p98
      %s101 = sadd.s32 %s100, 1
      %p104 = scmp.eq.s32.totalorder %s24, 1
      %p105 = scmp.ne.s32.totalorder %s100, %s102
      %p106 = scmp.eq.s32.totalorder %s24, 0
      %p107 = por %p105, %p106
      %p108 = scmp.ne.s32.totalorder %s100, %s102
      %p109 = scmp.eq.s32.totalorder %s29, 1
      %p110 = por %p108, %p109
      %p111 = scmp.ne.s32.totalorder %s102, %s103
      %p112 = scmp.eq.s32.totalorder %s29, 0
      %p113 = por %p111, %p112
      %p114 = scmp.ne.s32.totalorder %s102, %s103
      %p115 = scmp.eq.s32.totalorder %s30, 1
      %p116 = por %p114, %p115
      %p118 = scmp.ne.s32.totalorder %s103, %s117
      %p119 = scmp.eq.s32.totalorder %s30, 0
      %p120 = por %p118, %p119
      %s122 = sadd.s32 %s121, 1
      %p125 = scmp.eq.s32.totalorder %s24, 1
      %p126 = scmp.ne.s32.totalorder %s121, %s123
      %p127 = scmp.eq.s32.totalorder %s24, 0
      %p128 = por %p126, %p127
      %p129 = scmp.ne.s32.totalorder %s121, %s123
      %p130 = scmp.eq.s32.totalorder %s29, 1
      %p131 = por %p129, %p130
      %p132 = scmp.ne.s32.totalorder %s123, %s124
      %p133 = scmp.eq.s32.totalorder %s29, 0
      %p134 = por %p132, %p133
      %p135 = scmp.ne.s32.totalorder %s123, %s124
      %p136 = scmp.eq.s32.totalorder %s30, 1
      %p137 = por %p135, %p136
      %p139 = scmp.ne.s32.totalorder %s124, %s138
      %p140 = scmp.eq.s32.totalorder %s30, 0
      %p141 = por %p139, %p140
      %s143 = sadd.s32 %s142, 1
      %p146 = scmp.eq.s32.totalorder %s24, 1
      %p147 = scmp.ne.s32.totalorder %s142, %s144
      %p148 = scmp.eq.s32.totalorder %s24, 0
      %p149 = por %p147, %p148
      %p150 = scmp.ne.s32.totalorder %s142, %s144
      %p151 = scmp.eq.s32.totalorder %s29, 1
      %p152 = por %p150, %p151
      %p153 = scmp.ne.s32.totalorder %s144, %s145
      %p154 = scmp.eq.s32.totalorder %s29, 0
      %p155 = por %p153, %p154
      %p156 = scmp.ne.s32.totalorder %s144, %s145
      %p157 = scmp.eq.s32.totalorder %s30, 1
      %p158 = por %p156, %p157
      %p160 = scmp.ne.s32.totalorder %s145, %s159
      %p161 = scmp.eq.s32.totalorder %s30, 0
      %p162 = por %p160, %p161
      %s164 = sadd.s32 %s163, 1
      %p167 = scmp.eq.s32.totalorder %s24, 1
      %p168 = scmp.ne.s32.totalorder %s163, %s165
      %p169 = scmp.eq.s32.totalorder %s24, 0
      %p170 = por %p168, %p169
      %p171 = scmp.ne.s32.totalorder %s163, %s165
      %p172 = scmp.eq.s32.totalorder %s29, 1
      %p173 = por %p171, %p172
      %p174 = scmp.ne.s32.totalorder %s165, %s166
      %p175 = scmp.eq.s32.totalorder %s29, 0
      %p176 = por %p174, %p175
      %p177 = scmp.ne.s32.totalorder %s165, %s166
      %p178 = scmp.eq.s32.totalorder %s30, 1
      %p179 = por %p177, %p178
      %p181 = scmp.ne.s32.totalorder %s166, %s180
      %p182 = scmp.eq.s32.totalorder %s30, 0
      %p183 = por %p181, %p182
      %s185 = sadd.s32 %s184, 1
      %p188 = scmp.eq.s32.totalorder %s24, 1
      %p189 = scmp.ne.s32.totalorder %s184, %s186
      %p190 = scmp.eq.s32.totalorder %s24, 0
      %p191 = por %p189, %p190
      %p192 = scmp.ne.s32.totalorder %s184, %s186
      %p193 = scmp.eq.s32.totalorder %s29, 1
      %p194 = por %p192, %p193
      %p195 = scmp.ne.s32.totalorder %s186, %s187
      %p196 = scmp.eq.s32.totalorder %s29, 0
      %p197 = por %p195, %p196
      %p198 = scmp.ne.s32.totalorder %s186, %s187
      %p199 = scmp.eq.s32.totalorder %s30, 1
      %p200 = por %p198, %p199
      %p202 = scmp.ne.s32.totalorder %s187, %s201
      %p203 = scmp.eq.s32.totalorder %s30, 0
      %p204 = por %p202, %p203
      %s206 = sadd.s32 %s205, 1
      %p209 = scmp.eq.s32.totalorder %s24, 1
      %p210 = scmp.ne.s32.totalorder %s205, %s207
      %p211 = scmp.eq.s32.totalorder %s24, 0
      %p212 = por %p210, %p211
      %p213 = scmp.ne.s32.totalorder %s205, %s207
      %p214 = scmp.eq.s32.totalorder %s29, 1
      %p215 = por %p213, %p214
      %p216 = scmp.ne.s32.totalorder %s207, %s208
      %p217 = scmp.eq.s32.totalorder %s29, 0
      %p218 = por %p216, %p217
      %p219 = scmp.ne.s32.totalorder %s207, %s208
      %p220 = scmp.eq.s32.totalorder %s30, 1
      %p221 = por %p219, %p220
      %p223 = scmp.ne.s32.totalorder %s208, %s222
      %p224 = scmp.eq.s32.totalorder %s30, 0
      %p225 = por %p223, %p224
      %s227 = sadd.s32 %s226, 1
      %p230 = scmp.eq.s32.totalorder %s24, 1
      %p231 = scmp.ne.s32.totalorder %s226, %s228
      %p232 = scmp.eq.s32.totalorder %s24, 0
      %p233 = por %p231, %p232
      %p234 = scmp.ne.s32.totalorder %s226, %s228
      %p235 = scmp.eq.s32.totalorder %s29, 1
      %p236 = por %p234, %p235
      %p237 = scmp.ne.s32.totalorder %s228, %s229
      %p238 = scmp.eq.s32.totalorder %s29, 0
      %p239 = por %p237, %p238
      %p240 = scmp.ne.s32.totalorder %s228, %s229
      %p241 = scmp.eq.s32.totalorder %s30, 1
      %p242 = por %p240, %p241
      %p244 = scmp.ne.s32.totalorder %s229, %s243
      %p245 = scmp.eq.s32.totalorder %s30, 0
      %p246 = por %p244, %p245
      %s248 = sadd.s32 %s247, 1
      %p251 = scmp.eq.s32.totalorder %s24, 1
      %p252 = scmp.ne.s32.totalorder %s247, %s249
      %p253 = scmp.eq.s32.totalorder %s24, 0
      %p254 = por %p252, %p253
      %p255 = scmp.ne.s32.totalorder %s247, %s249
      %p256 = scmp.eq.s32.totalorder %s29, 1
      %p257 = por %p255, %p256
      %p258 = scmp.ne.s32.totalorder %s249, %s250
      %p259 = scmp.eq.s32.totalorder %s29, 0
      %p260 = por %p258, %p259
      %p261 = scmp.ne.s32.totalorder %s249, %s250
      %p262 = scmp.eq.s32.totalorder %s30, 1
      %p263 = por %p261, %p262
      %p265 = scmp.ne.s32.totalorder %s250, %s264
      %p266 = scmp.eq.s32.totalorder %s30, 0
      %p267 = por %p265, %p266
      %s269 = sadd.s32 %s268, 1
      %p272 = scmp.eq.s32.totalorder %s24, 1
      %p273 = scmp.ne.s32.totalorder %s268, %s270
      %p274 = scmp.eq.s32.totalorder %s24, 0
      %p275 = por %p273, %p274
      %p276 = scmp.ne.s32.totalorder %s268, %s270
      %p277 = scmp.eq.s32.totalorder %s29, 1
      %p278 = por %p276, %p277
      %p279 = scmp.ne.s32.totalorder %s270, %s271
      %p280 = scmp.eq.s32.totalorder %s29, 0
      %p281 = por %p279, %p280
      %p282 = scmp.ne.s32.totalorder %s270, %s271
      %p283 = scmp.eq.s32.totalorder %s30, 1
      %p284 = por %p282, %p283
      %p286 = scmp.ne.s32.totalorder %s271, %s285
      %p287 = scmp.eq.s32.totalorder %s30, 0
      %p288 = por %p286, %p287
      %s290 = sadd.s32 %s289, 1
      %p293 = scmp.eq.s32.totalorder %s24, 1
      %p294 = scmp.ne.s32.totalorder %s289, %s291
      %p295 = scmp.eq.s32.totalorder %s24, 0
      %p296 = por %p294, %p295
      %p297 = scmp.ne.s32.totalorder %s289, %s291
      %p298 = scmp.eq.s32.totalorder %s29, 1
      %p299 = por %p297, %p298
      %p300 = scmp.ne.s32.totalorder %s291, %s292
      %p301 = scmp.eq.s32.totalorder %s29, 0
      %p302 = por %p300, %p301
      %p303 = scmp.ne.s32.totalorder %s291, %s292
      %p304 = scmp.eq.s32.totalorder %s30, 1
      %p305 = por %p303, %p304
      %p307 = scmp.ne.s32.totalorder %s292, %s306
      %p308 = scmp.eq.s32.totalorder %s30, 0
      %p309 = por %p307, %p308
      %s311 = sadd.s32 %s310, 1
      %p314 = scmp.eq.s32.totalorder %s24, 1
      %p315 = scmp.ne.s32.totalorder %s310, %s312
      %p316 = scmp.eq.s32.totalorder %s24, 0
      %p317 = por %p315, %p316
      %p318 = scmp.ne.s32.totalorder %s310, %s312
      %p319 = scmp.eq.s32.totalorder %s29, 1
      %p320 = por %p318, %p319
      %p321 = scmp.ne.s32.totalorder %s312, %s313
      %p322 = scmp.eq.s32.totalorder %s29, 0
      %p323 = por %p321, %p322
      %p324 = scmp.ne.s32.totalorder %s312, %s313
      %p325 = scmp.eq.s32.totalorder %s30, 1
      %p326 = por %p324, %p325
      %p328 = scmp.ne.s32.totalorder %s313, %s327
      %p329 = scmp.eq.s32.totalorder %s30, 0
      %p330 = por %p328, %p329
      %s332 = sadd.s32 %s331, 1
      %p335 = scmp.eq.s32.totalorder %s24, 1
      %p336 = scmp.ne.s32.totalorder %s331, %s333
      %p337 = scmp.eq.s32.totalorder %s24, 0
      %p338 = por %p336, %p337
      %p339 = scmp.ne.s32.totalorder %s331, %s333
      %p340 = scmp.eq.s32.totalorder %s29, 1
      %p341 = por %p339, %p340
      %p342 = scmp.ne.s32.totalorder %s333, %s334
      %p343 = scmp.eq.s32.totalorder %s29, 0
      %p344 = por %p342, %p343
      %p345 = scmp.ne.s32.totalorder %s333, %s334
      %p346 = scmp.eq.s32.totalorder %s30, 1
      %p347 = por %p345, %p346
      %p349 = scmp.ne.s32.totalorder %s334, %s348
      %p350 = scmp.eq.s32.totalorder %s30, 0
      %p351 = por %p349, %p350
      %s353 = sadd.s32 %s352, 1
      %p356 = scmp.eq.s32.totalorder %s24, 1
      %p357 = scmp.ne.s32.totalorder %s352, %s354
      %p358 = scmp.eq.s32.totalorder %s24, 0
      %p359 = por %p357, %p358
      %p360 = scmp.ne.s32.totalorder %s352, %s354
      %p361 = scmp.eq.s32.totalorder %s29, 1
      %p362 = por %p360, %p361
      %p363 = scmp.ne.s32.totalorder %s354, %s355
      %p364 = scmp.eq.s32.totalorder %s29, 0
      %p365 = por %p363, %p364
      %p366 = scmp.ne.s32.totalorder %s354, %s355
      %p367 = scmp.eq.s32.totalorder %s30, 1
      %p368 = por %p366, %p367
      %p370 = scmp.ne.s32.totalorder %s355, %s369
      %p371 = scmp.eq.s32.totalorder %s30, 0
      %p372 = por %p370, %p371
      %s374 = sadd.s32 %s373, 1
      %p377 = scmp.eq.s32.totalorder %s24, 1
      %p378 = scmp.ne.s32.totalorder %s373, %s375
      %p379 = scmp.eq.s32.totalorder %s24, 0
      %p380 = por %p378, %p379
      %p381 = scmp.ne.s32.totalorder %s373, %s375
      %p382 = scmp.eq.s32.totalorder %s29, 1
      %p383 = por %p381, %p382
      %p384 = scmp.ne.s32.totalorder %s375, %s376
      %p385 = scmp.eq.s32.totalorder %s29, 0
      %p386 = por %p384, %p385
      %p387 = scmp.ne.s32.totalorder %s375, %s376
      %p388 = scmp.eq.s32.totalorder %s30, 1
      %p389 = por %p387, %p388
      %p391 = scmp.ne.s32.totalorder %s376, %s390
      %p392 = scmp.eq.s32.totalorder %s30, 0
      %p393 = por %p391, %p392
      %s395 = sadd.s32 %s394, 1
      %p398 = scmp.eq.s32.totalorder %s24, 1
      %p399 = scmp.ne.s32.totalorder %s394, %s396
      %p400 = scmp.eq.s32.totalorder %s24, 0
      %p401 = por %p399, %p400
      %p402 = scmp.ne.s32.totalorder %s394, %s396
      %p403 = scmp.eq.s32.totalorder %s29, 1
      %p404 = por %p402, %p403
      %p405 = scmp.ne.s32.totalorder %s396, %s397
      %p406 = scmp.eq.s32.totalorder %s29, 0
      %p407 = por %p405, %p406
      %p408 = scmp.ne.s32.totalorder %s396, %s397
      %p409 = scmp.eq.s32.totalorder %s30, 1
      %p410 = por %p408, %p409
      %p412 = scmp.ne.s32.totalorder %s397, %s411
      %p413 = scmp.eq.s32.totalorder %s30, 0
      %p414 = por %p412, %p413
      %s415 = ssub.s32 %s24, %s31
      %p416 = scmp.eq.s32.totalorder %s415, 0
      %s418 = sadd.s32 %s417, 1
      %s419 = scalar_select %p416, %s417, %s418
      %p422 = pneg %p416
      %p423 = scmp.eq.s32.totalorder %s24, 1
      %p424 = por %p422, %p423
      %p425 = scmp.ne.s32.totalorder %s417, %s420
      %p426 = scmp.eq.s32.totalorder %s24, 0
      %p427 = por %p425, %p426
      %p428 = scmp.ne.s32.totalorder %s417, %s420
      %p429 = scmp.eq.s32.totalorder %s29, 1
      %p430 = por %p428, %p429
      %p431 = scmp.ne.s32.totalorder %s420, %s421
      %p432 = scmp.eq.s32.totalorder %s29, 0
      %p433 = por %p431, %p432
      %p434 = scmp.ne.s32.totalorder %s420, %s421
      %p435 = scmp.eq.s32.totalorder %s30, 1
      %p436 = por %p434, %p435
      %p438 = scmp.ne.s32.totalorder %s421, %s437
      %p439 = scmp.eq.s32.totalorder %s30, 0
      %p440 = por %p438, %p439
      %p441 = scmp.le.s32.totalorder 1, %s24
      %p442 = scmp.lt.s32.totalorder %s24, 3
      %p443 = pnand %p441, %p442
      %p444 = pneg %p443
      // Predicated region
      $region9: #{heads_forward.1} parent=5 // pred_check
        _
      $region10: #{heads_forward.1} parent=5 // pred_check_branch
        %446 = sbr.rel (%p443) target = $region12
      $region11: #{heads_forward.1} parent=5 // pred_region
        %s447 = ssub.s32 %s24, 1
        // Predicated region
        $region13: #{heads_forward.1} parent=11 // pred_check
          %p448 = pneg %p71
        $region14: #{heads_forward.1} parent=11 // pred_check_branch
          %450 = sbr.rel (%p448) target = $region16
        $region15: #{heads_forward.1} parent=11 // pred_region
          _
        $region16: #{heads_forward.1} parent=11 // pred_fallthru
          _
        // Predicated region
        $region17: #{heads_forward.1} parent=11 // pred_check
          %p451 = pneg %p92
        $region18: #{heads_forward.1} parent=11 // pred_check_branch
          %453 = sbr.rel (%p451) target = $region20
        $region19: #{heads_forward.1} parent=11 // pred_region
          _
        $region20: #{heads_forward.1} parent=11 // pred_fallthru
          _
        // Predicated region
        $region21: #{heads_forward.1} parent=11 // pred_check
          %p454 = pneg %p113
        $region22: #{heads_forward.1} parent=11 // pred_check_branch
          %456 = sbr.rel (%p454) target = $region24
        $region23: #{heads_forward.1} parent=11 // pred_region
          _
        $region24: #{heads_forward.1} parent=11 // pred_fallthru
          _
        // Predicated region
        $region25: #{heads_forward.1} parent=11 // pred_check
          %p457 = pneg %p134
        $region26: #{heads_forward.1} parent=11 // pred_check_branch
          %459 = sbr.rel (%p457) target = $region28
        $region27: #{heads_forward.1} parent=11 // pred_region
          _
        $region28: #{heads_forward.1} parent=11 // pred_fallthru
          _
        // Predicated region
        $region29: #{heads_forward.1} parent=11 // pred_check
          %p460 = pneg %p155
        $region30: #{heads_forward.1} parent=11 // pred_check_branch
          %462 = sbr.rel (%p460) target = $region32
        $region31: #{heads_forward.1} parent=11 // pred_region
          _
        $region32: #{heads_forward.1} parent=11 // pred_fallthru
          _
        // Predicated region
        $region33: #{heads_forward.1} parent=11 // pred_check
          %p463 = pneg %p176
        $region34: #{heads_forward.1} parent=11 // pred_check_branch
          %465 = sbr.rel (%p463) target = $region36
        $region35: #{heads_forward.1} parent=11 // pred_region
          _
        $region36: #{heads_forward.1} parent=11 // pred_fallthru
          _
        // Predicated region
        $region37: #{heads_forward.1} parent=11 // pred_check
          %p466 = pneg %p197
        $region38: #{heads_forward.1} parent=11 // pred_check_branch
          %468 = sbr.rel (%p466) target = $region40
        $region39: #{heads_forward.1} parent=11 // pred_region
          _
        $region40: #{heads_forward.1} parent=11 // pred_fallthru
          _
        // Predicated region
        $region41: #{heads_forward.1} parent=11 // pred_check
          %p469 = pneg %p218
        $region42: #{heads_forward.1} parent=11 // pred_check_branch
          %471 = sbr.rel (%p469) target = $region44
        $region43: #{heads_forward.1} parent=11 // pred_region
          _
        $region44: #{heads_forward.1} parent=11 // pred_fallthru
          _
        // Predicated region
        $region45: #{heads_forward.1} parent=11 // pred_check
          %p472 = pneg %p239
        $region46: #{heads_forward.1} parent=11 // pred_check_branch
          %474 = sbr.rel (%p472) target = $region48
        $region47: #{heads_forward.1} parent=11 // pred_region
          _
        $region48: #{heads_forward.1} parent=11 // pred_fallthru
          _
        // Predicated region
        $region49: #{heads_forward.1} parent=11 // pred_check
          %p475 = pneg %p260
        $region50: #{heads_forward.1} parent=11 // pred_check_branch
          %477 = sbr.rel (%p475) target = $region52
        $region51: #{heads_forward.1} parent=11 // pred_region
          _
        $region52: #{heads_forward.1} parent=11 // pred_fallthru
          _
        // Predicated region
        $region53: #{heads_forward.1} parent=11 // pred_check
          %p478 = pneg %p281
        $region54: #{heads_forward.1} parent=11 // pred_check_branch
          %480 = sbr.rel (%p478) target = $region56
        $region55: #{heads_forward.1} parent=11 // pred_region
          _
        $region56: #{heads_forward.1} parent=11 // pred_fallthru
          _
        // Predicated region
        $region57: #{heads_forward.1} parent=11 // pred_check
          %p481 = pneg %p302
        $region58: #{heads_forward.1} parent=11 // pred_check_branch
          %483 = sbr.rel (%p481) target = $region60
        $region59: #{heads_forward.1} parent=11 // pred_region
          _
        $region60: #{heads_forward.1} parent=11 // pred_fallthru
          _
        // Predicated region
        $region61: #{heads_forward.1} parent=11 // pred_check
          %p484 = pneg %p323
        $region62: #{heads_forward.1} parent=11 // pred_check_branch
          %486 = sbr.rel (%p484) target = $region64
        $region63: #{heads_forward.1} parent=11 // pred_region
          _
        $region64: #{heads_forward.1} parent=11 // pred_fallthru
          _
        // Predicated region
        $region65: #{heads_forward.1} parent=11 // pred_check
          %p487 = pneg %p344
        $region66: #{heads_forward.1} parent=11 // pred_check_branch
          %489 = sbr.rel (%p487) target = $region68
        $region67: #{heads_forward.1} parent=11 // pred_region
          _
        $region68: #{heads_forward.1} parent=11 // pred_fallthru
          _
        // Predicated region
        $region69: #{heads_forward.1} parent=11 // pred_check
          %p490 = pneg %p365
        $region70: #{heads_forward.1} parent=11 // pred_check_branch
          %492 = sbr.rel (%p490) target = $region72
        $region71: #{heads_forward.1} parent=11 // pred_region
          _
        $region72: #{heads_forward.1} parent=11 // pred_fallthru
          _
        // Predicated region
        $region73: #{heads_forward.1} parent=11 // pred_check
          %p493 = pneg %p386
        $region74: #{heads_forward.1} parent=11 // pred_check_branch
          %495 = sbr.rel (%p493) target = $region76
        $region75: #{heads_forward.1} parent=11 // pred_region
          _
        $region76: #{heads_forward.1} parent=11 // pred_fallthru
          _
        // Predicated region
        $region77: #{heads_forward.1} parent=11 // pred_check
          %p496 = pneg %p407
        $region78: #{heads_forward.1} parent=11 // pred_check_branch
          %498 = sbr.rel (%p496) target = $region80
        $region79: #{heads_forward.1} parent=11 // pred_region
          _
        $region80: #{heads_forward.1} parent=11 // pred_fallthru
          _
      $region12: #{heads_forward.1} parent=5 // pred_fallthru
        _
      %p499 = scmp.lt.s32.totalorder %s24, 2
      // Predicated region
      $region81: #{heads_forward.1} parent=5 // pred_check
        %p500 = pneg %p499
      $region82: #{heads_forward.1} parent=5 // pred_check_branch
        %502 = sbr.rel (%p500) target = $region84
      $region83: #{heads_forward.1} parent=5 // pred_region
        // Predicated region
        $region85: #{heads_forward.1} parent=83 // pred_check
          %p503 = pneg %p44
        $region86: #{heads_forward.1} parent=83 // pred_check_branch
          %505 = sbr.rel (%p503) target = $region88
        $region87: #{heads_forward.1} parent=83 // pred_region
          %s506 = sand.u32 %s34, 1
          %s507 = sand.u32 %s34, 1
          %s508 = smul.addr %s507, 24
          %s509 = scalar_lea.vmem [#allocation3], %s508
          %s510 = smul.u32 3, %s24
          %s511 = smul.addr %s510, 4
          %s512 = scalar_lea.vmem %s0, %s511
          // Predicated region
          $region89: #{heads_forward.1} parent=87 // pred_check
            _
          $region90: #{heads_forward.1} parent=87 // pred_check_branch
            %514 = sbr.rel (0) target = $region92
          $region91: #{heads_forward.1} parent=87 // pred_region
            // Predicated region
            $region93: #{heads_forward.1} parent=91 // pred_check
              _
            $region94: #{heads_forward.1} parent=91 // pred_check_branch
              %516 = sbr.rel (0) target = $region96
            $region95: #{heads_forward.1} parent=91 // pred_region
              %s517 = scalar_lea.vmem %s512, 8
              %s518 = scalar_lea.vmem %s509, 8 [#allocation3]
              loop: start=0, step=1, limit=1
              $region97: #{heads_forward.1} parent=95 // loop_pre_header
                _
              $region98: #{heads_forward.1} parent=95 // loop_header
                %s520 = sphi 0, %s524
                %p521 = scmp.ge.s32.totalorder %s520, 1
                %s525 = sphi %s512, %s512
                %s526 = sphi %s509, %s509
              $region99: #{heads_forward.1} parent=95 // loop_header_branch
                %523 = sbr.rel (%p521) target = $region103
              $region100: #{heads_forward.1} parent=95 // loop_body
                %v527 = vld [vmem:[%s525] sm:$0xff]
                %528 = vst [vmem:[%s526] sm:$0xff] %v527
                %v529 = vld [vmem:[%s525 + $0x18] sm:$0xff]
                %530 = vst [vmem:[%s526 + $0xc] sm:$0xff] %v529
              $region101: #{heads_forward.1} parent=95 // loop_footer
                %s524 = sadd.s32 1, %s520
              $region102: #{heads_forward.1} parent=95 // loop_footer_branch
                %519 = sbr.rel target = $region98
              $region103: #{heads_forward.1} parent=95 // loop_exit
                _
              %s532 = ssub.s32 16, 1
              loop: start=0, step=1, limit=1
              $region104: #{heads_forward.1} parent=95 // loop_pre_header
                _
              $region105: #{heads_forward.1} parent=95 // loop_header
                %s534 = sphi 0, %s538
                %p535 = scmp.ge.s32.totalorder %s534, 1
                %s539 = sphi %s517, %s517
                %s540 = sphi %s518, %s518
              $region106: #{heads_forward.1} parent=95 // loop_header_branch
                %537 = sbr.rel (%p535) target = $region110
              $region107: #{heads_forward.1} parent=95 // loop_body
                %v541 = vld [vmem:[%s539] sm:%s532]
                %542 = vst [vmem:[%s540] sm:%s532] %v541
                %v543 = vld [vmem:[%s539 + $0x18] sm:%s532]
                %544 = vst [vmem:[%s540 + $0xc] sm:%s532] %v543
              $region108: #{heads_forward.1} parent=95 // loop_footer
                %s538 = sadd.s32 1, %s534
              $region109: #{heads_forward.1} parent=95 // loop_footer_branch
                %533 = sbr.rel target = $region105
              $region110: #{heads_forward.1} parent=95 // loop_exit
                _
            $region96: #{heads_forward.1} parent=91 // pred_fallthru
              _
          $region92: #{heads_forward.1} parent=87 // pred_fallthru
            _
          %545 = vnop
        $region88: #{heads_forward.1} parent=83 // pred_fallthru
          _
      $region84: #{heads_forward.1} parent=5 // pred_fallthru
        _
      %p546 = scmp.le.s32.totalorder 1, %s24
      %p547 = scmp.lt.s32.totalorder %s24, 3
      %p548 = pnand %p546, %p547
      %p549 = pneg %p548
      // Predicated region
      $region111: #{heads_forward.1} parent=5 // pred_check
        _
      $region112: #{heads_forward.1} parent=5 // pred_check_branch
        %551 = sbr.rel (%p548) target = $region114
      $region113: #{heads_forward.1} parent=5 // pred_region
        %s552 = ssub.s32 %s24, 1
        %s553 = sand.u32 %s37, 1
        %s554 = sand.u32 %s37, 1
        %s555 = smul.addr %s554, 24
        %s556 = scalar_lea.vmem [#allocation3], %s555
        // Predicated region
        $region115: #{heads_forward.1} parent=113 // pred_check
          %p557 = pneg %p50
        $region116: #{heads_forward.1} parent=113 // pred_check_branch
          %559 = sbr.rel (%p557) target = $region118
        $region117: #{heads_forward.1} parent=113 // pred_region
          _
        $region118: #{heads_forward.1} parent=113 // pred_fallthru
          _
        %s560 = sand.u32 %s37, 1
        %s561 = sand.u32 %s37, 1
        %s562 = smul.addr %s561, 24
        %s563 = scalar_lea.vmem [#allocation3], %s562
        %p564 = pneg %p50
        %p565 = pneg %p47
        %p566 = pneg %p71
        %p567 = pneg %p68
        %p568 = pneg %p92
        %p569 = pneg %p89
        %p570 = pneg %p113
        %p571 = pneg %p110
        %p572 = pneg %p134
        %p573 = pneg %p131
        %p574 = pneg %p155
        %p575 = pneg %p152
        %p576 = pneg %p176
        %p577 = pneg %p173
        %p578 = pneg %p197
        %p579 = pneg %p194
        %p580 = pneg %p218
        %p581 = pneg %p215
        %p582 = pneg %p239
        %p583 = pneg %p236
        %p584 = pneg %p260
        %p585 = pneg %p257
        %p586 = pneg %p281
        %p587 = pneg %p278
        %p588 = pneg %p302
        %p589 = pneg %p299
        %p590 = pneg %p323
        %p591 = pneg %p320
        %p592 = pneg %p344
        %p593 = pneg %p341
        %p594 = pneg %p365
        %p595 = pneg %p362
        %p596 = pneg %p386
        %p597 = pneg %p383
        %p598 = pneg %p407
        %p599 = pneg %p404
        %p600 = pneg %p433
        %p601 = pneg %p430
        %p602 = scmp.lt.s32.totalorder %s29, 1
        %s603 = scalar_select %p602, %s29, 1
        %s604 = smul.addr %s603, 8
        %s605 = scalar_lea.vmem %s18, %s604
        %s606 = smul.u32 3, %s29
        %p607 = scmp.lt.s32.totalorder %s29, 1
        %s608 = scalar_select %p607, %s29, 1
        %s609 = smul.addr %s608, 8
        %s610 = scalar_lea.vmem %s18, %s609
        %612 = vst [vmem:[#allocation2] sm:$0xff] 0
        %613 = vst [vmem:[#allocation2 + $0x8] sm:$0xff] 0
        %614 = vst [vmem:[#allocation2 + $0x10] sm:$0xf] 0
        %615 = vst [vmem:[#allocation2 + $0x14] sm:$0xff] 0
        %616 = vst [vmem:[#allocation2 + $0x1c] sm:$0xff] 0
        %617 = vst [vmem:[#allocation2 + $0x24] sm:$0xf] 0
        %618 = vst [vmem:[#allocation2 + $0x28] sm:$0xff] 0
        %619 = vst [vmem:[#allocation2 + $0x30] sm:$0xff] 0
        %620 = vst [vmem:[#allocation2 + $0x38] sm:$0xf] 0
        %621 = vst [vmem:[#allocation2 + $0x3c] sm:$0xff] 0
        %622 = vst [vmem:[#allocation2 + $0x44] sm:$0xff] 0
        %623 = vst [vmem:[#allocation2 + $0x4c] sm:$0xf] 0
        %624 = vst [vmem:[#allocation2 + $0x50] sm:$0xff] 0
        %625 = vst [vmem:[#allocation2 + $0x58] sm:$0xff] 0
        %626 = vst [vmem:[#allocation2 + $0x60] sm:$0xf] 0
        %627 = vst [vmem:[#allocation2 + $0x64] sm:$0xff] 0
        %628 = vst [vmem:[#allocation2 + $0x6c] sm:$0xff] 0
        %629 = vst [vmem:[#allocation2 + $0x74] sm:$0xf] 0
        %v630 = vld [vmem:[%s556] sm:$0xff]
        %v631 = vld [vmem:[%s556 + $0x8] sm:$0xf]
        %v632 = vld [vmem:[%s556 + $0xc] sm:$0xff]
        %v633 = vld [vmem:[%s556 + $0x14] sm:$0xf]
        %634 = vst [vmem:[#allocation2 + $0x4] sm:$0xff] %v630
        %635 = vst [vmem:[#allocation2 + $0xc] sm:$0xf] %v631
        %636 = vst [vmem:[#allocation2 + $0x18] sm:$0xff] %v632
        %637 = vst [vmem:[#allocation2 + $0x20] sm:$0xf] %v633
        %v638 = vld [vmem:[%s1] sm:$0x7]
        %v640 = vlaneseq
        %v641 = vshrl.u32 %v640, 7
        %v642 = vsub.s32 0, %v641
        %v643 = vrot.slane %v638, %v642
        %v644 = vlaneseq
        %v645 = vshrl.u32 %v644, 7
        %v646 = vsub.s32 1, %v645
        %v647 = vrot.slane %v638, %v646
        %v648 = vlaneseq
        %v649 = vshrl.u32 %v648, 7
        %v650 = vsub.s32 2, %v649
        %v651 = vrot.slane %v638, %v650
        %v655 = vld [vmem:[#allocation2] sm:$0xff]
        %v656 = vld [vmem:[#allocation2 + $0x8] sm:$0xff]
        %v657 = vld [vmem:[#allocation2 + $0x14] sm:$0xff]
        %v658 = vld [vmem:[#allocation2 + $0x1c] sm:$0xff]
        %v659 = vld [vmem:[#allocation2 + $0x4] sm:$0xff]
        %v660 = vld [vmem:[#allocation2 + $0xc] sm:$0xf]
        %v661 = vld [vmem:[#allocation2 + $0x18] sm:$0xff]
        %v662 = vld [vmem:[#allocation2 + $0x20] sm:$0xf]
        %v663 = vld [vmem:[#allocation2 + $0xc] sm:$0xff]
        %v664 = vld [vmem:[#allocation2 + $0x20] sm:$0xff]
        %v669 = vunpack.c.l.b16 %v655
        %v670 = vunpack.c.h.b16 %v655
        %v671 = vunpack.c.l.b16 %v656
        %v672 = vunpack.c.h.b16 %v656
        %v673 = vunpack.c.l.b16 %v657
        %v674 = vunpack.c.h.b16 %v657
        %v675 = vunpack.c.l.b16 %v658
        %v676 = vunpack.c.h.b16 %v658
        %v677 = vpack.c.b16 %v673, %v669
        %v678 = vpack.c.b16 %v674, %v670
        %v679 = vpack.c.b16 %v675, %v671
        %v680 = vpack.c.b16 %v676, %v672
        %681 = vrot.lane.b32.xlu0 %v677, 127
        %v682 = vpop.permute.xlu0 %681
        %683 = vrot.lane.b32.xlu0 %v678, 127
        %v684 = vpop.permute.xlu0 %683
        %685 = vrot.lane.b32.xlu0 %v679, 127
        %v686 = vpop.permute.xlu0 %685
        %687 = vrot.lane.b32.xlu0 %v680, 127
        %v688 = vpop.permute.xlu0 %687
        %vm689 = vcmask 1039360
        %v690 = vsel %vm689, %v682, %v684
        %v691 = vsel %vm689, %v684, %v686
        %v692 = vsel %vm689, %v686, %v688
        %693 = vrot.lane.b32.xlu0 %v677, 126
        %v694 = vpop.permute.xlu0 %693
        %695 = vrot.lane.b32.xlu0 %v678, 126
        %v696 = vpop.permute.xlu0 %695
        %697 = vrot.lane.b32.xlu0 %v679, 126
        %v698 = vpop.permute.xlu0 %697
        %699 = vrot.lane.b32.xlu0 %v680, 126
        %v700 = vpop.permute.xlu0 %699
        %vm701 = vcmask 1031168
        %v702 = vsel %vm701, %v694, %v696
        %v703 = vsel %vm701, %v696, %v698
        %v704 = vsel %vm701, %v698, %v700
        %705 = vrot.lane.b32.xlu0 %v677, 110
        %v706 = vpop.permute.xlu0 %705
        %707 = vrot.lane.b32.xlu0 %v678, 110
        %v708 = vpop.permute.xlu0 %707
        %709 = vrot.lane.b32.xlu0 %v679, 110
        %v710 = vpop.permute.xlu0 %709
        %711 = vrot.lane.b32.xlu0 %v680, 110
        %v712 = vpop.permute.xlu0 %711
        %vm713 = vcmask 900096
        %v714 = vsel %vm713, %v706, %v708
        %v715 = vsel %vm713, %v708, %v710
        %v716 = vsel %vm713, %v710, %v712
        %v721 = vunpack.c.l.b16 %v659
        %v722 = vunpack.c.h.b16 %v659
        %v723 = vunpack.c.l.b16 %v660
        %v724 = vunpack.c.l.b16 %v661
        %v725 = vunpack.c.h.b16 %v661
        %v726 = vunpack.c.l.b16 %v662
        %v727 = vpack.c.b16 %v724, %v721
        %v728 = vpack.c.b16 %v725, %v722
        %v729 = vpack.c.b16 %v726, %v723
        %730 = vrot.lane.b32.xlu0 %v727, 109
        %v731 = vpop.permute.xlu0 %730
        %732 = vrot.lane.b32.xlu0 %v728, 109
        %v733 = vpop.permute.xlu0 %732
        %734 = vrot.lane.b32.xlu0 %v729, 109
        %v735 = vpop.permute.xlu0 %734
        %vm736 = vcmask 891904
        %v737 = vsel %vm736, %v731, %v733
        %v738 = vsel %vm736, %v733, %v735
        %v741 = vunpack.c.l.b16 %v663
        %v742 = vunpack.c.h.b16 %v663
        %v743 = vunpack.c.l.b16 %v664
        %v744 = vunpack.c.h.b16 %v664
        %v745 = vpack.c.b16 %v743, %v741
        %v746 = vpack.c.b16 %v744, %v742
        %747 = vrot.lane.b32.xlu0 %v727, 108
        %v748 = vpop.permute.xlu0 %747
        %749 = vrot.lane.b32.xlu0 %v728, 108
        %v750 = vpop.permute.xlu0 %749
        %751 = vrot.lane.b32.xlu0 %v745, 108
        %v752 = vpop.permute.xlu0 %751
        %753 = vrot.lane.b32.xlu0 %v746, 108
        %v754 = vpop.permute.xlu0 %753
        %vm755 = vcmask 883712
        %v756 = vsel %vm755, %v748, %v750
        %v757 = vsel %vm755, %v750, %v752
        %v758 = vsel %vm755, %v752, %v754
        %759 = vrot.lane.b32.xlu0 %v727, 92
        %v760 = vpop.permute.xlu0 %759
        %761 = vrot.lane.b32.xlu0 %v728, 92
        %v762 = vpop.permute.xlu0 %761
        %763 = vrot.lane.b32.xlu0 %v745, 92
        %v764 = vpop.permute.xlu0 %763
        %765 = vrot.lane.b32.xlu0 %v746, 92
        %v766 = vpop.permute.xlu0 %765
        %vm767 = vcmask 752640
        %v768 = vsel %vm767, %v760, %v762
        %v769 = vsel %vm767, %v762, %v764
        %v770 = vsel %vm767, %v764, %v766
        %771 = vrot.lane.b32.xlu0 %v727, 91
        %v772 = vpop.permute.xlu0 %771
        %773 = vrot.lane.b32.xlu0 %v728, 91
        %v774 = vpop.permute.xlu0 %773
        %775 = vrot.lane.b32.xlu0 %v745, 91
        %v776 = vpop.permute.xlu0 %775
        %777 = vrot.lane.b32.xlu0 %v746, 91
        %v778 = vpop.permute.xlu0 %777
        %vm779 = vcmask 744448
        %v780 = vsel %vm779, %v772, %v774
        %v781 = vsel %vm779, %v774, %v776
        %v782 = vsel %vm779, %v776, %v778
        %783 = vrot.lane.b32.xlu0 %v727, 90
        %v784 = vpop.permute.xlu0 %783
        %785 = vrot.lane.b32.xlu0 %v728, 90
        %v786 = vpop.permute.xlu0 %785
        %787 = vrot.lane.b32.xlu0 %v745, 90
        %v788 = vpop.permute.xlu0 %787
        %789 = vrot.lane.b32.xlu0 %v746, 90
        %v790 = vpop.permute.xlu0 %789
        %vm791 = vcmask 736256
        %v792 = vsel %vm791, %v784, %v786
        %v793 = vsel %vm791, %v786, %v788
        %v794 = vsel %vm791, %v788, %v790
        %v795 = vld [vmem:[%s2] sm:$0xff]
        %v796 = vld [vmem:[%s2 + $0x8] sm:$0xff]
        %v797 = vld [vmem:[%s3] sm:$0xff]
        %v798 = vld [vmem:[%s3 + $0x8] sm:$0xff]
        %800 = vset.pattern.permute.xlu0 0
        %801 = vperm.xlu0 %800, %v797
        %v802 = vpop.permute.xlu0 %801
        %805 = vset.pattern.permute.xlu0 0
        %806 = vperm.xlu0 %805, %v798
        %v807 = vpop.permute.xlu0 %806
        %v811 = vunpack.c.l.b16 %v795
        %v812 = vunpack.c.h.b16 %v795
        %v813 = vunpack.c.l.b16 %v796
        %v814 = vunpack.c.h.b16 %v796
        %v815 = vpack.c.b16 %v813, %v811
        %v816 = vpack.c.b16 %v814, %v812
        %818 = vrot.lane.b32.xlu0 %v677, 19
        %v819 = vpop.permute.xlu0 %818
        %820 = vrot.lane.b32.xlu0 %v678, 19
        %v821 = vpop.permute.xlu0 %820
        %822 = vrot.lane.b32.xlu0 %v679, 19
        %v823 = vpop.permute.xlu0 %822
        %824 = vrot.lane.b32.xlu0 %v680, 19
        %v825 = vpop.permute.xlu0 %824
        %826 = vrot.lane.b32.xlu0 %v690, 19
        %v827 = vpop.permute.xlu0 %826
        %828 = vrot.lane.b32.xlu0 %v691, 19
        %v829 = vpop.permute.xlu0 %828
        %830 = vrot.lane.b32.xlu0 %v692, 19
        %v831 = vpop.permute.xlu0 %830
        %832 = vrot.lane.b32.xlu0 %v688, 19
        %v833 = vpop.permute.xlu0 %832
        %834 = vrot.lane.b32.xlu0 %v702, 19
        %v835 = vpop.permute.xlu0 %834
        %836 = vrot.lane.b32.xlu0 %v703, 19
        %v837 = vpop.permute.xlu0 %836
        %838 = vrot.lane.b32.xlu0 %v704, 19
        %v839 = vpop.permute.xlu0 %838
        %840 = vrot.lane.b32.xlu0 %v700, 19
        %v841 = vpop.permute.xlu0 %840
        %842 = vrot.lane.b32.xlu0 %v714, 19
        %v843 = vpop.permute.xlu0 %842
        %844 = vrot.lane.b32.xlu0 %v715, 19
        %v845 = vpop.permute.xlu0 %844
        %846 = vrot.lane.b32.xlu0 %v716, 19
        %v847 = vpop.permute.xlu0 %846
        %848 = vrot.lane.b32.xlu0 %v712, 19
        %v849 = vpop.permute.xlu0 %848
        %850 = vrot.lane.b32.xlu0 %v731, 19
        %v851 = vpop.permute.xlu0 %850
        %852 = vrot.lane.b32.xlu0 %v737, 19
        %v853 = vpop.permute.xlu0 %852
        %854 = vrot.lane.b32.xlu0 %v738, 19
        %v855 = vpop.permute.xlu0 %854
        %856 = vrot.lane.b32.xlu0 %v735, 19
        %v857 = vpop.permute.xlu0 %856
        %858 = vrot.lane.b32.xlu0 %v748, 19
        %v859 = vpop.permute.xlu0 %858
        %860 = vrot.lane.b32.xlu0 %v756, 19
        %v861 = vpop.permute.xlu0 %860
        %862 = vrot.lane.b32.xlu0 %v757, 19
        %v863 = vpop.permute.xlu0 %862
        %864 = vrot.lane.b32.xlu0 %v758, 19
        %v865 = vpop.permute.xlu0 %864
        %866 = vrot.lane.b32.xlu0 %v760, 19
        %v867 = vpop.permute.xlu0 %866
        %868 = vrot.lane.b32.xlu0 %v768, 19
        %v869 = vpop.permute.xlu0 %868
        %870 = vrot.lane.b32.xlu0 %v769, 19
        %v871 = vpop.permute.xlu0 %870
        %872 = vrot.lane.b32.xlu0 %v770, 19
        %v873 = vpop.permute.xlu0 %872
        %874 = vrot.lane.b32.xlu0 %v772, 19
        %v875 = vpop.permute.xlu0 %874
        %876 = vrot.lane.b32.xlu0 %v780, 19
        %v877 = vpop.permute.xlu0 %876
        %878 = vrot.lane.b32.xlu0 %v781, 19
        %v879 = vpop.permute.xlu0 %878
        %880 = vrot.lane.b32.xlu0 %v782, 19
        %v881 = vpop.permute.xlu0 %880
        %882 = vrot.lane.b32.xlu0 %v784, 19
        %v883 = vpop.permute.xlu0 %882
        %884 = vrot.lane.b32.xlu0 %v792, 19
        %v885 = vpop.permute.xlu0 %884
        %886 = vrot.lane.b32.xlu0 %v793, 19
        %v887 = vpop.permute.xlu0 %886
        %888 = vrot.lane.b32.xlu0 %v794, 19
        %v889 = vpop.permute.xlu0 %888
        %vm890 = vcmask 154624
        %v891 = vsel %vm890, %v819, %v821
        %v892 = vsel %vm890, %v821, %v823
        %v893 = vsel %vm890, %v823, %v825
        %v894 = vsel %vm890, %v827, %v829
        %v895 = vsel %vm890, %v829, %v831
        %v896 = vsel %vm890, %v831, %v833
        %v897 = vsel %vm890, %v835, %v837
        %v898 = vsel %vm890, %v837, %v839
        %v899 = vsel %vm890, %v839, %v841
        %v900 = vsel %vm890, %v843, %v845
        %v901 = vsel %vm890, %v845, %v847
        %v902 = vsel %vm890, %v847, %v849
        %v903 = vsel %vm890, %v851, %v853
        %v904 = vsel %vm890, %v853, %v855
        %v905 = vsel %vm890, %v855, %v857
        %v906 = vsel %vm890, %v859, %v861
        %v907 = vsel %vm890, %v861, %v863
        %v908 = vsel %vm890, %v863, %v865
        %v909 = vsel %vm890, %v867, %v869
        %v910 = vsel %vm890, %v869, %v871
        %v911 = vsel %vm890, %v871, %v873
        %v912 = vsel %vm890, %v875, %v877
        %v913 = vsel %vm890, %v877, %v879
        %v914 = vsel %vm890, %v879, %v881
        %v915 = vsel %vm890, %v883, %v885
        %v916 = vsel %vm890, %v885, %v887
        %v917 = vsel %vm890, %v887, %v889
        %vm945 = vcmask 130048
        %v947 = vsel %vm945, %v816, 0
        %949 = vmatprep.subr.bf16.mxu0 %v913
        %950 = vmatpush1.bf16.msra.mxu0 %v912
        %951 = vmatprep.subr.bf16.mxu0 %v910
        %952 = vmatpush1.bf16.msra.mxu0 %v909
        %953 = vmatprep.subr.bf16.mxu0 %v907
        %954 = vmatpush1.bf16.msra.mxu0 %v906
        %955 = vmatprep.subr.bf16.mxu0 %v904
        %956 = vmatpush1.bf16.msra.mxu0 %v903
        %957 = vmatprep.subr.bf16.mxu0 %v901
        %958 = vmatpush1.bf16.msra.mxu0 %v900
        %959 = vmatprep.subr.bf16.mxu0 %v898
        %960 = vmatpush1.bf16.msra.mxu0 %v897
        %961 = vmatprep.subr.bf16.mxu0 %v895
        %962 = vmatpush1.bf16.msra.mxu0 %v894
        %963 = vmatprep.subr.bf16.mxu0 %v892
        %964 = vmatpush1.bf16.msra.mxu0 %v891
        %965 = vmatprep.subr.bf16.mxu0 0
        %966 = vmatpush2.bf16.msra.mxu0 0
        %967 = vmatprep.subr.bf16.mxu0 0
        %968 = vmatpush2.bf16.msra.mxu0 0
        %969 = vmatprep.subr.bf16.mxu0 0
        %970 = vmatpush2.bf16.msra.mxu0 0
        %971 = vmatprep.subr.bf16.mxu0 0
        %972 = vmatpush2.bf16.msra.mxu0 0
        %973 = vmatprep.subr.bf16.mxu0 0
        %974 = vmatpush2.bf16.msra.mxu0 0
        %975 = vmatprep.subr.bf16.mxu0 0
        %976 = vmatpush2.bf16.msra.mxu0 0
        %977 = vmatprep.subr.bf16.mxu0 0
        %978 = vmatpush2.bf16.msra.mxu0 0
        %979 = vmatprep.subr.bf16.mxu0 %v916
        %980 = vmatpush2.bf16.msra.mxu0 %v915
        %981 = vmatprep.mubr.bf16.mxu0 %v947
        %982 = vmatmul.mubr.bf16.gmra.mxu0 %v815
        %v983 = vpop.f32.mrf.mxu0
        %v984 = vadd.f32 %v802, %v983
        %v985 = vpop.f32.mrf.mxu0
        %v986 = vadd.f32 %v802, %v985
        %v987 = vpop.f32.mrf.mxu0
        %v988 = vadd.f32 %v807, %v987
        %v989 = vpop.f32.mrf.mxu0
        %v990 = vadd.f32 %v807, %v989
        %991 = vdwg.mxu0
        %992 = vmatprep.subr.bf16.mxu0 0
        %993 = vmatpush1.bf16.msra.mxu0 %v914
        %994 = vmatprep.subr.bf16.mxu0 0
        %995 = vmatpush1.bf16.msra.mxu0 %v911
        %996 = vmatprep.subr.bf16.mxu0 0
        %997 = vmatpush1.bf16.msra.mxu0 %v908
        %998 = vmatprep.subr.bf16.mxu0 0
        %999 = vmatpush1.bf16.msra.mxu0 %v905
        %1000 = vmatprep.subr.bf16.mxu0 0
        %1001 = vmatpush1.bf16.msra.mxu0 %v902
        %1002 = vmatprep.subr.bf16.mxu0 0
        %1003 = vmatpush1.bf16.msra.mxu0 %v899
        %1004 = vmatprep.subr.bf16.mxu0 0
        %1005 = vmatpush1.bf16.msra.mxu0 %v896
        %1006 = vmatprep.subr.bf16.mxu0 0
        %1007 = vmatpush1.bf16.msra.mxu0 %v893
        %1008 = vmatprep.subr.bf16.mxu0 0
        %1009 = vmatpush2.bf16.msra.mxu0 0
        %1010 = vmatprep.subr.bf16.mxu0 0
        %1011 = vmatpush2.bf16.msra.mxu0 0
        %1012 = vmatprep.subr.bf16.mxu0 0
        %1013 = vmatpush2.bf16.msra.mxu0 0
        %1014 = vmatprep.subr.bf16.mxu0 0
        %1015 = vmatpush2.bf16.msra.mxu0 0
        %1016 = vmatprep.subr.bf16.mxu0 0
        %1017 = vmatpush2.bf16.msra.mxu0 0
        %1018 = vmatprep.subr.bf16.mxu0 0
        %1019 = vmatpush2.bf16.msra.mxu0 0
        %1020 = vmatprep.subr.bf16.mxu0 0
        %1021 = vmatpush2.bf16.msra.mxu0 0
        %1022 = vmatprep.subr.bf16.mxu0 0
        %1023 = vmatpush2.bf16.msra.mxu0 %v917
        %1024 = vmatprep.mubr.bf16.mxu0 %v947
        %1025 = vmatmul.mubr.bf16.gmra.mxu0 %v815
        %v1026 = vpop.f32.mrf.mxu0
        %v1027 = vadd.f32 %v802, %v1026
        %v1028 = vpop.f32.mrf.mxu0
        %v1029 = vpop.f32.mrf.mxu0
        %v1030 = vadd.f32 %v807, %v1029
        %v1031 = vpop.f32.mrf.mxu0
        %1032 = vdwg.mxu0
        %v1033 = vmax.f32 %v984, 0.0
        %v1034 = vmax.f32 %v986, 0.0
        %v1035 = vmax.f32 %v1027, 0.0
        %v1036 = vmax.f32 %v988, 0.0
        %v1037 = vmax.f32 %v990, 0.0
        %v1038 = vmax.f32 %v1030, 0.0
        %v1039 = vmul.f32 %v1033, %v643
        %v1040 = vmul.f32 %v1034, %v647
        %v1041 = vmul.f32 %v1035, %v651
        %v1042 = vmul.f32 %v1036, %v643
        %v1043 = vmul.f32 %v1037, %v647
        %v1044 = vmul.f32 %v1038, %v651
        %v1045 = vpack.c.bf16 %v1042, %v1039
        %v1046 = vpack.c.bf16 %v1043, %v1040
        %v1047 = vpack.c.bf16 %v1044, %v1041
        %v1051 = vunpack.c.l.b16 %v1045
        %v1052 = vunpack.c.l.b16 %v1046
        %v1053 = vunpack.c.l.b16 %v1047
        %v1054 = vunpack.c.h.b16 %v1045
        %v1055 = vunpack.c.h.b16 %v1046
        %v1056 = vunpack.c.h.b16 %v1047
        %v1057 = vpack.c.b16 %v1052, %v1051
        %v1058 = vpack.c.b16 %v1053, %v1053
        %v1059 = vpack.c.b16 %v1055, %v1054
        %v1060 = vpack.c.b16 %v1056, %v1056
        %1065 = vst [vmem:[#allocation2 + $0x4] sm:$0xff] %v1057
        %1066 = vst [vmem:[#allocation2 + $0xc] sm:$0xf] %v1058
        %1067 = vst [vmem:[#allocation2 + $0x18] sm:$0xff] %v1059
        %1068 = vst [vmem:[#allocation2 + $0x20] sm:$0xf] %v1060
        %v1069 = vld [vmem:[#allocation2] sm:$0xff]
        %v1070 = vld [vmem:[#allocation2 + $0x8] sm:$0xff]
        %v1071 = vld [vmem:[#allocation2 + $0x14] sm:$0xff]
        %v1072 = vld [vmem:[#allocation2 + $0x1c] sm:$0xff]
        %v1073 = vld [vmem:[#allocation2 + $0x4] sm:$0xff]
        %v1074 = vld [vmem:[#allocation2 + $0xc] sm:$0xf]
        %v1075 = vld [vmem:[#allocation2 + $0x18] sm:$0xff]
        %v1076 = vld [vmem:[#allocation2 + $0x20] sm:$0xf]
        %v1077 = vld [vmem:[#allocation2 + $0xc] sm:$0xff]
        %v1078 = vld [vmem:[#allocation2 + $0x20] sm:$0xff]
        %v1083 = vunpack.c.l.b16 %v1069
        %v1084 = vunpack.c.h.b16 %v1069
        %v1085 = vunpack.c.l.b16 %v1070
        %v1086 = vunpack.c.h.b16 %v1070
        %v1087 = vunpack.c.l.b16 %v1071
        %v1088 = vunpack.c.h.b16 %v1071
        %v1089 = vunpack.c.l.b16 %v1072
        %v1090 = vunpack.c.h.b16 %v1072
        %v1091 = vpack.c.b16 %v1087, %v1083
        %v1092 = vpack.c.b16 %v1088, %v1084
        %v1093 = vpack.c.b16 %v1089, %v1085
        %v1094 = vpack.c.b16 %v1090, %v1086
        %1095 = vrot.lane.b32.xlu0 %v1091, 127
        %v1096 = vpop.permute.xlu0 %1095
        %1097 = vrot.lane.b32.xlu0 %v1092, 127
        %v1098 = vpop.permute.xlu0 %1097
        %1099 = vrot.lane.b32.xlu0 %v1093, 127
        %v1100 = vpop.permute.xlu0 %1099
        %1101 = vrot.lane.b32.xlu0 %v1094, 127
        %v1102 = vpop.permute.xlu0 %1101
        %v1103 = vsel %vm689, %v1096, %v1098
        %v1104 = vsel %vm689, %v1098, %v1100
        %v1105 = vsel %vm689, %v1100, %v1102
        %1106 = vrot.lane.b32.xlu0 %v1091, 126
        %v1107 = vpop.permute.xlu0 %1106
        %1108 = vrot.lane.b32.xlu0 %v1092, 126
        %v1109 = vpop.permute.xlu0 %1108
        %1110 = vrot.lane.b32.xlu0 %v1093, 126
        %v1111 = vpop.permute.xlu0 %1110
        %1112 = vrot.lane.b32.xlu0 %v1094, 126
        %v1113 = vpop.permute.xlu0 %1112
        %v1114 = vsel %vm701, %v1107, %v1109
        %v1115 = vsel %vm701, %v1109, %v1111
        %v1116 = vsel %vm701, %v1111, %v1113
        %1117 = vrot.lane.b32.xlu0 %v1091, 110
        %v1118 = vpop.permute.xlu0 %1117
        %1119 = vrot.lane.b32.xlu0 %v1092, 110
        %v1120 = vpop.permute.xlu0 %1119
        %1121 = vrot.lane.b32.xlu0 %v1093, 110
        %v1122 = vpop.permute.xlu0 %1121
        %1123 = vrot.lane.b32.xlu0 %v1094, 110
        %v1124 = vpop.permute.xlu0 %1123
        %v1125 = vsel %vm713, %v1118, %v1120
        %v1126 = vsel %vm713, %v1120, %v1122
        %v1127 = vsel %vm713, %v1122, %v1124
        %v1132 = vunpack.c.l.b16 %v1073
        %v1133 = vunpack.c.h.b16 %v1073
        %v1134 = vunpack.c.l.b16 %v1074
        %v1135 = vunpack.c.l.b16 %v1075
        %v1136 = vunpack.c.h.b16 %v1075
        %v1137 = vunpack.c.l.b16 %v1076
        %v1138 = vpack.c.b16 %v1135, %v1132
        %v1139 = vpack.c.b16 %v1136, %v1133
        %v1140 = vpack.c.b16 %v1137, %v1134
        %1141 = vrot.lane.b32.xlu0 %v1138, 109
        %v1142 = vpop.permute.xlu0 %1141
        %1143 = vrot.lane.b32.xlu0 %v1139, 109
        %v1144 = vpop.permute.xlu0 %1143
        %1145 = vrot.lane.b32.xlu0 %v1140, 109
        %v1146 = vpop.permute.xlu0 %1145
        %v1147 = vsel %vm736, %v1142, %v1144
        %v1148 = vsel %vm736, %v1144, %v1146
        %v1151 = vunpack.c.l.b16 %v1077
        %v1152 = vunpack.c.h.b16 %v1077
        %v1153 = vunpack.c.l.b16 %v1078
        %v1154 = vunpack.c.h.b16 %v1078
        %v1155 = vpack.c.b16 %v1153, %v1151
        %v1156 = vpack.c.b16 %v1154, %v1152
        %1157 = vrot.lane.b32.xlu0 %v1138, 108
        %v1158 = vpop.permute.xlu0 %1157
        %1159 = vrot.lane.b32.xlu0 %v1139, 108
        %v1160 = vpop.permute.xlu0 %1159
        %1161 = vrot.lane.b32.xlu0 %v1155, 108
        %v1162 = vpop.permute.xlu0 %1161
        %1163 = vrot.lane.b32.xlu0 %v1156, 108
        %v1164 = vpop.permute.xlu0 %1163
        %v1165 = vsel %vm755, %v1158, %v1160
        %v1166 = vsel %vm755, %v1160, %v1162
        %v1167 = vsel %vm755, %v1162, %v1164
        %1168 = vrot.lane.b32.xlu0 %v1138, 92
        %v1169 = vpop.permute.xlu0 %1168
        %1170 = vrot.lane.b32.xlu0 %v1139, 92
        %v1171 = vpop.permute.xlu0 %1170
        %1172 = vrot.lane.b32.xlu0 %v1155, 92
        %v1173 = vpop.permute.xlu0 %1172
        %1174 = vrot.lane.b32.xlu0 %v1156, 92
        %v1175 = vpop.permute.xlu0 %1174
        %v1176 = vsel %vm767, %v1169, %v1171
        %v1177 = vsel %vm767, %v1171, %v1173
        %v1178 = vsel %vm767, %v1173, %v1175
        %1179 = vrot.lane.b32.xlu0 %v1138, 91
        %v1180 = vpop.permute.xlu0 %1179
        %1181 = vrot.lane.b32.xlu0 %v1139, 91
        %v1182 = vpop.permute.xlu0 %1181
        %1183 = vrot.lane.b32.xlu0 %v1155, 91
        %v1184 = vpop.permute.xlu0 %1183
        %1185 = vrot.lane.b32.xlu0 %v1156, 91
        %v1186 = vpop.permute.xlu0 %1185
        %v1187 = vsel %vm779, %v1180, %v1182
        %v1188 = vsel %vm779, %v1182, %v1184
        %v1189 = vsel %vm779, %v1184, %v1186
        %1190 = vrot.lane.b32.xlu0 %v1138, 90
        %v1191 = vpop.permute.xlu0 %1190
        %1192 = vrot.lane.b32.xlu0 %v1139, 90
        %v1193 = vpop.permute.xlu0 %1192
        %1194 = vrot.lane.b32.xlu0 %v1155, 90
        %v1195 = vpop.permute.xlu0 %1194
        %1196 = vrot.lane.b32.xlu0 %v1156, 90
        %v1197 = vpop.permute.xlu0 %1196
        %v1198 = vsel %vm791, %v1191, %v1193
        %v1199 = vsel %vm791, %v1193, %v1195
        %v1200 = vsel %vm791, %v1195, %v1197
        %v1201 = vld [vmem:[%s4] sm:$0xff]
        %v1202 = vld [vmem:[%s4 + $0x8] sm:$0xff]
        %v1203 = vld [vmem:[%s5] sm:$0xff]
        %v1204 = vld [vmem:[%s5 + $0x8] sm:$0xff]
        %1206 = vset.pattern.permute.xlu0 0
        %1207 = vperm.xlu0 %1206, %v1203
        %v1208 = vpop.permute.xlu0 %1207
        %1211 = vset.pattern.permute.xlu0 0
        %1212 = vperm.xlu0 %1211, %v1204
        %v1213 = vpop.permute.xlu0 %1212
        %v1217 = vunpack.c.l.b16 %v1201
        %v1218 = vunpack.c.h.b16 %v1201
        %v1219 = vunpack.c.l.b16 %v1202
        %v1220 = vunpack.c.h.b16 %v1202
        %v1221 = vpack.c.b16 %v1219, %v1217
        %v1222 = vpack.c.b16 %v1220, %v1218
        %1224 = vrot.lane.b32.xlu0 %v1091, 19
        %v1225 = vpop.permute.xlu0 %1224
        %1226 = vrot.lane.b32.xlu0 %v1092, 19
        %v1227 = vpop.permute.xlu0 %1226
        %1228 = vrot.lane.b32.xlu0 %v1093, 19
        %v1229 = vpop.permute.xlu0 %1228
        %1230 = vrot.lane.b32.xlu0 %v1094, 19
        %v1231 = vpop.permute.xlu0 %1230
        %1232 = vrot.lane.b32.xlu0 %v1103, 19
        %v1233 = vpop.permute.xlu0 %1232
        %1234 = vrot.lane.b32.xlu0 %v1104, 19
        %v1235 = vpop.permute.xlu0 %1234
        %1236 = vrot.lane.b32.xlu0 %v1105, 19
        %v1237 = vpop.permute.xlu0 %1236
        %1238 = vrot.lane.b32.xlu0 %v1102, 19
        %v1239 = vpop.permute.xlu0 %1238
        %1240 = vrot.lane.b32.xlu0 %v1114, 19
        %v1241 = vpop.permute.xlu0 %1240
        %1242 = vrot.lane.b32.xlu0 %v1115, 19
        %v1243 = vpop.permute.xlu0 %1242
        %1244 = vrot.lane.b32.xlu0 %v1116, 19
        %v1245 = vpop.permute.xlu0 %1244
        %1246 = vrot.lane.b32.xlu0 %v1113, 19
        %v1247 = vpop.permute.xlu0 %1246
        %1248 = vrot.lane.b32.xlu0 %v1125, 19
        %v1249 = vpop.permute.xlu0 %1248
        %1250 = vrot.lane.b32.xlu0 %v1126, 19
        %v1251 = vpop.permute.xlu0 %1250
        %1252 = vrot.lane.b32.xlu0 %v1127, 19
        %v1253 = vpop.permute.xlu0 %1252
        %1254 = vrot.lane.b32.xlu0 %v1124, 19
        %v1255 = vpop.permute.xlu0 %1254
        %1256 = vrot.lane.b32.xlu0 %v1142, 19
        %v1257 = vpop.permute.xlu0 %1256
        %1258 = vrot.lane.b32.xlu0 %v1147, 19
        %v1259 = vpop.permute.xlu0 %1258
        %1260 = vrot.lane.b32.xlu0 %v1148, 19
        %v1261 = vpop.permute.xlu0 %1260
        %1262 = vrot.lane.b32.xlu0 %v1146, 19
        %v1263 = vpop.permute.xlu0 %1262
        %1264 = vrot.lane.b32.xlu0 %v1158, 19
        %v1265 = vpop.permute.xlu0 %1264
        %1266 = vrot.lane.b32.xlu0 %v1165, 19
        %v1267 = vpop.permute.xlu0 %1266
        %1268 = vrot.lane.b32.xlu0 %v1166, 19
        %v1269 = vpop.permute.xlu0 %1268
        %1270 = vrot.lane.b32.xlu0 %v1167, 19
        %v1271 = vpop.permute.xlu0 %1270
        %1272 = vrot.lane.b32.xlu0 %v1169, 19
        %v1273 = vpop.permute.xlu0 %1272
        %1274 = vrot.lane.b32.xlu0 %v1176, 19
        %v1275 = vpop.permute.xlu0 %1274
        %1276 = vrot.lane.b32.xlu0 %v1177, 19
        %v1277 = vpop.permute.xlu0 %1276
        %1278 = vrot.lane.b32.xlu0 %v1178, 19
        %v1279 = vpop.permute.xlu0 %1278
        %1280 = vrot.lane.b32.xlu0 %v1180, 19
        %v1281 = vpop.permute.xlu0 %1280
        %1282 = vrot.lane.b32.xlu0 %v1187, 19
        %v1283 = vpop.permute.xlu0 %1282
        %1284 = vrot.lane.b32.xlu0 %v1188, 19
        %v1285 = vpop.permute.xlu0 %1284
        %1286 = vrot.lane.b32.xlu0 %v1189, 19
        %v1287 = vpop.permute.xlu0 %1286
        %1288 = vrot.lane.b32.xlu0 %v1191, 19
        %v1289 = vpop.permute.xlu0 %1288
        %1290 = vrot.lane.b32.xlu0 %v1198, 19
        %v1291 = vpop.permute.xlu0 %1290
        %1292 = vrot.lane.b32.xlu0 %v1199, 19
        %v1293 = vpop.permute.xlu0 %1292
        %1294 = vrot.lane.b32.xlu0 %v1200, 19
        %v1295 = vpop.permute.xlu0 %1294
        %v1296 = vsel %vm890, %v1225, %v1227
        %v1297 = vsel %vm890, %v1227, %v1229
        %v1298 = vsel %vm890, %v1229, %v1231
        %v1299 = vsel %vm890, %v1233, %v1235
        %v1300 = vsel %vm890, %v1235, %v1237
        %v1301 = vsel %vm890, %v1237, %v1239
        %v1302 = vsel %vm890, %v1241, %v1243
        %v1303 = vsel %vm890, %v1243, %v1245
        %v1304 = vsel %vm890, %v1245, %v1247
        %v1305 = vsel %vm890, %v1249, %v1251
        %v1306 = vsel %vm890, %v1251, %v1253
        %v1307 = vsel %vm890, %v1253, %v1255
        %v1308 = vsel %vm890, %v1257, %v1259
        %v1309 = vsel %vm890, %v1259, %v1261
        %v1310 = vsel %vm890, %v1261, %v1263
        %v1311 = vsel %vm890, %v1265, %v1267
        %v1312 = vsel %vm890, %v1267, %v1269
        %v1313 = vsel %vm890, %v1269, %v1271
        %v1314 = vsel %vm890, %v1273, %v1275
        %v1315 = vsel %vm890, %v1275, %v1277
        %v1316 = vsel %vm890, %v1277, %v1279
        %v1317 = vsel %vm890, %v1281, %v1283
        %v1318 = vsel %vm890, %v1283, %v1285
        %v1319 = vsel %vm890, %v1285, %v1287
        %v1320 = vsel %vm890, %v1289, %v1291
        %v1321 = vsel %vm890, %v1291, %v1293
        %v1322 = vsel %vm890, %v1293, %v1295
        %v1351 = vsel %vm945, %v1222, 0
        %1353 = vmatprep.subr.bf16.mxu0 %v1318
        %1354 = vmatpush1.bf16.msra.mxu0 %v1317
        %1355 = vmatprep.subr.bf16.mxu0 %v1315
        %1356 = vmatpush1.bf16.msra.mxu0 %v1314
        %1357 = vmatprep.subr.bf16.mxu0 %v1312
        %1358 = vmatpush1.bf16.msra.mxu0 %v1311
        %1359 = vmatprep.subr.bf16.mxu0 %v1309
        %1360 = vmatpush1.bf16.msra.mxu0 %v1308
        %1361 = vmatprep.subr.bf16.mxu0 %v1306
        %1362 = vmatpush1.bf16.msra.mxu0 %v1305
        %1363 = vmatprep.subr.bf16.mxu0 %v1303
        %1364 = vmatpush1.bf16.msra.mxu0 %v1302
        %1365 = vmatprep.subr.bf16.mxu0 %v1300
        %1366 = vmatpush1.bf16.msra.mxu0 %v1299
        %1367 = vmatprep.subr.bf16.mxu0 %v1297
        %1368 = vmatpush1.bf16.msra.mxu0 %v1296
        %1369 = vmatprep.subr.bf16.mxu0 0
        %1370 = vmatpush2.bf16.msra.mxu0 0
        %1371 = vmatprep.subr.bf16.mxu0 0
        %1372 = vmatpush2.bf16.msra.mxu0 0
        %1373 = vmatprep.subr.bf16.mxu0 0
        %1374 = vmatpush2.bf16.msra.mxu0 0
        %1375 = vmatprep.subr.bf16.mxu0 0
        %1376 = vmatpush2.bf16.msra.mxu0 0
        %1377 = vmatprep.subr.bf16.mxu0 0
        %1378 = vmatpush2.bf16.msra.mxu0 0
        %1379 = vmatprep.subr.bf16.mxu0 0
        %1380 = vmatpush2.bf16.msra.mxu0 0
        %1381 = vmatprep.subr.bf16.mxu0 0
        %1382 = vmatpush2.bf16.msra.mxu0 0
        %1383 = vmatprep.subr.bf16.mxu0 %v1321
        %1384 = vmatpush2.bf16.msra.mxu0 %v1320
        %1385 = vmatprep.mubr.bf16.mxu0 %v1351
        %1386 = vmatmul.mubr.bf16.gmra.mxu0 %v1221
        %v1387 = vpop.f32.mrf.mxu0
        %v1388 = vadd.f32 %v1208, %v1387
        %v1389 = vpop.f32.mrf.mxu0
        %v1390 = vadd.f32 %v1208, %v1389
        %v1391 = vpop.f32.mrf.mxu0
        %v1392 = vadd.f32 %v1213, %v1391
        %v1393 = vpop.f32.mrf.mxu0
        %v1394 = vadd.f32 %v1213, %v1393
        %1395 = vdwg.mxu0
        %1396 = vmatprep.subr.bf16.mxu0 0
        %1397 = vmatpush1.bf16.msra.mxu0 %v1319
        %1398 = vmatprep.subr.bf16.mxu0 0
        %1399 = vmatpush1.bf16.msra.mxu0 %v1316
        %1400 = vmatprep.subr.bf16.mxu0 0
        %1401 = vmatpush1.bf16.msra.mxu0 %v1313
        %1402 = vmatprep.subr.bf16.mxu0 0
        %1403 = vmatpush1.bf16.msra.mxu0 %v1310
        %1404 = vmatprep.subr.bf16.mxu0 0
        %1405 = vmatpush1.bf16.msra.mxu0 %v1307
        %1406 = vmatprep.subr.bf16.mxu0 0
        %1407 = vmatpush1.bf16.msra.mxu0 %v1304
        %1408 = vmatprep.subr.bf16.mxu0 0
        %1409 = vmatpush1.bf16.msra.mxu0 %v1301
        %1410 = vmatprep.subr.bf16.mxu0 0
        %1411 = vmatpush1.bf16.msra.mxu0 %v1298
        %1412 = vmatprep.subr.bf16.mxu0 0
        %1413 = vmatpush2.bf16.msra.mxu0 0
        %1414 = vmatprep.subr.bf16.mxu0 0
        %1415 = vmatpush2.bf16.msra.mxu0 0
        %1416 = vmatprep.subr.bf16.mxu0 0
        %1417 = vmatpush2.bf16.msra.mxu0 0
        %1418 = vmatprep.subr.bf16.mxu0 0
        %1419 = vmatpush2.bf16.msra.mxu0 0
        %1420 = vmatprep.subr.bf16.mxu0 0
        %1421 = vmatpush2.bf16.msra.mxu0 0
        %1422 = vmatprep.subr.bf16.mxu0 0
        %1423 = vmatpush2.bf16.msra.mxu0 0
        %1424 = vmatprep.subr.bf16.mxu0 0
        %1425 = vmatpush2.bf16.msra.mxu0 0
        %1426 = vmatprep.subr.bf16.mxu0 0
        %1427 = vmatpush2.bf16.msra.mxu0 %v1322
        %1428 = vmatprep.mubr.bf16.mxu0 %v1351
        %1429 = vmatmul.mubr.bf16.gmra.mxu0 %v1221
        %v1430 = vpop.f32.mrf.mxu0
        %v1431 = vadd.f32 %v1208, %v1430
        %v1432 = vpop.f32.mrf.mxu0
        %v1433 = vpop.f32.mrf.mxu0
        %v1434 = vadd.f32 %v1213, %v1433
        %v1435 = vpop.f32.mrf.mxu0
        %1436 = vdwg.mxu0
        %v1437 = vmax.f32 %v1388, 0.0
        %v1438 = vmax.f32 %v1390, 0.0
        %v1439 = vmax.f32 %v1431, 0.0
        %v1440 = vmax.f32 %v1392, 0.0
        %v1441 = vmax.f32 %v1394, 0.0
        %v1442 = vmax.f32 %v1434, 0.0
        %v1443 = vmul.f32 %v1437, %v643
        %v1444 = vmul.f32 %v1438, %v647
        %v1445 = vmul.f32 %v1439, %v651
        %v1446 = vmul.f32 %v1440, %v643
        %v1447 = vmul.f32 %v1441, %v647
        %v1448 = vmul.f32 %v1442, %v651
        %v1449 = vpack.c.bf16 %v1446, %v1443
        %v1450 = vpack.c.bf16 %v1447, %v1444
        %v1451 = vpack.c.bf16 %v1448, %v1445
        %v1455 = vunpack.c.l.b16 %v1449
        %v1456 = vunpack.c.l.b16 %v1450
        %v1457 = vunpack.c.l.b16 %v1451
        %v1458 = vunpack.c.h.b16 %v1449
        %v1459 = vunpack.c.h.b16 %v1450
        %v1460 = vunpack.c.h.b16 %v1451
        %v1461 = vpack.c.b16 %v1456, %v1455
        %v1462 = vpack.c.b16 %v1457, %v1457
        %v1463 = vpack.c.b16 %v1459, %v1458
        %v1464 = vpack.c.b16 %v1460, %v1460
        %1469 = vst [vmem:[#allocation2 + $0x4] sm:$0xff] %v1461
        %1470 = vst [vmem:[#allocation2 + $0xc] sm:$0xf] %v1462
        %1471 = vst [vmem:[#allocation2 + $0x18] sm:$0xff] %v1463
        %1472 = vst [vmem:[#allocation2 + $0x20] sm:$0xf] %v1464
        %v1473 = vld [vmem:[#allocation2] sm:$0xff]
        %v1474 = vld [vmem:[#allocation2 + $0x8] sm:$0xff]
        %v1475 = vld [vmem:[#allocation2 + $0x14] sm:$0xff]
        %v1476 = vld [vmem:[#allocation2 + $0x1c] sm:$0xff]
        %v1477 = vld [vmem:[#allocation2 + $0x4] sm:$0xff]
        %v1478 = vld [vmem:[#allocation2 + $0xc] sm:$0xf]
        %v1479 = vld [vmem:[#allocation2 + $0x18] sm:$0xff]
        %v1480 = vld [vmem:[#allocation2 + $0x20] sm:$0xf]
        %v1481 = vld [vmem:[#allocation2 + $0xc] sm:$0xff]
        %v1482 = vld [vmem:[#allocation2 + $0x20] sm:$0xff]
        %v1487 = vunpack.c.l.b16 %v1473
        %v1488 = vunpack.c.h.b16 %v1473
        %v1489 = vunpack.c.l.b16 %v1474
        %v1490 = vunpack.c.h.b16 %v1474
        %v1491 = vunpack.c.l.b16 %v1475
        %v1492 = vunpack.c.h.b16 %v1475
        %v1493 = vunpack.c.l.b16 %v1476
        %v1494 = vunpack.c.h.b16 %v1476
        %v1495 = vpack.c.b16 %v1491, %v1487
        %v1496 = vpack.c.b16 %v1492, %v1488
        %v1497 = vpack.c.b16 %v1493, %v1489
        %v1498 = vpack.c.b16 %v1494, %v1490
        %1499 = vrot.lane.b32.xlu0 %v1495, 127
        %v1500 = vpop.permute.xlu0 %1499
        %1501 = vrot.lane.b32.xlu0 %v1496, 127
        %v1502 = vpop.permute.xlu0 %1501
        %1503 = vrot.lane.b32.xlu0 %v1497, 127
        %v1504 = vpop.permute.xlu0 %1503
        %1505 = vrot.lane.b32.xlu0 %v1498, 127
        %v1506 = vpop.permute.xlu0 %1505
        %v1507 = vsel %vm689, %v1500, %v1502
        %v1508 = vsel %vm689, %v1502, %v1504
        %v1509 = vsel %vm689, %v1504, %v1506
        %1510 = vrot.lane.b32.xlu0 %v1495, 126
        %v1511 = vpop.permute.xlu0 %1510
        %1512 = vrot.lane.b32.xlu0 %v1496, 126
        %v1513 = vpop.permute.xlu0 %1512
        %1514 = vrot.lane.b32.xlu0 %v1497, 126
        %v1515 = vpop.permute.xlu0 %1514
        %1516 = vrot.lane.b32.xlu0 %v1498, 126
        %v1517 = vpop.permute.xlu0 %1516
        %v1518 = vsel %vm701, %v1511, %v1513
        %v1519 = vsel %vm701, %v1513, %v1515
        %v1520 = vsel %vm701, %v1515, %v1517
        %1521 = vrot.lane.b32.xlu0 %v1495, 110
        %v1522 = vpop.permute.xlu0 %1521
        %1523 = vrot.lane.b32.xlu0 %v1496, 110
        %v1524 = vpop.permute.xlu0 %1523
        %1525 = vrot.lane.b32.xlu0 %v1497, 110
        %v1526 = vpop.permute.xlu0 %1525
        %1527 = vrot.lane.b32.xlu0 %v1498, 110
        %v1528 = vpop.permute.xlu0 %1527
        %v1529 = vsel %vm713, %v1522, %v1524
        %v1530 = vsel %vm713, %v1524, %v1526
        %v1531 = vsel %vm713, %v1526, %v1528
        %v1536 = vunpack.c.l.b16 %v1477
        %v1537 = vunpack.c.h.b16 %v1477
        %v1538 = vunpack.c.l.b16 %v1478
        %v1539 = vunpack.c.l.b16 %v1479
        %v1540 = vunpack.c.h.b16 %v1479
        %v1541 = vunpack.c.l.b16 %v1480
        %v1542 = vpack.c.b16 %v1539, %v1536
        %v1543 = vpack.c.b16 %v1540, %v1537
        %v1544 = vpack.c.b16 %v1541, %v1538
        %1545 = vrot.lane.b32.xlu0 %v1542, 109
        %v1546 = vpop.permute.xlu0 %1545
        %1547 = vrot.lane.b32.xlu0 %v1543, 109
        %v1548 = vpop.permute.xlu0 %1547
        %1549 = vrot.lane.b32.xlu0 %v1544, 109
        %v1550 = vpop.permute.xlu0 %1549
        %v1551 = vsel %vm736, %v1546, %v1548
        %v1552 = vsel %vm736, %v1548, %v1550
        %v1555 = vunpack.c.l.b16 %v1481
        %v1556 = vunpack.c.h.b16 %v1481
        %v1557 = vunpack.c.l.b16 %v1482
        %v1558 = vunpack.c.h.b16 %v1482
        %v1559 = vpack.c.b16 %v1557, %v1555
        %v1560 = vpack.c.b16 %v1558, %v1556
        %1561 = vrot.lane.b32.xlu0 %v1542, 108
        %v1562 = vpop.permute.xlu0 %1561
        %1563 = vrot.lane.b32.xlu0 %v1543, 108
        %v1564 = vpop.permute.xlu0 %1563
        %1565 = vrot.lane.b32.xlu0 %v1559, 108
        %v1566 = vpop.permute.xlu0 %1565
        %1567 = vrot.lane.b32.xlu0 %v1560, 108
        %v1568 = vpop.permute.xlu0 %1567
        %v1569 = vsel %vm755, %v1562, %v1564
        %v1570 = vsel %vm755, %v1564, %v1566
        %v1571 = vsel %vm755, %v1566, %v1568
        %1572 = vrot.lane.b32.xlu0 %v1542, 92
        %v1573 = vpop.permute.xlu0 %1572
        %1574 = vrot.lane.b32.xlu0 %v1543, 92
        %v1575 = vpop.permute.xlu0 %1574
        %1576 = vrot.lane.b32.xlu0 %v1559, 92
        %v1577 = vpop.permute.xlu0 %1576
        %1578 = vrot.lane.b32.xlu0 %v1560, 92
        %v1579 = vpop.permute.xlu0 %1578
        %v1580 = vsel %vm767, %v1573, %v1575
        %v1581 = vsel %vm767, %v1575, %v1577
        %v1582 = vsel %vm767, %v1577, %v1579
        %1583 = vrot.lane.b32.xlu0 %v1542, 91
        %v1584 = vpop.permute.xlu0 %1583
        %1585 = vrot.lane.b32.xlu0 %v1543, 91
        %v1586 = vpop.permute.xlu0 %1585
        %1587 = vrot.lane.b32.xlu0 %v1559, 91
        %v1588 = vpop.permute.xlu0 %1587
        %1589 = vrot.lane.b32.xlu0 %v1560, 91
        %v1590 = vpop.permute.xlu0 %1589
        %v1591 = vsel %vm779, %v1584, %v1586
        %v1592 = vsel %vm779, %v1586, %v1588
        %v1593 = vsel %vm779, %v1588, %v1590
        %1594 = vrot.lane.b32.xlu0 %v1542, 90
        %v1595 = vpop.permute.xlu0 %1594
        %1596 = vrot.lane.b32.xlu0 %v1543, 90
        %v1597 = vpop.permute.xlu0 %1596
        %1598 = vrot.lane.b32.xlu0 %v1559, 90
        %v1599 = vpop.permute.xlu0 %1598
        %1600 = vrot.lane.b32.xlu0 %v1560, 90
        %v1601 = vpop.permute.xlu0 %1600
        %v1602 = vsel %vm791, %v1595, %v1597
        %v1603 = vsel %vm791, %v1597, %v1599
        %v1604 = vsel %vm791, %v1599, %v1601
        %v1605 = vld [vmem:[%s6] sm:$0xff]
        %v1606 = vld [vmem:[%s6 + $0x8] sm:$0xff]
        %v1607 = vld [vmem:[%s7] sm:$0xff]
        %v1608 = vld [vmem:[%s7 + $0x8] sm:$0xff]
        %1610 = vset.pattern.permute.xlu0 0
        %1611 = vperm.xlu0 %1610, %v1607
        %v1612 = vpop.permute.xlu0 %1611
        %1615 = vset.pattern.permute.xlu0 0
        %1616 = vperm.xlu0 %1615, %v1608
        %v1617 = vpop.permute.xlu0 %1616
        %v1621 = vunpack.c.l.b16 %v1605
        %v1622 = vunpack.c.h.b16 %v1605
        %v1623 = vunpack.c.l.b16 %v1606
        %v1624 = vunpack.c.h.b16 %v1606
        %v1625 = vpack.c.b16 %v1623, %v1621
        %v1626 = vpack.c.b16 %v1624, %v1622
        %1628 = vrot.lane.b32.xlu0 %v1495, 19
        %v1629 = vpop.permute.xlu0 %1628
        %1630 = vrot.lane.b32.xlu0 %v1496, 19
        %v1631 = vpop.permute.xlu0 %1630
        %1632 = vrot.lane.b32.xlu0 %v1497, 19
        %v1633 = vpop.permute.xlu0 %1632
        %1634 = vrot.lane.b32.xlu0 %v1498, 19
        %v1635 = vpop.permute.xlu0 %1634
        %1636 = vrot.lane.b32.xlu0 %v1507, 19
        %v1637 = vpop.permute.xlu0 %1636
        %1638 = vrot.lane.b32.xlu0 %v1508, 19
        %v1639 = vpop.permute.xlu0 %1638
        %1640 = vrot.lane.b32.xlu0 %v1509, 19
        %v1641 = vpop.permute.xlu0 %1640
        %1642 = vrot.lane.b32.xlu0 %v1506, 19
        %v1643 = vpop.permute.xlu0 %1642
        %1644 = vrot.lane.b32.xlu0 %v1518, 19
        %v1645 = vpop.permute.xlu0 %1644
        %1646 = vrot.lane.b32.xlu0 %v1519, 19
        %v1647 = vpop.permute.xlu0 %1646
        %1648 = vrot.lane.b32.xlu0 %v1520, 19
        %v1649 = vpop.permute.xlu0 %1648
        %1650 = vrot.lane.b32.xlu0 %v1517, 19
        %v1651 = vpop.permute.xlu0 %1650
        %1652 = vrot.lane.b32.xlu0 %v1529, 19
        %v1653 = vpop.permute.xlu0 %1652
        %1654 = vrot.lane.b32.xlu0 %v1530, 19
        %v1655 = vpop.permute.xlu0 %1654
        %1656 = vrot.lane.b32.xlu0 %v1531, 19
        %v1657 = vpop.permute.xlu0 %1656
        %1658 = vrot.lane.b32.xlu0 %v1528, 19
        %v1659 = vpop.permute.xlu0 %1658
        %1660 = vrot.lane.b32.xlu0 %v1546, 19
        %v1661 = vpop.permute.xlu0 %1660
        %1662 = vrot.lane.b32.xlu0 %v1551, 19
        %v1663 = vpop.permute.xlu0 %1662
        %1664 = vrot.lane.b32.xlu0 %v1552, 19
        %v1665 = vpop.permute.xlu0 %1664
        %1666 = vrot.lane.b32.xlu0 %v1550, 19
        %v1667 = vpop.permute.xlu0 %1666
        %1668 = vrot.lane.b32.xlu0 %v1562, 19
        %v1669 = vpop.permute.xlu0 %1668
        %1670 = vrot.lane.b32.xlu0 %v1569, 19
        %v1671 = vpop.permute.xlu0 %1670
        %1672 = vrot.lane.b32.xlu0 %v1570, 19
        %v1673 = vpop.permute.xlu0 %1672
        %1674 = vrot.lane.b32.xlu0 %v1571, 19
        %v1675 = vpop.permute.xlu0 %1674
        %1676 = vrot.lane.b32.xlu0 %v1573, 19
        %v1677 = vpop.permute.xlu0 %1676
        %1678 = vrot.lane.b32.xlu0 %v1580, 19
        %v1679 = vpop.permute.xlu0 %1678
        %1680 = vrot.lane.b32.xlu0 %v1581, 19
        %v1681 = vpop.permute.xlu0 %1680
        %1682 = vrot.lane.b32.xlu0 %v1582, 19
        %v1683 = vpop.permute.xlu0 %1682
        %1684 = vrot.lane.b32.xlu0 %v1584, 19
        %v1685 = vpop.permute.xlu0 %1684
        %1686 = vrot.lane.b32.xlu0 %v1591, 19
        %v1687 = vpop.permute.xlu0 %1686
        %1688 = vrot.lane.b32.xlu0 %v1592, 19
        %v1689 = vpop.permute.xlu0 %1688
        %1690 = vrot.lane.b32.xlu0 %v1593, 19
        %v1691 = vpop.permute.xlu0 %1690
        %1692 = vrot.lane.b32.xlu0 %v1595, 19
        %v1693 = vpop.permute.xlu0 %1692
        %1694 = vrot.lane.b32.xlu0 %v1602, 19
        %v1695 = vpop.permute.xlu0 %1694
        %1696 = vrot.lane.b32.xlu0 %v1603, 19
        %v1697 = vpop.permute.xlu0 %1696
        %1698 = vrot.lane.b32.xlu0 %v1604, 19
        %v1699 = vpop.permute.xlu0 %1698
        %v1700 = vsel %vm890, %v1629, %v1631
        %v1701 = vsel %vm890, %v1631, %v1633
        %v1702 = vsel %vm890, %v1633, %v1635
        %v1703 = vsel %vm890, %v1637, %v1639
        %v1704 = vsel %vm890, %v1639, %v1641
        %v1705 = vsel %vm890, %v1641, %v1643
        %v1706 = vsel %vm890, %v1645, %v1647
        %v1707 = vsel %vm890, %v1647, %v1649
        %v1708 = vsel %vm890, %v1649, %v1651
        %v1709 = vsel %vm890, %v1653, %v1655
        %v1710 = vsel %vm890, %v1655, %v1657
        %v1711 = vsel %vm890, %v1657, %v1659
        %v1712 = vsel %vm890, %v1661, %v1663
        %v1713 = vsel %vm890, %v1663, %v1665
        %v1714 = vsel %vm890, %v1665, %v1667
        %v1715 = vsel %vm890, %v1669, %v1671
        %v1716 = vsel %vm890, %v1671, %v1673
        %v1717 = vsel %vm890, %v1673, %v1675
        %v1718 = vsel %vm890, %v1677, %v1679
        %v1719 = vsel %vm890, %v1679, %v1681
        %v1720 = vsel %vm890, %v1681, %v1683
        %v1721 = vsel %vm890, %v1685, %v1687
        %v1722 = vsel %vm890, %v1687, %v1689
        %v1723 = vsel %vm890, %v1689, %v1691
        %v1724 = vsel %vm890, %v1693, %v1695
        %v1725 = vsel %vm890, %v1695, %v1697
        %v1726 = vsel %vm890, %v1697, %v1699
        %v1755 = vsel %vm945, %v1626, 0
        %1757 = vmatprep.subr.bf16.mxu0 %v1722
        %1758 = vmatpush1.bf16.msra.mxu0 %v1721
        %1759 = vmatprep.subr.bf16.mxu0 %v1719
        %1760 = vmatpush1.bf16.msra.mxu0 %v1718
        %1761 = vmatprep.subr.bf16.mxu0 %v1716
        %1762 = vmatpush1.bf16.msra.mxu0 %v1715
        %1763 = vmatprep.subr.bf16.mxu0 %v1713
        %1764 = vmatpush1.bf16.msra.mxu0 %v1712
        %1765 = vmatprep.subr.bf16.mxu0 %v1710
        %1766 = vmatpush1.bf16.msra.mxu0 %v1709
        %1767 = vmatprep.subr.bf16.mxu0 %v1707
        %1768 = vmatpush1.bf16.msra.mxu0 %v1706
        %1769 = vmatprep.subr.bf16.mxu0 %v1704
        %1770 = vmatpush1.bf16.msra.mxu0 %v1703
        %1771 = vmatprep.subr.bf16.mxu0 %v1701
        %1772 = vmatpush1.bf16.msra.mxu0 %v1700
        %1773 = vmatprep.subr.bf16.mxu0 0
        %1774 = vmatpush2.bf16.msra.mxu0 0
        %1775 = vmatprep.subr.bf16.mxu0 0
        %1776 = vmatpush2.bf16.msra.mxu0 0
        %1777 = vmatprep.subr.bf16.mxu0 0
        %1778 = vmatpush2.bf16.msra.mxu0 0
        %1779 = vmatprep.subr.bf16.mxu0 0
        %1780 = vmatpush2.bf16.msra.mxu0 0
        %1781 = vmatprep.subr.bf16.mxu0 0
        %1782 = vmatpush2.bf16.msra.mxu0 0
        %1783 = vmatprep.subr.bf16.mxu0 0
        %1784 = vmatpush2.bf16.msra.mxu0 0
        %1785 = vmatprep.subr.bf16.mxu0 0
        %1786 = vmatpush2.bf16.msra.mxu0 0
        %1787 = vmatprep.subr.bf16.mxu0 %v1725
        %1788 = vmatpush2.bf16.msra.mxu0 %v1724
        %1789 = vmatprep.mubr.bf16.mxu0 %v1755
        %1790 = vmatmul.mubr.bf16.gmra.mxu0 %v1625
        %v1791 = vpop.f32.mrf.mxu0
        %v1792 = vadd.f32 %v1612, %v1791
        %v1793 = vpop.f32.mrf.mxu0
        %v1794 = vadd.f32 %v1612, %v1793
        %v1795 = vpop.f32.mrf.mxu0
        %v1796 = vadd.f32 %v1617, %v1795
        %v1797 = vpop.f32.mrf.mxu0
        %v1798 = vadd.f32 %v1617, %v1797
        %1799 = vdwg.mxu0
        %1800 = vmatprep.subr.bf16.mxu0 0
        %1801 = vmatpush1.bf16.msra.mxu0 %v1723
        %1802 = vmatprep.subr.bf16.mxu0 0
        %1803 = vmatpush1.bf16.msra.mxu0 %v1720
        %1804 = vmatprep.subr.bf16.mxu0 0
        %1805 = vmatpush1.bf16.msra.mxu0 %v1717
        %1806 = vmatprep.subr.bf16.mxu0 0
        %1807 = vmatpush1.bf16.msra.mxu0 %v1714
        %1808 = vmatprep.subr.bf16.mxu0 0
        %1809 = vmatpush1.bf16.msra.mxu0 %v1711
        %1810 = vmatprep.subr.bf16.mxu0 0
        %1811 = vmatpush1.bf16.msra.mxu0 %v1708
        %1812 = vmatprep.subr.bf16.mxu0 0
        %1813 = vmatpush1.bf16.msra.mxu0 %v1705
        %1814 = vmatprep.subr.bf16.mxu0 0
        %1815 = vmatpush1.bf16.msra.mxu0 %v1702
        %1816 = vmatprep.subr.bf16.mxu0 0
        %1817 = vmatpush2.bf16.msra.mxu0 0
        %1818 = vmatprep.subr.bf16.mxu0 0
        %1819 = vmatpush2.bf16.msra.mxu0 0
        %1820 = vmatprep.subr.bf16.mxu0 0
        %1821 = vmatpush2.bf16.msra.mxu0 0
        %1822 = vmatprep.subr.bf16.mxu0 0
        %1823 = vmatpush2.bf16.msra.mxu0 0
        %1824 = vmatprep.subr.bf16.mxu0 0
        %1825 = vmatpush2.bf16.msra.mxu0 0
        %1826 = vmatprep.subr.bf16.mxu0 0
        %1827 = vmatpush2.bf16.msra.mxu0 0
        %1828 = vmatprep.subr.bf16.mxu0 0
        %1829 = vmatpush2.bf16.msra.mxu0 0
        %1830 = vmatprep.subr.bf16.mxu0 0
        %1831 = vmatpush2.bf16.msra.mxu0 %v1726
        %1832 = vmatprep.mubr.bf16.mxu0 %v1755
        %1833 = vmatmul.mubr.bf16.gmra.mxu0 %v1625
        %v1834 = vpop.f32.mrf.mxu0
        %v1835 = vadd.f32 %v1612, %v1834
        %v1836 = vpop.f32.mrf.mxu0
        %v1837 = vpop.f32.mrf.mxu0
        %v1838 = vadd.f32 %v1617, %v1837
        %v1839 = vpop.f32.mrf.mxu0
        %1840 = vdwg.mxu0
        %v1841 = vmax.f32 %v1792, 0.0
        %v1842 = vmax.f32 %v1794, 0.0
        %v1843 = vmax.f32 %v1835, 0.0
        %v1844 = vmax.f32 %v1796, 0.0
        %v1845 = vmax.f32 %v1798, 0.0
        %v1846 = vmax.f32 %v1838, 0.0
        %v1847 = vmul.f32 %v1841, %v643
        %v1848 = vmul.f32 %v1842, %v647
        %v1849 = vmul.f32 %v1843, %v651
        %v1850 = vmul.f32 %v1844, %v643
        %v1851 = vmul.f32 %v1845, %v647
        %v1852 = vmul.f32 %v1846, %v651
        %v1853 = vpack.c.bf16 %v1850, %v1847
        %v1854 = vpack.c.bf16 %v1851, %v1848
        %v1855 = vpack.c.bf16 %v1852, %v1849
        %v1859 = vunpack.c.l.b16 %v1853
        %v1860 = vunpack.c.l.b16 %v1854
        %v1861 = vunpack.c.l.b16 %v1855
        %v1862 = vunpack.c.h.b16 %v1853
        %v1863 = vunpack.c.h.b16 %v1854
        %v1864 = vunpack.c.h.b16 %v1855
        %v1865 = vpack.c.b16 %v1860, %v1859
        %v1866 = vpack.c.b16 %v1861, %v1861
        %v1867 = vpack.c.b16 %v1863, %v1862
        %v1868 = vpack.c.b16 %v1864, %v1864
        %1873 = vst [vmem:[#allocation2 + $0x4] sm:$0xff] %v1865
        %1874 = vst [vmem:[#allocation2 + $0xc] sm:$0xf] %v1866
        %1875 = vst [vmem:[#allocation2 + $0x18] sm:$0xff] %v1867
        %1876 = vst [vmem:[#allocation2 + $0x20] sm:$0xf] %v1868
        %v1877 = vld [vmem:[#allocation2] sm:$0xff]
        %v1878 = vld [vmem:[#allocation2 + $0x8] sm:$0xff]
        %v1879 = vld [vmem:[#allocation2 + $0x14] sm:$0xff]
        %v1880 = vld [vmem:[#allocation2 + $0x1c] sm:$0xff]
        %v1881 = vld [vmem:[#allocation2 + $0x4] sm:$0xff]
        %v1882 = vld [vmem:[#allocation2 + $0xc] sm:$0xf]
        %v1883 = vld [vmem:[#allocation2 + $0x18] sm:$0xff]
        %v1884 = vld [vmem:[#allocation2 + $0x20] sm:$0xf]
        %v1885 = vld [vmem:[#allocation2 + $0xc] sm:$0xff]
        %v1886 = vld [vmem:[#allocation2 + $0x20] sm:$0xff]
        %v1891 = vunpack.c.l.b16 %v1877
        %v1892 = vunpack.c.h.b16 %v1877
        %v1893 = vunpack.c.l.b16 %v1878
        %v1894 = vunpack.c.h.b16 %v1878
        %v1895 = vunpack.c.l.b16 %v1879
        %v1896 = vunpack.c.h.b16 %v1879
        %v1897 = vunpack.c.l.b16 %v1880
        %v1898 = vunpack.c.h.b16 %v1880
        %v1899 = vpack.c.b16 %v1895, %v1891
        %v1900 = vpack.c.b16 %v1896, %v1892
        %v1901 = vpack.c.b16 %v1897, %v1893
        %v1902 = vpack.c.b16 %v1898, %v1894
        %1903 = vrot.lane.b32.xlu0 %v1899, 127
        %v1904 = vpop.permute.xlu0 %1903
        %1905 = vrot.lane.b32.xlu0 %v1900, 127
        %v1906 = vpop.permute.xlu0 %1905
        %1907 = vrot.lane.b32.xlu0 %v1901, 127
        %v1908 = vpop.permute.xlu0 %1907
        %1909 = vrot.lane.b32.xlu0 %v1902, 127
        %v1910 = vpop.permute.xlu0 %1909
        %v1911 = vsel %vm689, %v1904, %v1906
        %v1912 = vsel %vm689, %v1906, %v1908
        %v1913 = vsel %vm689, %v1908, %v1910
        %1914 = vrot.lane.b32.xlu0 %v1899, 126
        %v1915 = vpop.permute.xlu0 %1914
        %1916 = vrot.lane.b32.xlu0 %v1900, 126
        %v1917 = vpop.permute.xlu0 %1916
        %1918 = vrot.lane.b32.xlu0 %v1901, 126
        %v1919 = vpop.permute.xlu0 %1918
        %1920 = vrot.lane.b32.xlu0 %v1902, 126
        %v1921 = vpop.permute.xlu0 %1920
        %v1922 = vsel %vm701, %v1915, %v1917
        %v1923 = vsel %vm701, %v1917, %v1919
        %v1924 = vsel %vm701, %v1919, %v1921
        %1925 = vrot.lane.b32.xlu0 %v1899, 110
        %v1926 = vpop.permute.xlu0 %1925
        %1927 = vrot.lane.b32.xlu0 %v1900, 110
        %v1928 = vpop.permute.xlu0 %1927
        %1929 = vrot.lane.b32.xlu0 %v1901, 110
        %v1930 = vpop.permute.xlu0 %1929
        %1931 = vrot.lane.b32.xlu0 %v1902, 110
        %v1932 = vpop.permute.xlu0 %1931
        %v1933 = vsel %vm713, %v1926, %v1928
        %v1934 = vsel %vm713, %v1928, %v1930
        %v1935 = vsel %vm713, %v1930, %v1932
        %v1940 = vunpack.c.l.b16 %v1881
        %v1941 = vunpack.c.h.b16 %v1881
        %v1942 = vunpack.c.l.b16 %v1882
        %v1943 = vunpack.c.l.b16 %v1883
        %v1944 = vunpack.c.h.b16 %v1883
        %v1945 = vunpack.c.l.b16 %v1884
        %v1946 = vpack.c.b16 %v1943, %v1940
        %v1947 = vpack.c.b16 %v1944, %v1941
        %v1948 = vpack.c.b16 %v1945, %v1942
        %1949 = vrot.lane.b32.xlu0 %v1946, 109
        %v1950 = vpop.permute.xlu0 %1949
        %1951 = vrot.lane.b32.xlu0 %v1947, 109
        %v1952 = vpop.permute.xlu0 %1951
        %1953 = vrot.lane.b32.xlu0 %v1948, 109
        %v1954 = vpop.permute.xlu0 %1953
        %v1955 = vsel %vm736, %v1950, %v1952
        %v1956 = vsel %vm736, %v1952, %v1954
        %v1959 = vunpack.c.l.b16 %v1885
        %v1960 = vunpack.c.h.b16 %v1885
        %v1961 = vunpack.c.l.b16 %v1886
        %v1962 = vunpack.c.h.b16 %v1886
        %v1963 = vpack.c.b16 %v1961, %v1959
        %v1964 = vpack.c.b16 %v1962, %v1960
        %1965 = vrot.lane.b32.xlu0 %v1946, 108
        %v1966 = vpop.permute.xlu0 %1965
        %1967 = vrot.lane.b32.xlu0 %v1947, 108
        %v1968 = vpop.permute.xlu0 %1967
        %1969 = vrot.lane.b32.xlu0 %v1963, 108
        %v1970 = vpop.permute.xlu0 %1969
        %1971 = vrot.lane.b32.xlu0 %v1964, 108
        %v1972 = vpop.permute.xlu0 %1971
        %v1973 = vsel %vm755, %v1966, %v1968
        %v1974 = vsel %vm755, %v1968, %v1970
        %v1975 = vsel %vm755, %v1970, %v1972
        %1976 = vrot.lane.b32.xlu0 %v1946, 92
        %v1977 = vpop.permute.xlu0 %1976
        %1978 = vrot.lane.b32.xlu0 %v1947, 92
        %v1979 = vpop.permute.xlu0 %1978
        %1980 = vrot.lane.b32.xlu0 %v1963, 92
        %v1981 = vpop.permute.xlu0 %1980
        %1982 = vrot.lane.b32.xlu0 %v1964, 92
        %v1983 = vpop.permute.xlu0 %1982
        %v1984 = vsel %vm767, %v1977, %v1979
        %v1985 = vsel %vm767, %v1979, %v1981
        %v1986 = vsel %vm767, %v1981, %v1983
        %1987 = vrot.lane.b32.xlu0 %v1946, 91
        %v1988 = vpop.permute.xlu0 %1987
        %1989 = vrot.lane.b32.xlu0 %v1947, 91
        %v1990 = vpop.permute.xlu0 %1989
        %1991 = vrot.lane.b32.xlu0 %v1963, 91
        %v1992 = vpop.permute.xlu0 %1991
        %1993 = vrot.lane.b32.xlu0 %v1964, 91
        %v1994 = vpop.permute.xlu0 %1993
        %v1995 = vsel %vm779, %v1988, %v1990
        %v1996 = vsel %vm779, %v1990, %v1992
        %v1997 = vsel %vm779, %v1992, %v1994
        %1998 = vrot.lane.b32.xlu0 %v1946, 90
        %v1999 = vpop.permute.xlu0 %1998
        %2000 = vrot.lane.b32.xlu0 %v1947, 90
        %v2001 = vpop.permute.xlu0 %2000
        %2002 = vrot.lane.b32.xlu0 %v1963, 90
        %v2003 = vpop.permute.xlu0 %2002
        %2004 = vrot.lane.b32.xlu0 %v1964, 90
        %v2005 = vpop.permute.xlu0 %2004
        %v2006 = vsel %vm791, %v1999, %v2001
        %v2007 = vsel %vm791, %v2001, %v2003
        %v2008 = vsel %vm791, %v2003, %v2005
        %v2009 = vld [vmem:[%s8] sm:$0xff]
        %v2010 = vld [vmem:[%s8 + $0x8] sm:$0xff]
        %v2011 = vld [vmem:[%s9] sm:$0xff]
        %v2012 = vld [vmem:[%s9 + $0x8] sm:$0xff]
        %2014 = vset.pattern.permute.xlu0 0
        %2015 = vperm.xlu0 %2014, %v2011
        %v2016 = vpop.permute.xlu0 %2015
        %2019 = vset.pattern.permute.xlu0 0
        %2020 = vperm.xlu0 %2019, %v2012
        %v2021 = vpop.permute.xlu0 %2020
        %v2025 = vunpack.c.l.b16 %v2009
        %v2026 = vunpack.c.h.b16 %v2009
        %v2027 = vunpack.c.l.b16 %v2010
        %v2028 = vunpack.c.h.b16 %v2010
        %v2029 = vpack.c.b16 %v2027, %v2025
        %v2030 = vpack.c.b16 %v2028, %v2026
        %2032 = vrot.lane.b32.xlu0 %v1899, 19
        %v2033 = vpop.permute.xlu0 %2032
        %2034 = vrot.lane.b32.xlu0 %v1900, 19
        %v2035 = vpop.permute.xlu0 %2034
        %2036 = vrot.lane.b32.xlu0 %v1901, 19
        %v2037 = vpop.permute.xlu0 %2036
        %2038 = vrot.lane.b32.xlu0 %v1902, 19
        %v2039 = vpop.permute.xlu0 %2038
        %2040 = vrot.lane.b32.xlu0 %v1911, 19
        %v2041 = vpop.permute.xlu0 %2040
        %2042 = vrot.lane.b32.xlu0 %v1912, 19
        %v2043 = vpop.permute.xlu0 %2042
        %2044 = vrot.lane.b32.xlu0 %v1913, 19
        %v2045 = vpop.permute.xlu0 %2044
        %2046 = vrot.lane.b32.xlu0 %v1910, 19
        %v2047 = vpop.permute.xlu0 %2046
        %2048 = vrot.lane.b32.xlu0 %v1922, 19
        %v2049 = vpop.permute.xlu0 %2048
        %2050 = vrot.lane.b32.xlu0 %v1923, 19
        %v2051 = vpop.permute.xlu0 %2050
        %2052 = vrot.lane.b32.xlu0 %v1924, 19
        %v2053 = vpop.permute.xlu0 %2052
        %2054 = vrot.lane.b32.xlu0 %v1921, 19
        %v2055 = vpop.permute.xlu0 %2054
        %2056 = vrot.lane.b32.xlu0 %v1933, 19
        %v2057 = vpop.permute.xlu0 %2056
        %2058 = vrot.lane.b32.xlu0 %v1934, 19
        %v2059 = vpop.permute.xlu0 %2058
        %2060 = vrot.lane.b32.xlu0 %v1935, 19
        %v2061 = vpop.permute.xlu0 %2060
        %2062 = vrot.lane.b32.xlu0 %v1932, 19
        %v2063 = vpop.permute.xlu0 %2062
        %2064 = vrot.lane.b32.xlu0 %v1950, 19
        %v2065 = vpop.permute.xlu0 %2064
        %2066 = vrot.lane.b32.xlu0 %v1955, 19
        %v2067 = vpop.permute.xlu0 %2066
        %2068 = vrot.lane.b32.xlu0 %v1956, 19
        %v2069 = vpop.permute.xlu0 %2068
        %2070 = vrot.lane.b32.xlu0 %v1954, 19
        %v2071 = vpop.permute.xlu0 %2070
        %2072 = vrot.lane.b32.xlu0 %v1966, 19
        %v2073 = vpop.permute.xlu0 %2072
        %2074 = vrot.lane.b32.xlu0 %v1973, 19
        %v2075 = vpop.permute.xlu0 %2074
        %2076 = vrot.lane.b32.xlu0 %v1974, 19
        %v2077 = vpop.permute.xlu0 %2076
        %2078 = vrot.lane.b32.xlu0 %v1975, 19
        %v2079 = vpop.permute.xlu0 %2078
        %2080 = vrot.lane.b32.xlu0 %v1977, 19
        %v2081 = vpop.permute.xlu0 %2080
        %2082 = vrot.lane.b32.xlu0 %v1984, 19
        %v2083 = vpop.permute.xlu0 %2082
        %2084 = vrot.lane.b32.xlu0 %v1985, 19
        %v2085 = vpop.permute.xlu0 %2084
        %2086 = vrot.lane.b32.xlu0 %v1986, 19
        %v2087 = vpop.permute.xlu0 %2086
        %2088 = vrot.lane.b32.xlu0 %v1988, 19
        %v2089 = vpop.permute.xlu0 %2088
        %2090 = vrot.lane.b32.xlu0 %v1995, 19
        %v2091 = vpop.permute.xlu0 %2090
        %2092 = vrot.lane.b32.xlu0 %v1996, 19
        %v2093 = vpop.permute.xlu0 %2092
        %2094 = vrot.lane.b32.xlu0 %v1997, 19
        %v2095 = vpop.permute.xlu0 %2094
        %2096 = vrot.lane.b32.xlu0 %v1999, 19
        %v2097 = vpop.permute.xlu0 %2096
        %2098 = vrot.lane.b32.xlu0 %v2006, 19
        %v2099 = vpop.permute.xlu0 %2098
        %2100 = vrot.lane.b32.xlu0 %v2007, 19
        %v2101 = vpop.permute.xlu0 %2100
        %2102 = vrot.lane.b32.xlu0 %v2008, 19
        %v2103 = vpop.permute.xlu0 %2102
        %v2104 = vsel %vm890, %v2033, %v2035
        %v2105 = vsel %vm890, %v2035, %v2037
        %v2106 = vsel %vm890, %v2037, %v2039
        %v2107 = vsel %vm890, %v2041, %v2043
        %v2108 = vsel %vm890, %v2043, %v2045
        %v2109 = vsel %vm890, %v2045, %v2047
        %v2110 = vsel %vm890, %v2049, %v2051
        %v2111 = vsel %vm890, %v2051, %v2053
        %v2112 = vsel %vm890, %v2053, %v2055
        %v2113 = vsel %vm890, %v2057, %v2059
        %v2114 = vsel %vm890, %v2059, %v2061
        %v2115 = vsel %vm890, %v2061, %v2063
        %v2116 = vsel %vm890, %v2065, %v2067
        %v2117 = vsel %vm890, %v2067, %v2069
        %v2118 = vsel %vm890, %v2069, %v2071
        %v2119 = vsel %vm890, %v2073, %v2075
        %v2120 = vsel %vm890, %v2075, %v2077
        %v2121 = vsel %vm890, %v2077, %v2079
        %v2122 = vsel %vm890, %v2081, %v2083
        %v2123 = vsel %vm890, %v2083, %v2085
        %v2124 = vsel %vm890, %v2085, %v2087
        %v2125 = vsel %vm890, %v2089, %v2091
        %v2126 = vsel %vm890, %v2091, %v2093
        %v2127 = vsel %vm890, %v2093, %v2095
        %v2128 = vsel %vm890, %v2097, %v2099
        %v2129 = vsel %vm890, %v2099, %v2101
        %v2130 = vsel %vm890, %v2101, %v2103
        %v2159 = vsel %vm945, %v2030, 0
        %2161 = vmatprep.subr.bf16.mxu0 %v2126
        %2162 = vmatpush1.bf16.msra.mxu0 %v2125
        %2163 = vmatprep.subr.bf16.mxu0 %v2123
        %2164 = vmatpush1.bf16.msra.mxu0 %v2122
        %2165 = vmatprep.subr.bf16.mxu0 %v2120
        %2166 = vmatpush1.bf16.msra.mxu0 %v2119
        %2167 = vmatprep.subr.bf16.mxu0 %v2117
        %2168 = vmatpush1.bf16.msra.mxu0 %v2116
        %2169 = vmatprep.subr.bf16.mxu0 %v2114
        %2170 = vmatpush1.bf16.msra.mxu0 %v2113
        %2171 = vmatprep.subr.bf16.mxu0 %v2111
        %2172 = vmatpush1.bf16.msra.mxu0 %v2110
        %2173 = vmatprep.subr.bf16.mxu0 %v2108
        %2174 = vmatpush1.bf16.msra.mxu0 %v2107
        %2175 = vmatprep.subr.bf16.mxu0 %v2105
        %2176 = vmatpush1.bf16.msra.mxu0 %v2104
        %2177 = vmatprep.subr.bf16.mxu0 0
        %2178 = vmatpush2.bf16.msra.mxu0 0
        %2179 = vmatprep.subr.bf16.mxu0 0
        %2180 = vmatpush2.bf16.msra.mxu0 0
        %2181 = vmatprep.subr.bf16.mxu0 0
        %2182 = vmatpush2.bf16.msra.mxu0 0
        %2183 = vmatprep.subr.bf16.mxu0 0
        %2184 = vmatpush2.bf16.msra.mxu0 0
        %2185 = vmatprep.subr.bf16.mxu0 0
        %2186 = vmatpush2.bf16.msra.mxu0 0
        %2187 = vmatprep.subr.bf16.mxu0 0
        %2188 = vmatpush2.bf16.msra.mxu0 0
        %2189 = vmatprep.subr.bf16.mxu0 0
        %2190 = vmatpush2.bf16.msra.mxu0 0
        %2191 = vmatprep.subr.bf16.mxu0 %v2129
        %2192 = vmatpush2.bf16.msra.mxu0 %v2128
        %2193 = vmatprep.mubr.bf16.mxu0 %v2159
        %2194 = vmatmul.mubr.bf16.gmra.mxu0 %v2029
        %v2195 = vpop.f32.mrf.mxu0
        %v2196 = vadd.f32 %v2016, %v2195
        %v2197 = vpop.f32.mrf.mxu0
        %v2198 = vadd.f32 %v2016, %v2197
        %v2199 = vpop.f32.mrf.mxu0
        %v2200 = vadd.f32 %v2021, %v2199
        %v2201 = vpop.f32.mrf.mxu0
        %v2202 = vadd.f32 %v2021, %v2201
        %2203 = vdwg.mxu0
        %2204 = vmatprep.subr.bf16.mxu0 0
        %2205 = vmatpush1.bf16.msra.mxu0 %v2127
        %2206 = vmatprep.subr.bf16.mxu0 0
        %2207 = vmatpush1.bf16.msra.mxu0 %v2124
        %2208 = vmatprep.subr.bf16.mxu0 0
        %2209 = vmatpush1.bf16.msra.mxu0 %v2121
        %2210 = vmatprep.subr.bf16.mxu0 0
        %2211 = vmatpush1.bf16.msra.mxu0 %v2118
        %2212 = vmatprep.subr.bf16.mxu0 0
        %2213 = vmatpush1.bf16.msra.mxu0 %v2115
        %2214 = vmatprep.subr.bf16.mxu0 0
        %2215 = vmatpush1.bf16.msra.mxu0 %v2112
        %2216 = vmatprep.subr.bf16.mxu0 0
        %2217 = vmatpush1.bf16.msra.mxu0 %v2109
        %2218 = vmatprep.subr.bf16.mxu0 0
        %2219 = vmatpush1.bf16.msra.mxu0 %v2106
        %2220 = vmatprep.subr.bf16.mxu0 0
        %2221 = vmatpush2.bf16.msra.mxu0 0
        %2222 = vmatprep.subr.bf16.mxu0 0
        %2223 = vmatpush2.bf16.msra.mxu0 0
        %2224 = vmatprep.subr.bf16.mxu0 0
        %2225 = vmatpush2.bf16.msra.mxu0 0
        %2226 = vmatprep.subr.bf16.mxu0 0
        %2227 = vmatpush2.bf16.msra.mxu0 0
        %2228 = vmatprep.subr.bf16.mxu0 0
        %2229 = vmatpush2.bf16.msra.mxu0 0
        %2230 = vmatprep.subr.bf16.mxu0 0
        %2231 = vmatpush2.bf16.msra.mxu0 0
        %2232 = vmatprep.subr.bf16.mxu0 0
        %2233 = vmatpush2.bf16.msra.mxu0 0
        %2234 = vmatprep.subr.bf16.mxu0 0
        %2235 = vmatpush2.bf16.msra.mxu0 %v2130
        %2236 = vmatprep.mubr.bf16.mxu0 %v2159
        %2237 = vmatmul.mubr.bf16.gmra.mxu0 %v2029
        %v2238 = vpop.f32.mrf.mxu0
        %v2239 = vadd.f32 %v2016, %v2238
        %v2240 = vpop.f32.mrf.mxu0
        %v2241 = vpop.f32.mrf.mxu0
        %v2242 = vadd.f32 %v2021, %v2241
        %v2243 = vpop.f32.mrf.mxu0
        %2244 = vdwg.mxu0
        %v2245 = vmax.f32 %v2196, 0.0
        %v2246 = vmax.f32 %v2198, 0.0
        %v2247 = vmax.f32 %v2239, 0.0
        %v2248 = vmax.f32 %v2200, 0.0
        %v2249 = vmax.f32 %v2202, 0.0
        %v2250 = vmax.f32 %v2242, 0.0
        %v2251 = vmul.f32 %v2245, %v643
        %v2252 = vmul.f32 %v2246, %v647
        %v2253 = vmul.f32 %v2247, %v651
        %v2254 = vmul.f32 %v2248, %v643
        %v2255 = vmul.f32 %v2249, %v647
        %v2256 = vmul.f32 %v2250, %v651
        %v2257 = vpack.c.bf16 %v2254, %v2251
        %v2258 = vpack.c.bf16 %v2255, %v2252
        %v2259 = vpack.c.bf16 %v2256, %v2253
        %v2263 = vunpack.c.l.b16 %v2257
        %v2264 = vunpack.c.l.b16 %v2258
        %v2265 = vunpack.c.l.b16 %v2259
        %v2266 = vunpack.c.h.b16 %v2257
        %v2267 = vunpack.c.h.b16 %v2258
        %v2268 = vunpack.c.h.b16 %v2259
        %v2269 = vpack.c.b16 %v2264, %v2263
        %v2270 = vpack.c.b16 %v2265, %v2265
        %v2271 = vpack.c.b16 %v2267, %v2266
        %v2272 = vpack.c.b16 %v2268, %v2268
        %2277 = vst [vmem:[#allocation2 + $0x4] sm:$0xff] %v2269
        %2278 = vst [vmem:[#allocation2 + $0xc] sm:$0xf] %v2270
        %2279 = vst [vmem:[#allocation2 + $0x18] sm:$0xff] %v2271
        %2280 = vst [vmem:[#allocation2 + $0x20] sm:$0xf] %v2272
        %v2281 = vld [vmem:[#allocation2] sm:$0xff]
        %v2282 = vld [vmem:[#allocation2 + $0x8] sm:$0xff]
        %v2283 = vld [vmem:[#allocation2 + $0x14] sm:$0xff]
        %v2284 = vld [vmem:[#allocation2 + $0x1c] sm:$0xff]
        %v2285 = vld [vmem:[#allocation2 + $0x4] sm:$0xff]
        %v2286 = vld [vmem:[#allocation2 + $0xc] sm:$0xf]
        %v2287 = vld [vmem:[#allocation2 + $0x18] sm:$0xff]
        %v2288 = vld [vmem:[#allocation2 + $0x20] sm:$0xf]
        %v2289 = vld [vmem:[#allocation2 + $0xc] sm:$0xff]
        %v2290 = vld [vmem:[#allocation2 + $0x20] sm:$0xff]
        %v2295 = vunpack.c.l.b16 %v2281
        %v2296 = vunpack.c.h.b16 %v2281
        %v2297 = vunpack.c.l.b16 %v2282
        %v2298 = vunpack.c.h.b16 %v2282
        %v2299 = vunpack.c.l.b16 %v2283
        %v2300 = vunpack.c.h.b16 %v2283
        %v2301 = vunpack.c.l.b16 %v2284
        %v2302 = vunpack.c.h.b16 %v2284
        %v2303 = vpack.c.b16 %v2299, %v2295
        %v2304 = vpack.c.b16 %v2300, %v2296
        %v2305 = vpack.c.b16 %v2301, %v2297
        %v2306 = vpack.c.b16 %v2302, %v2298
        %2307 = vrot.lane.b32.xlu0 %v2303, 127
        %v2308 = vpop.permute.xlu0 %2307
        %2309 = vrot.lane.b32.xlu0 %v2304, 127
        %v2310 = vpop.permute.xlu0 %2309
        %2311 = vrot.lane.b32.xlu0 %v2305, 127
        %v2312 = vpop.permute.xlu0 %2311
        %2313 = vrot.lane.b32.xlu0 %v2306, 127
        %v2314 = vpop.permute.xlu0 %2313
        %v2315 = vsel %vm689, %v2308, %v2310
        %v2316 = vsel %vm689, %v2310, %v2312
        %v2317 = vsel %vm689, %v2312, %v2314
        %2318 = vrot.lane.b32.xlu0 %v2303, 126
        %v2319 = vpop.permute.xlu0 %2318
        %2320 = vrot.lane.b32.xlu0 %v2304, 126
        %v2321 = vpop.permute.xlu0 %2320
        %2322 = vrot.lane.b32.xlu0 %v2305, 126
        %v2323 = vpop.permute.xlu0 %2322
        %2324 = vrot.lane.b32.xlu0 %v2306, 126
        %v2325 = vpop.permute.xlu0 %2324
        %v2326 = vsel %vm701, %v2319, %v2321
        %v2327 = vsel %vm701, %v2321, %v2323
        %v2328 = vsel %vm701, %v2323, %v2325
        %2329 = vrot.lane.b32.xlu0 %v2303, 110
        %v2330 = vpop.permute.xlu0 %2329
        %2331 = vrot.lane.b32.xlu0 %v2304, 110
        %v2332 = vpop.permute.xlu0 %2331
        %2333 = vrot.lane.b32.xlu0 %v2305, 110
        %v2334 = vpop.permute.xlu0 %2333
        %2335 = vrot.lane.b32.xlu0 %v2306, 110
        %v2336 = vpop.permute.xlu0 %2335
        %v2337 = vsel %vm713, %v2330, %v2332
        %v2338 = vsel %vm713, %v2332, %v2334
        %v2339 = vsel %vm713, %v2334, %v2336
        %v2344 = vunpack.c.l.b16 %v2285
        %v2345 = vunpack.c.h.b16 %v2285
        %v2346 = vunpack.c.l.b16 %v2286
        %v2347 = vunpack.c.l.b16 %v2287
        %v2348 = vunpack.c.h.b16 %v2287
        %v2349 = vunpack.c.l.b16 %v2288
        %v2350 = vpack.c.b16 %v2347, %v2344
        %v2351 = vpack.c.b16 %v2348, %v2345
        %v2352 = vpack.c.b16 %v2349, %v2346
        %2353 = vrot.lane.b32.xlu0 %v2350, 109
        %v2354 = vpop.permute.xlu0 %2353
        %2355 = vrot.lane.b32.xlu0 %v2351, 109
        %v2356 = vpop.permute.xlu0 %2355
        %2357 = vrot.lane.b32.xlu0 %v2352, 109
        %v2358 = vpop.permute.xlu0 %2357
        %v2359 = vsel %vm736, %v2354, %v2356
        %v2360 = vsel %vm736, %v2356, %v2358
        %v2363 = vunpack.c.l.b16 %v2289
        %v2364 = vunpack.c.h.b16 %v2289
        %v2365 = vunpack.c.l.b16 %v2290
        %v2366 = vunpack.c.h.b16 %v2290
        %v2367 = vpack.c.b16 %v2365, %v2363
        %v2368 = vpack.c.b16 %v2366, %v2364
        %2369 = vrot.lane.b32.xlu0 %v2350, 108
        %v2370 = vpop.permute.xlu0 %2369
        %2371 = vrot.lane.b32.xlu0 %v2351, 108
        %v2372 = vpop.permute.xlu0 %2371
        %2373 = vrot.lane.b32.xlu0 %v2367, 108
        %v2374 = vpop.permute.xlu0 %2373
        %2375 = vrot.lane.b32.xlu0 %v2368, 108
        %v2376 = vpop.permute.xlu0 %2375
        %v2377 = vsel %vm755, %v2370, %v2372
        %v2378 = vsel %vm755, %v2372, %v2374
        %v2379 = vsel %vm755, %v2374, %v2376
        %2380 = vrot.lane.b32.xlu0 %v2350, 92
        %v2381 = vpop.permute.xlu0 %2380
        %2382 = vrot.lane.b32.xlu0 %v2351, 92
        %v2383 = vpop.permute.xlu0 %2382
        %2384 = vrot.lane.b32.xlu0 %v2367, 92
        %v2385 = vpop.permute.xlu0 %2384
        %2386 = vrot.lane.b32.xlu0 %v2368, 92
        %v2387 = vpop.permute.xlu0 %2386
        %v2388 = vsel %vm767, %v2381, %v2383
        %v2389 = vsel %vm767, %v2383, %v2385
        %v2390 = vsel %vm767, %v2385, %v2387
        %2391 = vrot.lane.b32.xlu0 %v2350, 91
        %v2392 = vpop.permute.xlu0 %2391
        %2393 = vrot.lane.b32.xlu0 %v2351, 91
        %v2394 = vpop.permute.xlu0 %2393
        %2395 = vrot.lane.b32.xlu0 %v2367, 91
        %v2396 = vpop.permute.xlu0 %2395
        %2397 = vrot.lane.b32.xlu0 %v2368, 91
        %v2398 = vpop.permute.xlu0 %2397
        %v2399 = vsel %vm779, %v2392, %v2394
        %v2400 = vsel %vm779, %v2394, %v2396
        %v2401 = vsel %vm779, %v2396, %v2398
        %2402 = vrot.lane.b32.xlu0 %v2350, 90
        %v2403 = vpop.permute.xlu0 %2402
        %2404 = vrot.lane.b32.xlu0 %v2351, 90
        %v2405 = vpop.permute.xlu0 %2404
        %2406 = vrot.lane.b32.xlu0 %v2367, 90
        %v2407 = vpop.permute.xlu0 %2406
        %2408 = vrot.lane.b32.xlu0 %v2368, 90
        %v2409 = vpop.permute.xlu0 %2408
        %v2410 = vsel %vm791, %v2403, %v2405
        %v2411 = vsel %vm791, %v2405, %v2407
        %v2412 = vsel %vm791, %v2407, %v2409
        %v2413 = vld [vmem:[%s10] sm:$0xff]
        %v2414 = vld [vmem:[%s10 + $0x8] sm:$0xff]
        %v2415 = vld [vmem:[%s10 + $0x10] sm:$0xff]
        %v2416 = vld [vmem:[%s10 + $0x18] sm:$0xff]
        %v2417 = vld [vmem:[%s10 + $0x20] sm:$0xff]
        %v2418 = vld [vmem:[%s10 + $0x28] sm:$0xff]
        %v2419 = vld [vmem:[%s11] sm:$0xff]
        %v2420 = vld [vmem:[%s11 + $0x8] sm:$0xff]
        %v2421 = vld [vmem:[%s11 + $0x10] sm:$0xff]
        %v2422 = vld [vmem:[%s11 + $0x18] sm:$0xff]
        %v2423 = vld [vmem:[%s11 + $0x20] sm:$0xff]
        %v2424 = vld [vmem:[%s11 + $0x28] sm:$0xff]
        %2426 = vset.pattern.permute.xlu0 0
        %2427 = vperm.xlu0 %2426, %v2419
        %v2428 = vpop.permute.xlu0 %2427
        %2431 = vset.pattern.permute.xlu0 0
        %2432 = vperm.xlu0 %2431, %v2420
        %v2433 = vpop.permute.xlu0 %2432
        %2436 = vset.pattern.permute.xlu0 0
        %2437 = vperm.xlu0 %2436, %v2421
        %v2438 = vpop.permute.xlu0 %2437
        %2441 = vset.pattern.permute.xlu0 0
        %2442 = vperm.xlu0 %2441, %v2422
        %v2443 = vpop.permute.xlu0 %2442
        %2446 = vset.pattern.permute.xlu0 0
        %2447 = vperm.xlu0 %2446, %v2423
        %v2448 = vpop.permute.xlu0 %2447
        %2451 = vset.pattern.permute.xlu0 0
        %2452 = vperm.xlu0 %2451, %v2424
        %v2453 = vpop.permute.xlu0 %2452
        %v2461 = vunpack.c.l.b16 %v2413
        %v2462 = vunpack.c.h.b16 %v2413
        %v2463 = vunpack.c.l.b16 %v2414
        %v2464 = vunpack.c.h.b16 %v2414
        %v2465 = vunpack.c.l.b16 %v2415
        %v2466 = vunpack.c.h.b16 %v2415
        %v2467 = vunpack.c.l.b16 %v2416
        %v2468 = vunpack.c.h.b16 %v2416
        %v2469 = vunpack.c.l.b16 %v2417
        %v2470 = vunpack.c.h.b16 %v2417
        %v2471 = vunpack.c.l.b16 %v2418
        %v2472 = vunpack.c.h.b16 %v2418
        %v2473 = vpack.c.b16 %v2463, %v2461
        %v2474 = vpack.c.b16 %v2464, %v2462
        %v2475 = vpack.c.b16 %v2467, %v2465
        %v2476 = vpack.c.b16 %v2468, %v2466
        %v2477 = vpack.c.b16 %v2471, %v2469
        %v2478 = vpack.c.b16 %v2472, %v2470
        %2482 = vrot.lane.b32.xlu0 %v2303, 19
        %v2483 = vpop.permute.xlu0 %2482
        %2484 = vrot.lane.b32.xlu0 %v2304, 19
        %v2485 = vpop.permute.xlu0 %2484
        %2486 = vrot.lane.b32.xlu0 %v2305, 19
        %v2487 = vpop.permute.xlu0 %2486
        %2488 = vrot.lane.b32.xlu0 %v2306, 19
        %v2489 = vpop.permute.xlu0 %2488
        %2490 = vrot.lane.b32.xlu0 %v2315, 19
        %v2491 = vpop.permute.xlu0 %2490
        %2492 = vrot.lane.b32.xlu0 %v2316, 19
        %v2493 = vpop.permute.xlu0 %2492
        %2494 = vrot.lane.b32.xlu0 %v2317, 19
        %v2495 = vpop.permute.xlu0 %2494
        %2496 = vrot.lane.b32.xlu0 %v2314, 19
        %v2497 = vpop.permute.xlu0 %2496
        %2498 = vrot.lane.b32.xlu0 %v2326, 19
        %v2499 = vpop.permute.xlu0 %2498
        %2500 = vrot.lane.b32.xlu0 %v2327, 19
        %v2501 = vpop.permute.xlu0 %2500
        %2502 = vrot.lane.b32.xlu0 %v2328, 19
        %v2503 = vpop.permute.xlu0 %2502
        %2504 = vrot.lane.b32.xlu0 %v2325, 19
        %v2505 = vpop.permute.xlu0 %2504
        %2506 = vrot.lane.b32.xlu0 %v2337, 19
        %v2507 = vpop.permute.xlu0 %2506
        %2508 = vrot.lane.b32.xlu0 %v2338, 19
        %v2509 = vpop.permute.xlu0 %2508
        %2510 = vrot.lane.b32.xlu0 %v2339, 19
        %v2511 = vpop.permute.xlu0 %2510
        %2512 = vrot.lane.b32.xlu0 %v2336, 19
        %v2513 = vpop.permute.xlu0 %2512
        %2514 = vrot.lane.b32.xlu0 %v2354, 19
        %v2515 = vpop.permute.xlu0 %2514
        %2516 = vrot.lane.b32.xlu0 %v2359, 19
        %v2517 = vpop.permute.xlu0 %2516
        %2518 = vrot.lane.b32.xlu0 %v2360, 19
        %v2519 = vpop.permute.xlu0 %2518
        %2520 = vrot.lane.b32.xlu0 %v2358, 19
        %v2521 = vpop.permute.xlu0 %2520
        %2522 = vrot.lane.b32.xlu0 %v2370, 19
        %v2523 = vpop.permute.xlu0 %2522
        %2524 = vrot.lane.b32.xlu0 %v2377, 19
        %v2525 = vpop.permute.xlu0 %2524
        %2526 = vrot.lane.b32.xlu0 %v2378, 19
        %v2527 = vpop.permute.xlu0 %2526
        %2528 = vrot.lane.b32.xlu0 %v2379, 19
        %v2529 = vpop.permute.xlu0 %2528
        %2530 = vrot.lane.b32.xlu0 %v2381, 19
        %v2531 = vpop.permute.xlu0 %2530
        %2532 = vrot.lane.b32.xlu0 %v2388, 19
        %v2533 = vpop.permute.xlu0 %2532
        %2534 = vrot.lane.b32.xlu0 %v2389, 19
        %v2535 = vpop.permute.xlu0 %2534
        %2536 = vrot.lane.b32.xlu0 %v2390, 19
        %v2537 = vpop.permute.xlu0 %2536
        %2538 = vrot.lane.b32.xlu0 %v2392, 19
        %v2539 = vpop.permute.xlu0 %2538
        %2540 = vrot.lane.b32.xlu0 %v2399, 19
        %v2541 = vpop.permute.xlu0 %2540
        %2542 = vrot.lane.b32.xlu0 %v2400, 19
        %v2543 = vpop.permute.xlu0 %2542
        %2544 = vrot.lane.b32.xlu0 %v2401, 19
        %v2545 = vpop.permute.xlu0 %2544
        %2546 = vrot.lane.b32.xlu0 %v2403, 19
        %v2547 = vpop.permute.xlu0 %2546
        %2548 = vrot.lane.b32.xlu0 %v2410, 19
        %v2549 = vpop.permute.xlu0 %2548
        %2550 = vrot.lane.b32.xlu0 %v2411, 19
        %v2551 = vpop.permute.xlu0 %2550
        %2552 = vrot.lane.b32.xlu0 %v2412, 19
        %v2553 = vpop.permute.xlu0 %2552
        %v2554 = vsel %vm890, %v2483, %v2485
        %v2555 = vsel %vm890, %v2485, %v2487
        %v2556 = vsel %vm890, %v2487, %v2489
        %v2557 = vsel %vm890, %v2491, %v2493
        %v2558 = vsel %vm890, %v2493, %v2495
        %v2559 = vsel %vm890, %v2495, %v2497
        %v2560 = vsel %vm890, %v2499, %v2501
        %v2561 = vsel %vm890, %v2501, %v2503
        %v2562 = vsel %vm890, %v2503, %v2505
        %v2563 = vsel %vm890, %v2507, %v2509
        %v2564 = vsel %vm890, %v2509, %v2511
        %v2565 = vsel %vm890, %v2511, %v2513
        %v2566 = vsel %vm890, %v2515, %v2517
        %v2567 = vsel %vm890, %v2517, %v2519
        %v2568 = vsel %vm890, %v2519, %v2521
        %v2569 = vsel %vm890, %v2523, %v2525
        %v2570 = vsel %vm890, %v2525, %v2527
        %v2571 = vsel %vm890, %v2527, %v2529
        %v2572 = vsel %vm890, %v2531, %v2533
        %v2573 = vsel %vm890, %v2533, %v2535
        %v2574 = vsel %vm890, %v2535, %v2537
        %v2575 = vsel %vm890, %v2539, %v2541
        %v2576 = vsel %vm890, %v2541, %v2543
        %v2577 = vsel %vm890, %v2543, %v2545
        %v2578 = vsel %vm890, %v2547, %v2549
        %v2579 = vsel %vm890, %v2549, %v2551
        %v2580 = vsel %vm890, %v2551, %v2553
        %v2609 = vsel %vm945, %v2474, 0
        %v2612 = vsel %vm945, %v2476, 0
        %v2615 = vsel %vm945, %v2478, 0
        %2617 = vmatprep.subr.bf16.mxu0 %v2576
        %2618 = vmatpush1.bf16.msra.mxu0 %v2575
        %2619 = vmatprep.subr.bf16.mxu0 %v2573
        %2620 = vmatpush1.bf16.msra.mxu0 %v2572
        %2621 = vmatprep.subr.bf16.mxu0 %v2570
        %2622 = vmatpush1.bf16.msra.mxu0 %v2569
        %2623 = vmatprep.subr.bf16.mxu0 %v2567
        %2624 = vmatpush1.bf16.msra.mxu0 %v2566
        %2625 = vmatprep.subr.bf16.mxu0 %v2564
        %2626 = vmatpush1.bf16.msra.mxu0 %v2563
        %2627 = vmatprep.subr.bf16.mxu0 %v2561
        %2628 = vmatpush1.bf16.msra.mxu0 %v2560
        %2629 = vmatprep.subr.bf16.mxu0 %v2558
        %2630 = vmatpush1.bf16.msra.mxu0 %v2557
        %2631 = vmatprep.subr.bf16.mxu0 %v2555
        %2632 = vmatpush1.bf16.msra.mxu0 %v2554
        %2633 = vmatprep.subr.bf16.mxu0 0
        %2634 = vmatpush2.bf16.msra.mxu0 0
        %2635 = vmatprep.subr.bf16.mxu0 0
        %2636 = vmatpush2.bf16.msra.mxu0 0
        %2637 = vmatprep.subr.bf16.mxu0 0
        %2638 = vmatpush2.bf16.msra.mxu0 0
        %2639 = vmatprep.subr.bf16.mxu0 0
        %2640 = vmatpush2.bf16.msra.mxu0 0
        %2641 = vmatprep.subr.bf16.mxu0 0
        %2642 = vmatpush2.bf16.msra.mxu0 0
        %2643 = vmatprep.subr.bf16.mxu0 0
        %2644 = vmatpush2.bf16.msra.mxu0 0
        %2645 = vmatprep.subr.bf16.mxu0 0
        %2646 = vmatpush2.bf16.msra.mxu0 0
        %2647 = vmatprep.subr.bf16.mxu0 %v2579
        %2648 = vmatpush2.bf16.msra.mxu0 %v2578
        %2649 = vmatprep.mubr.bf16.mxu0 %v2609
        %2650 = vmatmul.mubr.bf16.gmra.mxu0 %v2473
        %v2651 = vpop.f32.mrf.mxu0
        %v2652 = vadd.f32 %v2428, %v2651
        %v2653 = vpop.f32.mrf.mxu0
        %v2654 = vadd.f32 %v2428, %v2653
        %v2655 = vpop.f32.mrf.mxu0
        %v2656 = vadd.f32 %v2433, %v2655
        %v2657 = vpop.f32.mrf.mxu0
        %v2658 = vadd.f32 %v2433, %v2657
        %2659 = vmatprep.mubr.bf16.mxu0 %v2612
        %2660 = vmatmul.mubr.bf16.gmra.mxu0 %v2475
        %v2661 = vpop.f32.mrf.mxu0
        %v2662 = vadd.f32 %v2438, %v2661
        %v2663 = vpop.f32.mrf.mxu0
        %v2664 = vadd.f32 %v2438, %v2663
        %v2665 = vpop.f32.mrf.mxu0
        %v2666 = vadd.f32 %v2443, %v2665
        %v2667 = vpop.f32.mrf.mxu0
        %v2668 = vadd.f32 %v2443, %v2667
        %2669 = vmatprep.mubr.bf16.mxu0 %v2615
        %2670 = vmatmul.mubr.bf16.gmra.mxu0 %v2477
        %v2671 = vpop.f32.mrf.mxu0
        %v2672 = vadd.f32 %v2448, %v2671
        %v2673 = vpop.f32.mrf.mxu0
        %v2674 = vadd.f32 %v2448, %v2673
        %v2675 = vpop.f32.mrf.mxu0
        %v2676 = vadd.f32 %v2453, %v2675
        %v2677 = vpop.f32.mrf.mxu0
        %v2678 = vadd.f32 %v2453, %v2677
        %2679 = vdwg.mxu0
        %2680 = vmatprep.subr.bf16.mxu0 0
        %2681 = vmatpush1.bf16.msra.mxu0 %v2577
        %2682 = vmatprep.subr.bf16.mxu0 0
        %2683 = vmatpush1.bf16.msra.mxu0 %v2574
        %2684 = vmatprep.subr.bf16.mxu0 0
        %2685 = vmatpush1.bf16.msra.mxu0 %v2571
        %2686 = vmatprep.subr.bf16.mxu0 0
        %2687 = vmatpush1.bf16.msra.mxu0 %v2568
        %2688 = vmatprep.subr.bf16.mxu0 0
        %2689 = vmatpush1.bf16.msra.mxu0 %v2565
        %2690 = vmatprep.subr.bf16.mxu0 0
        %2691 = vmatpush1.bf16.msra.mxu0 %v2562
        %2692 = vmatprep.subr.bf16.mxu0 0
        %2693 = vmatpush1.bf16.msra.mxu0 %v2559
        %2694 = vmatprep.subr.bf16.mxu0 0
        %2695 = vmatpush1.bf16.msra.mxu0 %v2556
        %2696 = vmatprep.subr.bf16.mxu0 0
        %2697 = vmatpush2.bf16.msra.mxu0 0
        %2698 = vmatprep.subr.bf16.mxu0 0
        %2699 = vmatpush2.bf16.msra.mxu0 0
        %2700 = vmatprep.subr.bf16.mxu0 0
        %2701 = vmatpush2.bf16.msra.mxu0 0
        %2702 = vmatprep.subr.bf16.mxu0 0
        %2703 = vmatpush2.bf16.msra.mxu0 0
        %2704 = vmatprep.subr.bf16.mxu0 0
        %2705 = vmatpush2.bf16.msra.mxu0 0
        %2706 = vmatprep.subr.bf16.mxu0 0
        %2707 = vmatpush2.bf16.msra.mxu0 0
        %2708 = vmatprep.subr.bf16.mxu0 0
        %2709 = vmatpush2.bf16.msra.mxu0 0
        %2710 = vmatprep.subr.bf16.mxu0 0
        %2711 = vmatpush2.bf16.msra.mxu0 %v2580
        %2712 = vmatprep.mubr.bf16.mxu0 %v2609
        %2713 = vmatmul.mubr.bf16.gmra.mxu0 %v2473
        %v2714 = vpop.f32.mrf.mxu0
        %v2715 = vadd.f32 %v2428, %v2714
        %v2716 = vpop.f32.mrf.mxu0
        %v2717 = vpop.f32.mrf.mxu0
        %v2718 = vadd.f32 %v2433, %v2717
        %v2719 = vpop.f32.mrf.mxu0
        %2720 = vmatprep.mubr.bf16.mxu0 %v2612
        %2721 = vmatmul.mubr.bf16.gmra.mxu0 %v2475
        %v2722 = vpop.f32.mrf.mxu0
        %v2723 = vadd.f32 %v2438, %v2722
        %v2724 = vpop.f32.mrf.mxu0
        %v2725 = vpop.f32.mrf.mxu0
        %v2726 = vadd.f32 %v2443, %v2725
        %v2727 = vpop.f32.mrf.mxu0
        %2728 = vmatprep.mubr.bf16.mxu0 %v2615
        %2729 = vmatmul.mubr.bf16.gmra.mxu0 %v2477
        %v2730 = vpop.f32.mrf.mxu0
        %v2731 = vadd.f32 %v2448, %v2730
        %v2732 = vpop.f32.mrf.mxu0
        %v2733 = vpop.f32.mrf.mxu0
        %v2734 = vadd.f32 %v2453, %v2733
        %v2735 = vpop.f32.mrf.mxu0
        %2736 = vdwg.mxu0
        %v2737 = vmax.f32 %v2652, 0.0
        %v2738 = vmax.f32 %v2654, 0.0
        %v2739 = vmax.f32 %v2715, 0.0
        %v2740 = vmax.f32 %v2656, 0.0
        %v2741 = vmax.f32 %v2658, 0.0
        %v2742 = vmax.f32 %v2718, 0.0
        %v2743 = vmax.f32 %v2662, 0.0
        %v2744 = vmax.f32 %v2664, 0.0
        %v2745 = vmax.f32 %v2723, 0.0
        %v2746 = vmax.f32 %v2666, 0.0
        %v2747 = vmax.f32 %v2668, 0.0
        %v2748 = vmax.f32 %v2726, 0.0
        %v2749 = vmax.f32 %v2672, 0.0
        %v2750 = vmax.f32 %v2674, 0.0
        %v2751 = vmax.f32 %v2731, 0.0
        %v2752 = vmax.f32 %v2676, 0.0
        %v2753 = vmax.f32 %v2678, 0.0
        %v2754 = vmax.f32 %v2734, 0.0
        %v2755 = vpack.c.bf16 %v2740, %v2737
        %v2756 = vpack.c.bf16 %v2741, %v2738
        %v2757 = vpack.c.bf16 %v2742, %v2739
        %v2758 = vpack.c.bf16 %v2746, %v2743
        %v2759 = vpack.c.bf16 %v2747, %v2744
        %v2760 = vpack.c.bf16 %v2748, %v2745
        %v2761 = vpack.c.bf16 %v2752, %v2749
        %v2762 = vpack.c.bf16 %v2753, %v2750
        %v2763 = vpack.c.bf16 %v2754, %v2751
        %v2773 = vunpack.c.l.b16 %v2755
        %v2774 = vunpack.c.l.b16 %v2756
        %v2775 = vunpack.c.l.b16 %v2757
        %v2776 = vunpack.c.h.b16 %v2755
        %v2777 = vunpack.c.h.b16 %v2756
        %v2778 = vunpack.c.h.b16 %v2757
        %v2779 = vunpack.c.l.b16 %v2758
        %v2780 = vunpack.c.l.b16 %v2759
        %v2781 = vunpack.c.l.b16 %v2760
        %v2782 = vunpack.c.h.b16 %v2758
        %v2783 = vunpack.c.h.b16 %v2759
        %v2784 = vunpack.c.h.b16 %v2760
        %v2785 = vunpack.c.l.b16 %v2761
        %v2786 = vunpack.c.l.b16 %v2762
        %v2787 = vunpack.c.l.b16 %v2763
        %v2788 = vunpack.c.h.b16 %v2761
        %v2789 = vunpack.c.h.b16 %v2762
        %v2790 = vunpack.c.h.b16 %v2763
        %v2791 = vpack.c.b16 %v2774, %v2773
        %v2792 = vpack.c.b16 %v2775, %v2775
        %v2793 = vpack.c.b16 %v2777, %v2776
        %v2794 = vpack.c.b16 %v2778, %v2778
        %v2795 = vpack.c.b16 %v2780, %v2779
        %v2796 = vpack.c.b16 %v2781, %v2781
        %v2797 = vpack.c.b16 %v2783, %v2782
        %v2798 = vpack.c.b16 %v2784, %v2784
        %v2799 = vpack.c.b16 %v2786, %v2785
        %v2800 = vpack.c.b16 %v2787, %v2787
        %v2801 = vpack.c.b16 %v2789, %v2788
        %v2802 = vpack.c.b16 %v2790, %v2790
        %2815 = vst [vmem:[#allocation2 + $0x4] sm:$0xff] %v2791
        %2816 = vst [vmem:[#allocation2 + $0xc] sm:$0xf] %v2792
        %2817 = vst [vmem:[#allocation2 + $0x18] sm:$0xff] %v2793
        %2818 = vst [vmem:[#allocation2 + $0x20] sm:$0xf] %v2794
        %2819 = vst [vmem:[#allocation2 + $0x2c] sm:$0xff] %v2795
        %2820 = vst [vmem:[#allocation2 + $0x34] sm:$0xf] %v2796
        %2821 = vst [vmem:[#allocation2 + $0x40] sm:$0xff] %v2797
        %2822 = vst [vmem:[#allocation2 + $0x48] sm:$0xf] %v2798
        %2823 = vst [vmem:[#allocation2 + $0x54] sm:$0xff] %v2799
        %2824 = vst [vmem:[#allocation2 + $0x5c] sm:$0xf] %v2800
        %2825 = vst [vmem:[#allocation2 + $0x68] sm:$0xff] %v2801
        %2826 = vst [vmem:[#allocation2 + $0x70] sm:$0xf] %v2802
        %v2827 = vld [vmem:[#allocation2 + $0x4] sm:$0xff]
        %v2828 = vld [vmem:[#allocation2 + $0xc] sm:$0xf]
        %v2829 = vld [vmem:[#allocation2 + $0x18] sm:$0xff]
        %v2830 = vld [vmem:[#allocation2 + $0x20] sm:$0xf]
        %v2831 = vld [vmem:[#allocation2 + $0x2c] sm:$0xff]
        %v2832 = vld [vmem:[#allocation2 + $0x34] sm:$0xf]
        %v2833 = vld [vmem:[#allocation2 + $0x40] sm:$0xff]
        %v2834 = vld [vmem:[#allocation2 + $0x48] sm:$0xf]
        %v2835 = vld [vmem:[#allocation2 + $0x54] sm:$0xff]
        %v2836 = vld [vmem:[#allocation2 + $0x5c] sm:$0xf]
        %v2837 = vld [vmem:[#allocation2 + $0x68] sm:$0xff]
        %v2838 = vld [vmem:[#allocation2 + $0x70] sm:$0xf]
        %v2839 = vld [vmem:[#allocation2 + $0x4] sm:$0xff]
        %v2840 = vld [vmem:[#allocation2 + $0xc] sm:$0xff]
        %v2841 = vld [vmem:[#allocation2 + $0x18] sm:$0xff]
        %v2842 = vld [vmem:[#allocation2 + $0x20] sm:$0xff]
        %v2843 = vld [vmem:[#allocation2 + $0x2c] sm:$0xff]
        %v2844 = vld [vmem:[#allocation2 + $0x34] sm:$0xff]
        %v2845 = vld [vmem:[#allocation2 + $0x40] sm:$0xff]
        %v2846 = vld [vmem:[#allocation2 + $0x48] sm:$0xff]
        %v2847 = vld [vmem:[#allocation2 + $0x54] sm:$0xff]
        %v2848 = vld [vmem:[#allocation2 + $0x5c] sm:$0xff]
        %v2849 = vld [vmem:[#allocation2 + $0x68] sm:$0xff]
        %v2850 = vld [vmem:[#allocation2 + $0x70] sm:$0xff]
        %2863 = vrot.lane.b32.xlu0 %v2839, 127
        %v2864 = vpop.permute.xlu0 %2863
        %2865 = vrot.lane.b32.xlu0 %v2840, 127
        %v2866 = vpop.permute.xlu0 %2865
        %2867 = vrot.lane.b32.xlu0 %v2841, 127
        %v2868 = vpop.permute.xlu0 %2867
        %2869 = vrot.lane.b32.xlu0 %v2842, 127
        %v2870 = vpop.permute.xlu0 %2869
        %2871 = vrot.lane.b32.xlu0 %v2843, 127
        %v2872 = vpop.permute.xlu0 %2871
        %2873 = vrot.lane.b32.xlu0 %v2844, 127
        %v2874 = vpop.permute.xlu0 %2873
        %2875 = vrot.lane.b32.xlu0 %v2845, 127
        %v2876 = vpop.permute.xlu0 %2875
        %2877 = vrot.lane.b32.xlu0 %v2846, 127
        %v2878 = vpop.permute.xlu0 %2877
        %2879 = vrot.lane.b32.xlu0 %v2847, 127
        %v2880 = vpop.permute.xlu0 %2879
        %2881 = vrot.lane.b32.xlu0 %v2848, 127
        %v2882 = vpop.permute.xlu0 %2881
        %2883 = vrot.lane.b32.xlu0 %v2849, 127
        %v2884 = vpop.permute.xlu0 %2883
        %2885 = vrot.lane.b32.xlu0 %v2850, 127
        %v2886 = vpop.permute.xlu0 %2885
        %v2887 = vrot.slane %v2864, 4
        %v2888 = vrot.slane %v2866, 4
        %v2889 = vrot.slane %v2868, 4
        %v2890 = vrot.slane %v2870, 4
        %v2891 = vrot.slane %v2872, 4
        %v2892 = vrot.slane %v2874, 4
        %v2893 = vrot.slane %v2876, 4
        %v2894 = vrot.slane %v2878, 4
        %v2895 = vrot.slane %v2880, 4
        %v2896 = vrot.slane %v2882, 4
        %v2897 = vrot.slane %v2884, 4
        %v2898 = vrot.slane %v2886, 4
        %vm2899 = vcmask 1043456
        %v2900 = vsel %vm2899, %v2887, %v2888
        %v2901 = vsel %vm689, %v2864, %v2900
        %v2902 = vsel %vm689, %v2866, %v2888
        %v2903 = vsel %vm2899, %v2889, %v2890
        %v2904 = vsel %vm689, %v2868, %v2903
        %v2905 = vsel %vm689, %v2870, %v2890
        %v2906 = vsel %vm2899, %v2891, %v2892
        %v2907 = vsel %vm689, %v2872, %v2906
        %v2908 = vsel %vm689, %v2874, %v2892
        %v2909 = vsel %vm2899, %v2893, %v2894
        %v2910 = vsel %vm689, %v2876, %v2909
        %v2911 = vsel %vm689, %v2878, %v2894
        %v2912 = vsel %vm2899, %v2895, %v2896
        %v2913 = vsel %vm689, %v2880, %v2912
        %v2914 = vsel %vm689, %v2882, %v2896
        %v2915 = vsel %vm2899, %v2897, %v2898
        %v2916 = vsel %vm689, %v2884, %v2915
        %v2917 = vsel %vm689, %v2886, %v2898
        %v2930 = vmax.bf16 %v2827, %v2901
        %v2931 = vmax.bf16 %v2828, %v2902
        %v2932 = vmax.bf16 %v2829, %v2904
        %v2933 = vmax.bf16 %v2830, %v2905
        %v2934 = vmax.bf16 %v2831, %v2907
        %v2935 = vmax.bf16 %v2832, %v2908
        %v2936 = vmax.bf16 %v2833, %v2910
        %v2937 = vmax.bf16 %v2834, %v2911
        %v2938 = vmax.bf16 %v2835, %v2913
        %v2939 = vmax.bf16 %v2836, %v2914
        %v2940 = vmax.bf16 %v2837, %v2916
        %v2941 = vmax.bf16 %v2838, %v2917
        %2942 = vrot.lane.b32.xlu0 %v2839, 110
        %v2943 = vpop.permute.xlu0 %2942
        %2944 = vrot.lane.b32.xlu0 %v2840, 110
        %v2945 = vpop.permute.xlu0 %2944
        %2946 = vrot.lane.b32.xlu0 %v2841, 110
        %v2947 = vpop.permute.xlu0 %2946
        %2948 = vrot.lane.b32.xlu0 %v2842, 110
        %v2949 = vpop.permute.xlu0 %2948
        %2950 = vrot.lane.b32.xlu0 %v2843, 110
        %v2951 = vpop.permute.xlu0 %2950
        %2952 = vrot.lane.b32.xlu0 %v2844, 110
        %v2953 = vpop.permute.xlu0 %2952
        %2954 = vrot.lane.b32.xlu0 %v2845, 110
        %v2955 = vpop.permute.xlu0 %2954
        %2956 = vrot.lane.b32.xlu0 %v2846, 110
        %v2957 = vpop.permute.xlu0 %2956
        %2958 = vrot.lane.b32.xlu0 %v2847, 110
        %v2959 = vpop.permute.xlu0 %2958
        %2960 = vrot.lane.b32.xlu0 %v2848, 110
        %v2961 = vpop.permute.xlu0 %2960
        %2962 = vrot.lane.b32.xlu0 %v2849, 110
        %v2963 = vpop.permute.xlu0 %2962
        %2964 = vrot.lane.b32.xlu0 %v2850, 110
        %v2965 = vpop.permute.xlu0 %2964
        %v2966 = vrot.slane %v2943, 4
        %v2967 = vrot.slane %v2945, 4
        %v2968 = vrot.slane %v2947, 4
        %v2969 = vrot.slane %v2949, 4
        %v2970 = vrot.slane %v2951, 4
        %v2971 = vrot.slane %v2953, 4
        %v2972 = vrot.slane %v2955, 4
        %v2973 = vrot.slane %v2957, 4
        %v2974 = vrot.slane %v2959, 4
        %v2975 = vrot.slane %v2961, 4
        %v2976 = vrot.slane %v2963, 4
        %v2977 = vrot.slane %v2965, 4
        %v2978 = vsel %vm2899, %v2966, %v2967
        %v2979 = vsel %vm713, %v2943, %v2978
        %v2980 = vsel %vm713, %v2945, %v2967
        %v2981 = vsel %vm2899, %v2968, %v2969
        %v2982 = vsel %vm713, %v2947, %v2981
        %v2983 = vsel %vm713, %v2949, %v2969
        %v2984 = vsel %vm2899, %v2970, %v2971
        %v2985 = vsel %vm713, %v2951, %v2984
        %v2986 = vsel %vm713, %v2953, %v2971
        %v2987 = vsel %vm2899, %v2972, %v2973
        %v2988 = vsel %vm713, %v2955, %v2987
        %v2989 = vsel %vm713, %v2957, %v2973
        %v2990 = vsel %vm2899, %v2974, %v2975
        %v2991 = vsel %vm713, %v2959, %v2990
        %v2992 = vsel %vm713, %v2961, %v2975
        %v2993 = vsel %vm2899, %v2976, %v2977
        %v2994 = vsel %vm713, %v2963, %v2993
        %v2995 = vsel %vm713, %v2965, %v2977
        %v3008 = vmax.bf16 %v2930, %v2979
        %v3009 = vmax.bf16 %v2931, %v2980
        %v3010 = vmax.bf16 %v2932, %v2982
        %v3011 = vmax.bf16 %v2933, %v2983
        %v3012 = vmax.bf16 %v2934, %v2985
        %v3013 = vmax.bf16 %v2935, %v2986
        %v3014 = vmax.bf16 %v2936, %v2988
        %v3015 = vmax.bf16 %v2937, %v2989
        %v3016 = vmax.bf16 %v2938, %v2991
        %v3017 = vmax.bf16 %v2939, %v2992
        %v3018 = vmax.bf16 %v2940, %v2994
        %v3019 = vmax.bf16 %v2941, %v2995
        %3020 = vrot.lane.b32.xlu0 %v2839, 109
        %v3021 = vpop.permute.xlu0 %3020
        %3022 = vrot.lane.b32.xlu0 %v2840, 109
        %v3023 = vpop.permute.xlu0 %3022
        %3024 = vrot.lane.b32.xlu0 %v2841, 109
        %v3025 = vpop.permute.xlu0 %3024
        %3026 = vrot.lane.b32.xlu0 %v2842, 109
        %v3027 = vpop.permute.xlu0 %3026
        %3028 = vrot.lane.b32.xlu0 %v2843, 109
        %v3029 = vpop.permute.xlu0 %3028
        %3030 = vrot.lane.b32.xlu0 %v2844, 109
        %v3031 = vpop.permute.xlu0 %3030
        %3032 = vrot.lane.b32.xlu0 %v2845, 109
        %v3033 = vpop.permute.xlu0 %3032
        %3034 = vrot.lane.b32.xlu0 %v2846, 109
        %v3035 = vpop.permute.xlu0 %3034
        %3036 = vrot.lane.b32.xlu0 %v2847, 109
        %v3037 = vpop.permute.xlu0 %3036
        %3038 = vrot.lane.b32.xlu0 %v2848, 109
        %v3039 = vpop.permute.xlu0 %3038
        %3040 = vrot.lane.b32.xlu0 %v2849, 109
        %v3041 = vpop.permute.xlu0 %3040
        %3042 = vrot.lane.b32.xlu0 %v2850, 109
        %v3043 = vpop.permute.xlu0 %3042
        %v3044 = vrot.slane %v3021, 4
        %v3045 = vrot.slane %v3023, 4
        %v3046 = vrot.slane %v3025, 4
        %v3047 = vrot.slane %v3027, 4
        %v3048 = vrot.slane %v3029, 4
        %v3049 = vrot.slane %v3031, 4
        %v3050 = vrot.slane %v3033, 4
        %v3051 = vrot.slane %v3035, 4
        %v3052 = vrot.slane %v3037, 4
        %v3053 = vrot.slane %v3039, 4
        %v3054 = vrot.slane %v3041, 4
        %v3055 = vrot.slane %v3043, 4
        %v3056 = vsel %vm2899, %v3044, %v3045
        %v3057 = vsel %vm736, %v3021, %v3056
        %v3058 = vsel %vm736, %v3023, %v3045
        %v3059 = vsel %vm2899, %v3046, %v3047
        %v3060 = vsel %vm736, %v3025, %v3059
        %v3061 = vsel %vm736, %v3027, %v3047
        %v3062 = vsel %vm2899, %v3048, %v3049
        %v3063 = vsel %vm736, %v3029, %v3062
        %v3064 = vsel %vm736, %v3031, %v3049
        %v3065 = vsel %vm2899, %v3050, %v3051
        %v3066 = vsel %vm736, %v3033, %v3065
        %v3067 = vsel %vm736, %v3035, %v3051
        %v3068 = vsel %vm2899, %v3052, %v3053
        %v3069 = vsel %vm736, %v3037, %v3068
        %v3070 = vsel %vm736, %v3039, %v3053
        %v3071 = vsel %vm2899, %v3054, %v3055
        %v3072 = vsel %vm736, %v3041, %v3071
        %v3073 = vsel %vm736, %v3043, %v3055
        %v3086 = vmax.bf16 %v3008, %v3057
        %v3087 = vmax.bf16 %v3009, %v3058
        %v3088 = vmax.bf16 %v3010, %v3060
        %v3089 = vmax.bf16 %v3011, %v3061
        %v3090 = vmax.bf16 %v3012, %v3063
        %v3091 = vmax.bf16 %v3013, %v3064
        %v3092 = vmax.bf16 %v3014, %v3066
        %v3093 = vmax.bf16 %v3015, %v3067
        %v3094 = vmax.bf16 %v3016, %v3069
        %v3095 = vmax.bf16 %v3017, %v3070
        %v3096 = vmax.bf16 %v3018, %v3072
        %v3097 = vmax.bf16 %v3019, %v3073
        %v3098 = vld [vmem:[%s12] sm:$0xf]
        %v3099 = vld [vmem:[%s12 + $0x4] sm:$0xf]
        %v3100 = vld [vmem:[%s12 + $0x8] sm:$0xf]
        %v3101 = vld [vmem:[%s12 + $0xc] sm:$0xf]
        %v3102 = vld [vmem:[%s12 + $0x10] sm:$0xf]
        %v3103 = vld [vmem:[%s12 + $0x14] sm:$0xf]
        %v3104 = vld [vmem:[%s12 + $0x18] sm:$0xf]
        %v3105 = vld [vmem:[%s12 + $0x1c] sm:$0xf]
        %v3106 = vld [vmem:[%s12 + $0x20] sm:$0xf]
        %v3107 = vld [vmem:[%s12 + $0x24] sm:$0xf]
        %v3108 = vld [vmem:[%s12 + $0x28] sm:$0xf]
        %v3109 = vld [vmem:[%s12 + $0x2c] sm:$0xf]
        %v3110 = vld [vmem:[%s12 + $0x30] sm:$0xf]
        %v3111 = vld [vmem:[%s12 + $0x34] sm:$0xf]
        %v3112 = vld [vmem:[%s12 + $0x38] sm:$0xf]
        %v3113 = vld [vmem:[%s12 + $0x3c] sm:$0xf]
        %v3114 = vld [vmem:[%s12 + $0x40] sm:$0xf]
        %v3115 = vld [vmem:[%s12 + $0x44] sm:$0xf]
        %v3116 = vld [vmem:[%s12 + $0x48] sm:$0xf]
        %v3117 = vld [vmem:[%s12 + $0x4c] sm:$0xf]
        %v3118 = vld [vmem:[%s12 + $0x50] sm:$0xf]
        %v3119 = vld [vmem:[%s12 + $0x54] sm:$0xf]
        %v3120 = vld [vmem:[%s12 + $0x58] sm:$0xf]
        %v3121 = vld [vmem:[%s12 + $0x5c] sm:$0xf]
        %v3122 = vld [vmem:[%s12 + $0x60] sm:$0xf]
        %v3123 = vld [vmem:[%s12 + $0x64] sm:$0xf]
        %v3124 = vld [vmem:[%s12 + $0x68] sm:$0xf]
        %v3125 = vld [vmem:[%s12 + $0x6c] sm:$0xf]
        %v3126 = vld [vmem:[%s12 + $0x70] sm:$0xf]
        %v3127 = vld [vmem:[%s12 + $0x74] sm:$0xf]
        %v3128 = vld [vmem:[%s12 + $0x78] sm:$0xf]
        %v3129 = vld [vmem:[%s12 + $0x7c] sm:$0xf]
        %v3130 = vld [vmem:[%s12 + $0x80] sm:$0xf]
        %v3131 = vld [vmem:[%s12 + $0x84] sm:$0xf]
        %v3132 = vld [vmem:[%s12 + $0x88] sm:$0xf]
        %v3133 = vld [vmem:[%s12 + $0x8c] sm:$0xf]
        %v3134 = vld [vmem:[%s12 + $0x90] sm:$0xf]
        %v3135 = vld [vmem:[%s12 + $0x94] sm:$0xf]
        %v3136 = vld [vmem:[%s12 + $0x98] sm:$0xf]
        %v3137 = vld [vmem:[%s12 + $0x9c] sm:$0xf]
        %v3138 = vld [vmem:[%s12 + $0xa0] sm:$0xf]
        %v3139 = vld [vmem:[%s12 + $0xa4] sm:$0xf]
        %v3140 = vld [vmem:[%s12 + $0xa8] sm:$0xf]
        %v3141 = vld [vmem:[%s12 + $0xac] sm:$0xf]
        %v3142 = vld [vmem:[%s12 + $0xb0] sm:$0xf]
        %v3143 = vld [vmem:[%s12 + $0xb4] sm:$0xf]
        %v3144 = vld [vmem:[%s12 + $0xb8] sm:$0xf]
        %v3145 = vld [vmem:[%s12 + $0xbc] sm:$0xf]
        %v3158 = vunpack.c.l.b16 %v3086
        %v3159 = vunpack.c.h.b16 %v3086
        %v3160 = vunpack.c.l.b16 %v3087
        %v3161 = vunpack.c.l.b16 %v3088
        %v3162 = vunpack.c.h.b16 %v3088
        %v3163 = vunpack.c.l.b16 %v3089
        %v3164 = vunpack.c.l.b16 %v3090
        %v3165 = vunpack.c.h.b16 %v3090
        %v3166 = vunpack.c.l.b16 %v3091
        %v3167 = vunpack.c.l.b16 %v3092
        %v3168 = vunpack.c.h.b16 %v3092
        %v3169 = vunpack.c.l.b16 %v3093
        %v3170 = vunpack.c.l.b16 %v3094
        %v3171 = vunpack.c.h.b16 %v3094
        %v3172 = vunpack.c.l.b16 %v3095
        %v3173 = vunpack.c.l.b16 %v3096
        %v3174 = vunpack.c.h.b16 %v3096
        %v3175 = vunpack.c.l.b16 %v3097
        %v3176 = vpack.c.b16 %v3161, %v3158
        %v3177 = vpack.c.b16 %v3162, %v3159
        %v3178 = vpack.c.b16 %v3163, %v3160
        %v3179 = vpack.c.b16 %v3167, %v3164
        %v3180 = vpack.c.b16 %v3168, %v3165
        %v3181 = vpack.c.b16 %v3169, %v3166
        %v3182 = vpack.c.b16 %v3173, %v3170
        %v3183 = vpack.c.b16 %v3174, %v3171
        %v3184 = vpack.c.b16 %v3175, %v3172
        %v3242 = vunpack.c.l.b16 %v3098
        %v3243 = vunpack.c.l.b16 %v3099
        %v3244 = vunpack.c.l.b16 %v3100
        %v3245 = vunpack.c.l.b16 %v3101
        %v3246 = vunpack.c.l.b16 %v3102
        %v3247 = vunpack.c.l.b16 %v3103
        %v3248 = vunpack.c.l.b16 %v3104
        %v3249 = vunpack.c.l.b16 %v3105
        %v3250 = vunpack.c.l.b16 %v3106
        %v3251 = vunpack.c.l.b16 %v3107
        %v3252 = vunpack.c.l.b16 %v3108
        %v3253 = vunpack.c.l.b16 %v3109
        %v3254 = vunpack.c.l.b16 %v3110
        %v3255 = vunpack.c.l.b16 %v3111
        %v3256 = vunpack.c.l.b16 %v3112
        %v3257 = vunpack.c.l.b16 %v3113
        %v3258 = vunpack.c.l.b16 %v3114
        %v3259 = vunpack.c.l.b16 %v3115
        %v3260 = vunpack.c.l.b16 %v3116
        %v3261 = vunpack.c.l.b16 %v3117
        %v3262 = vunpack.c.l.b16 %v3118
        %v3263 = vunpack.c.l.b16 %v3119
        %v3264 = vunpack.c.l.b16 %v3120
        %v3265 = vunpack.c.l.b16 %v3121
        %v3266 = vunpack.c.l.b16 %v3122
        %v3267 = vunpack.c.l.b16 %v3123
        %v3268 = vunpack.c.l.b16 %v3124
        %v3269 = vunpack.c.l.b16 %v3125
        %v3270 = vunpack.c.l.b16 %v3126
        %v3271 = vunpack.c.l.b16 %v3127
        %v3272 = vunpack.c.l.b16 %v3128
        %v3273 = vunpack.c.l.b16 %v3129
        %v3274 = vunpack.c.l.b16 %v3130
        %v3275 = vunpack.c.l.b16 %v3131
        %v3276 = vunpack.c.l.b16 %v3132
        %v3277 = vunpack.c.l.b16 %v3133
        %v3278 = vunpack.c.l.b16 %v3134
        %v3279 = vunpack.c.l.b16 %v3135
        %v3280 = vunpack.c.l.b16 %v3136
        %v3281 = vunpack.c.l.b16 %v3137
        %v3282 = vunpack.c.l.b16 %v3138
        %v3283 = vunpack.c.l.b16 %v3139
        %v3284 = vunpack.c.l.b16 %v3140
        %v3285 = vunpack.c.l.b16 %v3141
        %v3286 = vunpack.c.l.b16 %v3142
        %v3287 = vunpack.c.l.b16 %v3143
        %v3288 = vunpack.c.l.b16 %v3144
        %v3289 = vunpack.c.l.b16 %v3145
        %v3290 = vpack.c.b16 %v3243, %v3242
        %v3291 = vpack.c.b16 %v3245, %v3244
        %v3292 = vpack.c.b16 %v3247, %v3246
        %v3293 = vpack.c.b16 %v3249, %v3248
        %v3294 = vpack.c.b16 %v3251, %v3250
        %v3295 = vpack.c.b16 %v3253, %v3252
        %v3296 = vpack.c.b16 %v3255, %v3254
        %v3297 = vpack.c.b16 %v3257, %v3256
        %v3298 = vpack.c.b16 %v3259, %v3258
        %v3299 = vpack.c.b16 %v3261, %v3260
        %v3300 = vpack.c.b16 %v3263, %v3262
        %v3301 = vpack.c.b16 %v3265, %v3264
        %v3302 = vpack.c.b16 %v3267, %v3266
        %v3303 = vpack.c.b16 %v3269, %v3268
        %v3304 = vpack.c.b16 %v3271, %v3270
        %v3305 = vpack.c.b16 %v3273, %v3272
        %v3306 = vpack.c.b16 %v3275, %v3274
        %v3307 = vpack.c.b16 %v3277, %v3276
        %v3308 = vpack.c.b16 %v3279, %v3278
        %v3309 = vpack.c.b16 %v3281, %v3280
        %v3310 = vpack.c.b16 %v3283, %v3282
        %v3311 = vpack.c.b16 %v3285, %v3284
        %v3312 = vpack.c.b16 %v3287, %v3286
        %v3313 = vpack.c.b16 %v3289, %v3288
        %3338 = vmatprep.subr.bf16.mxu0 0
        %3339 = vmatpush1.bf16.msra.mxu0 %v3297
        %3340 = vmatprep.subr.bf16.mxu0 0
        %3341 = vmatpush1.bf16.msra.mxu0 %v3296
        %3342 = vmatprep.subr.bf16.mxu0 0
        %3343 = vmatpush1.bf16.msra.mxu0 %v3295
        %3344 = vmatprep.subr.bf16.mxu0 0
        %3345 = vmatpush1.bf16.msra.mxu0 %v3294
        %3346 = vmatprep.subr.bf16.mxu0 0
        %3347 = vmatpush1.bf16.msra.mxu0 %v3293
        %3348 = vmatprep.subr.bf16.mxu0 0
        %3349 = vmatpush1.bf16.msra.mxu0 %v3292
        %3350 = vmatprep.subr.bf16.mxu0 0
        %3351 = vmatpush1.bf16.msra.mxu0 %v3291
        %3352 = vmatprep.subr.bf16.mxu0 0
        %3353 = vmatpush1.bf16.msra.mxu0 %v3290
        %3354 = vmatprep.subr.bf16.mxu0 0
        %3355 = vmatpush2.bf16.msra.mxu0 %v3305
        %3356 = vmatprep.subr.bf16.mxu0 0
        %3357 = vmatpush2.bf16.msra.mxu0 %v3304
        %3358 = vmatprep.subr.bf16.mxu0 0
        %3359 = vmatpush2.bf16.msra.mxu0 %v3303
        %3360 = vmatprep.subr.bf16.mxu0 0
        %3361 = vmatpush2.bf16.msra.mxu0 %v3302
        %3362 = vmatprep.subr.bf16.mxu0 0
        %3363 = vmatpush2.bf16.msra.mxu0 %v3301
        %3364 = vmatprep.subr.bf16.mxu0 0
        %3365 = vmatpush2.bf16.msra.mxu0 %v3300
        %3366 = vmatprep.subr.bf16.mxu0 0
        %3367 = vmatpush2.bf16.msra.mxu0 %v3299
        %3368 = vmatprep.subr.bf16.mxu0 0
        %3369 = vmatpush2.bf16.msra.mxu0 %v3298
        %3370 = vmatprep.mubr.bf16.mxu0 %v3177
        %3371 = vmatmul.mubr.bf16.gmra.mxu0 %v3176
        %v3372 = vpop.f32.mrf.mxu0
        %v3373 = vadd.f32 0.0, %v3372
        %v3374 = vpop.f32.mrf.mxu0
        %v3375 = vpop.f32.mrf.mxu0
        %v3376 = vadd.f32 0.0, %v3375
        %v3377 = vpop.f32.mrf.mxu0
        %3378 = vmatprep.mubr.bf16.mxu0 %v3180
        %3379 = vmatmul.mubr.bf16.gmra.mxu0 %v3179
        %v3380 = vpop.f32.mrf.mxu0
        %v3381 = vadd.f32 0.0, %v3380
        %v3382 = vpop.f32.mrf.mxu0
        %v3383 = vpop.f32.mrf.mxu0
        %v3384 = vadd.f32 0.0, %v3383
        %v3385 = vpop.f32.mrf.mxu0
        %3386 = vmatprep.mubr.bf16.mxu0 %v3183
        %3387 = vmatmul.mubr.bf16.gmra.mxu0 %v3182
        %v3388 = vpop.f32.mrf.mxu0
        %v3389 = vadd.f32 0.0, %v3388
        %v3390 = vpop.f32.mrf.mxu0
        %v3391 = vpop.f32.mrf.mxu0
        %v3392 = vadd.f32 0.0, %v3391
        %v3393 = vpop.f32.mrf.mxu0
        %3394 = vdwg.mxu0
        %3395 = vmatprep.subr.bf16.mxu0 0
        %3396 = vmatpush1.bf16.msra.mxu0 %v3313
        %3397 = vmatprep.subr.bf16.mxu0 0
        %3398 = vmatpush1.bf16.msra.mxu0 %v3312
        %3399 = vmatprep.subr.bf16.mxu0 0
        %3400 = vmatpush1.bf16.msra.mxu0 %v3311
        %3401 = vmatprep.subr.bf16.mxu0 0
        %3402 = vmatpush1.bf16.msra.mxu0 %v3310
        %3403 = vmatprep.subr.bf16.mxu0 0
        %3404 = vmatpush1.bf16.msra.mxu0 %v3309
        %3405 = vmatprep.subr.bf16.mxu0 0
        %3406 = vmatpush1.bf16.msra.mxu0 %v3308
        %3407 = vmatprep.subr.bf16.mxu0 0
        %3408 = vmatpush1.bf16.msra.mxu0 %v3307
        %3409 = vmatprep.subr.bf16.mxu0 0
        %3410 = vmatpush1.bf16.msra.mxu0 %v3306
        %3411 = vmatprep.subr.bf16.mxu0 0
        %3412 = vmatpush2.bf16.msra.mxu0 0
        %3413 = vmatprep.subr.bf16.mxu0 0
        %3414 = vmatpush2.bf16.msra.mxu0 0
        %3415 = vmatprep.subr.bf16.mxu0 0
        %3416 = vmatpush2.bf16.msra.mxu0 0
        %3417 = vmatprep.subr.bf16.mxu0 0
        %3418 = vmatpush2.bf16.msra.mxu0 0
        %3419 = vmatprep.subr.bf16.mxu0 0
        %3420 = vmatpush2.bf16.msra.mxu0 0
        %3421 = vmatprep.subr.bf16.mxu0 0
        %3422 = vmatpush2.bf16.msra.mxu0 0
        %3423 = vmatprep.subr.bf16.mxu0 0
        %3424 = vmatpush2.bf16.msra.mxu0 0
        %3425 = vmatprep.subr.bf16.mxu0 0
        %3426 = vmatpush2.bf16.msra.mxu0 0
        %3427 = vmatprep.mubr.bf16.mxu0 0
        %3428 = vmatmul.mubr.bf16.gmra.mxu0 %v3178
        %v3429 = vpop.f32.mrf.mxu0
        %v3430 = vadd.f32 %v3373, %v3429
        %v3431 = vpop.f32.mrf.mxu0
        %v3432 = vpop.f32.mrf.mxu0
        %v3433 = vadd.f32 %v3376, %v3432
        %v3434 = vpop.f32.mrf.mxu0
        %3435 = vmatprep.mubr.bf16.mxu0 0
        %3436 = vmatmul.mubr.bf16.gmra.mxu0 %v3181
        %v3437 = vpop.f32.mrf.mxu0
        %v3438 = vadd.f32 %v3381, %v3437
        %v3439 = vpop.f32.mrf.mxu0
        %v3440 = vpop.f32.mrf.mxu0
        %v3441 = vadd.f32 %v3384, %v3440
        %v3442 = vpop.f32.mrf.mxu0
        %3443 = vmatprep.mubr.bf16.mxu0 0
        %3444 = vmatmul.mubr.bf16.gmra.mxu0 %v3184
        %v3445 = vpop.f32.mrf.mxu0
        %v3446 = vadd.f32 %v3389, %v3445
        %v3447 = vpop.f32.mrf.mxu0
        %v3448 = vpop.f32.mrf.mxu0
        %v3449 = vadd.f32 %v3392, %v3448
        %v3450 = vpop.f32.mrf.mxu0
        %3451 = vdwg.mxu0
        %v3452 = vpack.c.bf16 %v3433, %v3430
        %v3453 = vpack.c.bf16 %v3441, %v3438
        %v3454 = vpack.c.bf16 %v3449, %v3446
        %v3458 = vunpack.c.l.b16 %v3452
        %v3459 = vunpack.c.h.b16 %v3452
        %v3460 = vunpack.c.l.b16 %v3453
        %v3461 = vunpack.c.h.b16 %v3453
        %v3462 = vunpack.c.l.b16 %v3454
        %v3463 = vunpack.c.h.b16 %v3454
        %v3464 = vpack.c.b16 %v3458, %v3458
        %v3465 = vpack.c.b16 %v3459, %v3459
        %v3466 = vpack.c.b16 %v3460, %v3460
        %v3467 = vpack.c.b16 %v3461, %v3461
        %v3468 = vpack.c.b16 %v3462, %v3462
        %v3469 = vpack.c.b16 %v3463, %v3463
        %3476 = vst [vmem:[#allocation2 + $0x4] sm:$0xf] %v3464
        %3477 = vst [vmem:[#allocation2 + $0x18] sm:$0xf] %v3465
        %3478 = vst [vmem:[#allocation2 + $0x2c] sm:$0xf] %v3466
        %3479 = vst [vmem:[#allocation2 + $0x40] sm:$0xf] %v3467
        %3480 = vst [vmem:[#allocation2 + $0x54] sm:$0xf] %v3468
        %3481 = vst [vmem:[#allocation2 + $0x68] sm:$0xf] %v3469
        %v3482 = vld [vmem:[#allocation2] sm:$0xff]
        %v3483 = vld [vmem:[#allocation2 + $0x14] sm:$0xff]
        %v3484 = vld [vmem:[#allocation2 + $0x28] sm:$0xff]
        %v3485 = vld [vmem:[#allocation2 + $0x3c] sm:$0xff]
        %v3486 = vld [vmem:[#allocation2 + $0x50] sm:$0xff]
        %v3487 = vld [vmem:[#allocation2 + $0x64] sm:$0xff]
        %v3488 = vld [vmem:[#allocation2 + $0x4] sm:$0xf]
        %v3489 = vld [vmem:[#allocation2 + $0x18] sm:$0xf]
        %v3490 = vld [vmem:[#allocation2 + $0x2c] sm:$0xf]
        %v3491 = vld [vmem:[#allocation2 + $0x40] sm:$0xf]
        %v3492 = vld [vmem:[#allocation2 + $0x54] sm:$0xf]
        %v3493 = vld [vmem:[#allocation2 + $0x68] sm:$0xf]
        %v3494 = vld [vmem:[#allocation2 + $0x4] sm:$0xff]
        %v3495 = vld [vmem:[#allocation2 + $0x18] sm:$0xff]
        %v3496 = vld [vmem:[#allocation2 + $0x2c] sm:$0xff]
        %v3497 = vld [vmem:[#allocation2 + $0x40] sm:$0xff]
        %v3498 = vld [vmem:[#allocation2 + $0x54] sm:$0xff]
        %v3499 = vld [vmem:[#allocation2 + $0x68] sm:$0xff]
        %v3506 = vunpack.c.l.b16 %v3482
        %v3507 = vunpack.c.h.b16 %v3482
        %v3508 = vunpack.c.l.b16 %v3483
        %v3509 = vunpack.c.h.b16 %v3483
        %v3510 = vunpack.c.l.b16 %v3484
        %v3511 = vunpack.c.h.b16 %v3484
        %v3512 = vunpack.c.l.b16 %v3485
        %v3513 = vunpack.c.h.b16 %v3485
        %v3514 = vunpack.c.l.b16 %v3486
        %v3515 = vunpack.c.h.b16 %v3486
        %v3516 = vunpack.c.l.b16 %v3487
        %v3517 = vunpack.c.h.b16 %v3487
        %v3518 = vpack.c.b16 %v3508, %v3506
        %v3519 = vpack.c.b16 %v3509, %v3507
        %v3520 = vpack.c.b16 %v3512, %v3510
        %v3521 = vpack.c.b16 %v3513, %v3511
        %v3522 = vpack.c.b16 %v3516, %v3514
        %v3523 = vpack.c.b16 %v3517, %v3515
        %3524 = vrot.lane.b32.xlu0 %v3518, 127
        %v3525 = vpop.permute.xlu0 %3524
        %3526 = vrot.lane.b32.xlu0 %v3519, 127
        %v3527 = vpop.permute.xlu0 %3526
        %3528 = vrot.lane.b32.xlu0 %v3520, 127
        %v3529 = vpop.permute.xlu0 %3528
        %3530 = vrot.lane.b32.xlu0 %v3521, 127
        %v3531 = vpop.permute.xlu0 %3530
        %3532 = vrot.lane.b32.xlu0 %v3522, 127
        %v3533 = vpop.permute.xlu0 %3532
        %3534 = vrot.lane.b32.xlu0 %v3523, 127
        %v3535 = vpop.permute.xlu0 %3534
        %v3536 = vsel %vm689, %v3525, %v3527
        %v3537 = vsel %vm689, %v3529, %v3531
        %v3538 = vsel %vm689, %v3533, %v3535
        %3539 = vrot.lane.b32.xlu0 %v3518, 126
        %v3540 = vpop.permute.xlu0 %3539
        %3541 = vrot.lane.b32.xlu0 %v3519, 126
        %v3542 = vpop.permute.xlu0 %3541
        %3543 = vrot.lane.b32.xlu0 %v3520, 126
        %v3544 = vpop.permute.xlu0 %3543
        %3545 = vrot.lane.b32.xlu0 %v3521, 126
        %v3546 = vpop.permute.xlu0 %3545
        %3547 = vrot.lane.b32.xlu0 %v3522, 126
        %v3548 = vpop.permute.xlu0 %3547
        %3549 = vrot.lane.b32.xlu0 %v3523, 126
        %v3550 = vpop.permute.xlu0 %3549
        %v3551 = vsel %vm701, %v3540, %v3542
        %v3552 = vsel %vm701, %v3544, %v3546
        %v3553 = vsel %vm701, %v3548, %v3550
        %3554 = vrot.lane.b32.xlu0 %v3518, 118
        %v3555 = vpop.permute.xlu0 %3554
        %3556 = vrot.lane.b32.xlu0 %v3519, 118
        %v3557 = vpop.permute.xlu0 %3556
        %3558 = vrot.lane.b32.xlu0 %v3520, 118
        %v3559 = vpop.permute.xlu0 %3558
        %3560 = vrot.lane.b32.xlu0 %v3521, 118
        %v3561 = vpop.permute.xlu0 %3560
        %3562 = vrot.lane.b32.xlu0 %v3522, 118
        %v3563 = vpop.permute.xlu0 %3562
        %3564 = vrot.lane.b32.xlu0 %v3523, 118
        %v3565 = vpop.permute.xlu0 %3564
        %vm3566 = vcmask 965632
        %v3567 = vsel %vm3566, %v3555, %v3557
        %v3568 = vsel %vm3566, %v3559, %v3561
        %v3569 = vsel %vm3566, %v3563, %v3565
        %v3576 = vunpack.c.l.b16 %v3488
        %v3577 = vunpack.c.l.b16 %v3489
        %v3578 = vunpack.c.l.b16 %v3490
        %v3579 = vunpack.c.l.b16 %v3491
        %v3580 = vunpack.c.l.b16 %v3492
        %v3581 = vunpack.c.l.b16 %v3493
        %v3582 = vpack.c.b16 %v3577, %v3576
        %v3583 = vpack.c.b16 %v3579, %v3578
        %v3584 = vpack.c.b16 %v3581, %v3580
        %3585 = vrot.lane.b32.xlu0 %v3582, 117
        %v3586 = vpop.permute.xlu0 %3585
        %3587 = vrot.lane.b32.xlu0 %v3583, 117
        %v3588 = vpop.permute.xlu0 %3587
        %3589 = vrot.lane.b32.xlu0 %v3584, 117
        %v3590 = vpop.permute.xlu0 %3589
        %v3597 = vunpack.c.l.b16 %v3494
        %v3598 = vunpack.c.h.b16 %v3494
        %v3599 = vunpack.c.l.b16 %v3495
        %v3600 = vunpack.c.h.b16 %v3495
        %v3601 = vunpack.c.l.b16 %v3496
        %v3602 = vunpack.c.h.b16 %v3496
        %v3603 = vunpack.c.l.b16 %v3497
        %v3604 = vunpack.c.h.b16 %v3497
        %v3605 = vunpack.c.l.b16 %v3498
        %v3606 = vunpack.c.h.b16 %v3498
        %v3607 = vunpack.c.l.b16 %v3499
        %v3608 = vunpack.c.h.b16 %v3499
        %v3609 = vpack.c.b16 %v3599, %v3597
        %v3610 = vpack.c.b16 %v3600, %v3598
        %v3611 = vpack.c.b16 %v3603, %v3601
        %v3612 = vpack.c.b16 %v3604, %v3602
        %v3613 = vpack.c.b16 %v3607, %v3605
        %v3614 = vpack.c.b16 %v3608, %v3606
        %3615 = vrot.lane.b32.xlu0 %v3609, 116
        %v3616 = vpop.permute.xlu0 %3615
        %3617 = vrot.lane.b32.xlu0 %v3610, 116
        %v3618 = vpop.permute.xlu0 %3617
        %3619 = vrot.lane.b32.xlu0 %v3611, 116
        %v3620 = vpop.permute.xlu0 %3619
        %3621 = vrot.lane.b32.xlu0 %v3612, 116
        %v3622 = vpop.permute.xlu0 %3621
        %3623 = vrot.lane.b32.xlu0 %v3613, 116
        %v3624 = vpop.permute.xlu0 %3623
        %3625 = vrot.lane.b32.xlu0 %v3614, 116
        %v3626 = vpop.permute.xlu0 %3625
        %vm3627 = vcmask 949248
        %v3628 = vsel %vm3627, %v3616, %v3618
        %v3629 = vsel %vm3627, %v3620, %v3622
        %v3630 = vsel %vm3627, %v3624, %v3626
        %3631 = vrot.lane.b32.xlu0 %v3609, 108
        %v3632 = vpop.permute.xlu0 %3631
        %3633 = vrot.lane.b32.xlu0 %v3610, 108
        %v3634 = vpop.permute.xlu0 %3633
        %3635 = vrot.lane.b32.xlu0 %v3611, 108
        %v3636 = vpop.permute.xlu0 %3635
        %3637 = vrot.lane.b32.xlu0 %v3612, 108
        %v3638 = vpop.permute.xlu0 %3637
        %3639 = vrot.lane.b32.xlu0 %v3613, 108
        %v3640 = vpop.permute.xlu0 %3639
        %3641 = vrot.lane.b32.xlu0 %v3614, 108
        %v3642 = vpop.permute.xlu0 %3641
        %v3643 = vsel %vm755, %v3632, %v3634
        %v3644 = vsel %vm755, %v3636, %v3638
        %v3645 = vsel %vm755, %v3640, %v3642
        %3646 = vrot.lane.b32.xlu0 %v3609, 107
        %v3647 = vpop.permute.xlu0 %3646
        %3648 = vrot.lane.b32.xlu0 %v3610, 107
        %v3649 = vpop.permute.xlu0 %3648
        %3650 = vrot.lane.b32.xlu0 %v3611, 107
        %v3651 = vpop.permute.xlu0 %3650
        %3652 = vrot.lane.b32.xlu0 %v3612, 107
        %v3653 = vpop.permute.xlu0 %3652
        %3654 = vrot.lane.b32.xlu0 %v3613, 107
        %v3655 = vpop.permute.xlu0 %3654
        %3656 = vrot.lane.b32.xlu0 %v3614, 107
        %v3657 = vpop.permute.xlu0 %3656
        %vm3658 = vcmask 875520
        %v3659 = vsel %vm3658, %v3647, %v3649
        %v3660 = vsel %vm3658, %v3651, %v3653
        %v3661 = vsel %vm3658, %v3655, %v3657
        %3662 = vrot.lane.b32.xlu0 %v3609, 106
        %v3663 = vpop.permute.xlu0 %3662
        %3664 = vrot.lane.b32.xlu0 %v3610, 106
        %v3665 = vpop.permute.xlu0 %3664
        %3666 = vrot.lane.b32.xlu0 %v3611, 106
        %v3667 = vpop.permute.xlu0 %3666
        %3668 = vrot.lane.b32.xlu0 %v3612, 106
        %v3669 = vpop.permute.xlu0 %3668
        %3670 = vrot.lane.b32.xlu0 %v3613, 106
        %v3671 = vpop.permute.xlu0 %3670
        %3672 = vrot.lane.b32.xlu0 %v3614, 106
        %v3673 = vpop.permute.xlu0 %3672
        %vm3674 = vcmask 867328
        %v3675 = vsel %vm3674, %v3663, %v3665
        %v3676 = vsel %vm3674, %v3667, %v3669
        %v3677 = vsel %vm3674, %v3671, %v3673
        %v3678 = vld [vmem:[%s13] sm:$0xff]
        %v3679 = vld [vmem:[%s13 + $0x8] sm:$0xff]
        %v3680 = vld [vmem:[%s14] sm:$0xff]
        %3682 = vset.pattern.permute.xlu0 0
        %3683 = vperm.xlu0 %3682, %v3680
        %v3684 = vpop.permute.xlu0 %3683
        %v3688 = vunpack.c.l.b16 %v3678
        %v3689 = vunpack.c.h.b16 %v3678
        %v3690 = vunpack.c.l.b16 %v3679
        %v3691 = vunpack.c.h.b16 %v3679
        %v3692 = vpack.c.b16 %v3688, %v3688
        %v3693 = vpack.c.b16 %v3689, %v3689
        %v3694 = vpack.c.b16 %v3690, %v3690
        %v3695 = vpack.c.b16 %v3691, %v3691
        %3699 = vrot.lane.b32.xlu0 %v3518, 11
        %v3700 = vpop.permute.xlu0 %3699
        %3701 = vrot.lane.b32.xlu0 %v3519, 11
        %v3702 = vpop.permute.xlu0 %3701
        %3703 = vrot.lane.b32.xlu0 %v3520, 11
        %v3704 = vpop.permute.xlu0 %3703
        %3705 = vrot.lane.b32.xlu0 %v3521, 11
        %v3706 = vpop.permute.xlu0 %3705
        %3707 = vrot.lane.b32.xlu0 %v3522, 11
        %v3708 = vpop.permute.xlu0 %3707
        %3709 = vrot.lane.b32.xlu0 %v3523, 11
        %v3710 = vpop.permute.xlu0 %3709
        %3711 = vrot.lane.b32.xlu0 %v3536, 11
        %v3712 = vpop.permute.xlu0 %3711
        %3713 = vrot.lane.b32.xlu0 %v3527, 11
        %v3714 = vpop.permute.xlu0 %3713
        %3715 = vrot.lane.b32.xlu0 %v3537, 11
        %v3716 = vpop.permute.xlu0 %3715
        %3717 = vrot.lane.b32.xlu0 %v3531, 11
        %v3718 = vpop.permute.xlu0 %3717
        %3719 = vrot.lane.b32.xlu0 %v3538, 11
        %v3720 = vpop.permute.xlu0 %3719
        %3721 = vrot.lane.b32.xlu0 %v3535, 11
        %v3722 = vpop.permute.xlu0 %3721
        %3723 = vrot.lane.b32.xlu0 %v3551, 11
        %v3724 = vpop.permute.xlu0 %3723
        %3725 = vrot.lane.b32.xlu0 %v3542, 11
        %v3726 = vpop.permute.xlu0 %3725
        %3727 = vrot.lane.b32.xlu0 %v3552, 11
        %v3728 = vpop.permute.xlu0 %3727
        %3729 = vrot.lane.b32.xlu0 %v3546, 11
        %v3730 = vpop.permute.xlu0 %3729
        %3731 = vrot.lane.b32.xlu0 %v3553, 11
        %v3732 = vpop.permute.xlu0 %3731
        %3733 = vrot.lane.b32.xlu0 %v3550, 11
        %v3734 = vpop.permute.xlu0 %3733
        %3735 = vrot.lane.b32.xlu0 %v3567, 11
        %v3736 = vpop.permute.xlu0 %3735
        %3737 = vrot.lane.b32.xlu0 %v3557, 11
        %v3738 = vpop.permute.xlu0 %3737
        %3739 = vrot.lane.b32.xlu0 %v3568, 11
        %v3740 = vpop.permute.xlu0 %3739
        %3741 = vrot.lane.b32.xlu0 %v3561, 11
        %v3742 = vpop.permute.xlu0 %3741
        %3743 = vrot.lane.b32.xlu0 %v3569, 11
        %v3744 = vpop.permute.xlu0 %3743
        %3745 = vrot.lane.b32.xlu0 %v3565, 11
        %v3746 = vpop.permute.xlu0 %3745
        %3747 = vrot.lane.b32.xlu0 %v3586, 11
        %v3748 = vpop.permute.xlu0 %3747
        %3749 = vrot.lane.b32.xlu0 %v3588, 11
        %v3750 = vpop.permute.xlu0 %3749
        %3751 = vrot.lane.b32.xlu0 %v3590, 11
        %v3752 = vpop.permute.xlu0 %3751
        %3753 = vrot.lane.b32.xlu0 %v3616, 11
        %v3754 = vpop.permute.xlu0 %3753
        %3755 = vrot.lane.b32.xlu0 %v3628, 11
        %v3756 = vpop.permute.xlu0 %3755
        %3757 = vrot.lane.b32.xlu0 %v3620, 11
        %v3758 = vpop.permute.xlu0 %3757
        %3759 = vrot.lane.b32.xlu0 %v3629, 11
        %v3760 = vpop.permute.xlu0 %3759
        %3761 = vrot.lane.b32.xlu0 %v3624, 11
        %v3762 = vpop.permute.xlu0 %3761
        %3763 = vrot.lane.b32.xlu0 %v3630, 11
        %v3764 = vpop.permute.xlu0 %3763
        %3765 = vrot.lane.b32.xlu0 %v3632, 11
        %v3766 = vpop.permute.xlu0 %3765
        %3767 = vrot.lane.b32.xlu0 %v3643, 11
        %v3768 = vpop.permute.xlu0 %3767
        %3769 = vrot.lane.b32.xlu0 %v3636, 11
        %v3770 = vpop.permute.xlu0 %3769
        %3771 = vrot.lane.b32.xlu0 %v3644, 11
        %v3772 = vpop.permute.xlu0 %3771
        %3773 = vrot.lane.b32.xlu0 %v3640, 11
        %v3774 = vpop.permute.xlu0 %3773
        %3775 = vrot.lane.b32.xlu0 %v3645, 11
        %v3776 = vpop.permute.xlu0 %3775
        %3777 = vrot.lane.b32.xlu0 %v3647, 11
        %v3778 = vpop.permute.xlu0 %3777
        %3779 = vrot.lane.b32.xlu0 %v3659, 11
        %v3780 = vpop.permute.xlu0 %3779
        %3781 = vrot.lane.b32.xlu0 %v3651, 11
        %v3782 = vpop.permute.xlu0 %3781
        %3783 = vrot.lane.b32.xlu0 %v3660, 11
        %v3784 = vpop.permute.xlu0 %3783
        %3785 = vrot.lane.b32.xlu0 %v3655, 11
        %v3786 = vpop.permute.xlu0 %3785
        %3787 = vrot.lane.b32.xlu0 %v3661, 11
        %v3788 = vpop.permute.xlu0 %3787
        %3789 = vrot.lane.b32.xlu0 %v3663, 11
        %v3790 = vpop.permute.xlu0 %3789
        %3791 = vrot.lane.b32.xlu0 %v3675, 11
        %v3792 = vpop.permute.xlu0 %3791
        %3793 = vrot.lane.b32.xlu0 %v3667, 11
        %v3794 = vpop.permute.xlu0 %3793
        %3795 = vrot.lane.b32.xlu0 %v3676, 11
        %v3796 = vpop.permute.xlu0 %3795
        %3797 = vrot.lane.b32.xlu0 %v3671, 11
        %v3798 = vpop.permute.xlu0 %3797
        %3799 = vrot.lane.b32.xlu0 %v3677, 11
        %v3800 = vpop.permute.xlu0 %3799
        %vm3801 = vcmask 89088
        %v3802 = vsel %vm3801, %v3700, %v3702
        %v3803 = vsel %vm3801, %v3704, %v3706
        %v3804 = vsel %vm3801, %v3708, %v3710
        %v3805 = vsel %vm3801, %v3712, %v3714
        %v3806 = vsel %vm3801, %v3716, %v3718
        %v3807 = vsel %vm3801, %v3720, %v3722
        %v3808 = vsel %vm3801, %v3724, %v3726
        %v3809 = vsel %vm3801, %v3728, %v3730
        %v3810 = vsel %vm3801, %v3732, %v3734
        %v3811 = vsel %vm3801, %v3736, %v3738
        %v3812 = vsel %vm3801, %v3740, %v3742
        %v3813 = vsel %vm3801, %v3744, %v3746
        %v3814 = vsel %vm3801, %v3754, %v3756
        %v3815 = vsel %vm3801, %v3758, %v3760
        %v3816 = vsel %vm3801, %v3762, %v3764
        %v3817 = vsel %vm3801, %v3766, %v3768
        %v3818 = vsel %vm3801, %v3770, %v3772
        %v3819 = vsel %vm3801, %v3774, %v3776
        %v3820 = vsel %vm3801, %v3778, %v3780
        %v3821 = vsel %vm3801, %v3782, %v3784
        %v3822 = vsel %vm3801, %v3786, %v3788
        %v3823 = vsel %vm3801, %v3790, %v3792
        %v3824 = vsel %vm3801, %v3794, %v3796
        %v3825 = vsel %vm3801, %v3798, %v3800
        %vm3853 = vcmask 392192
        %v3855 = vsel %vm3853, %v3695, 0
        %3857 = vmatprep.subr.bf16.mxu0 0
        %3858 = vmatpush1.bf16.msra.mxu0 %v3809
        %3859 = vmatprep.subr.bf16.mxu0 0
        %3860 = vmatpush1.bf16.msra.mxu0 %v3808
        %3861 = vmatprep.subr.bf16.mxu0 0
        %3862 = vmatpush1.bf16.msra.mxu0 %v3807
        %3863 = vmatprep.subr.bf16.mxu0 0
        %3864 = vmatpush1.bf16.msra.mxu0 %v3806
        %3865 = vmatprep.subr.bf16.mxu0 0
        %3866 = vmatpush1.bf16.msra.mxu0 %v3805
        %3867 = vmatprep.subr.bf16.mxu0 0
        %3868 = vmatpush1.bf16.msra.mxu0 %v3804
        %3869 = vmatprep.subr.bf16.mxu0 0
        %3870 = vmatpush1.bf16.msra.mxu0 %v3803
        %3871 = vmatprep.subr.bf16.mxu0 0
        %3872 = vmatpush1.bf16.msra.mxu0 %v3802
        %3873 = vmatprep.subr.bf16.mxu0 0
        %3874 = vmatpush2.bf16.msra.mxu0 %v3814
        %3875 = vmatprep.subr.bf16.mxu0 0
        %3876 = vmatpush2.bf16.msra.mxu0 %v3752
        %3877 = vmatprep.subr.bf16.mxu0 0
        %3878 = vmatpush2.bf16.msra.mxu0 %v3750
        %3879 = vmatprep.subr.bf16.mxu0 0
        %3880 = vmatpush2.bf16.msra.mxu0 %v3748
        %3881 = vmatprep.subr.bf16.mxu0 0
        %3882 = vmatpush2.bf16.msra.mxu0 %v3813
        %3883 = vmatprep.subr.bf16.mxu0 0
        %3884 = vmatpush2.bf16.msra.mxu0 %v3812
        %3885 = vmatprep.subr.bf16.mxu0 0
        %3886 = vmatpush2.bf16.msra.mxu0 %v3811
        %3887 = vmatprep.subr.bf16.mxu0 0
        %3888 = vmatpush2.bf16.msra.mxu0 %v3810
        %3889 = vmatprep.mubr.bf16.mxu0 %v3693
        %3890 = vmatmul.mubr.bf16.gmra.mxu0 %v3692
        %v3891 = vpop.f32.mrf.mxu0
        %v3892 = vadd.f32 %v3684, %v3891
        %v3893 = vpop.f32.mrf.mxu0
        %v3894 = vpop.f32.mrf.mxu0
        %v3895 = vpop.f32.mrf.mxu0
        %3896 = vdwg.mxu0
        %3897 = vmatprep.subr.bf16.mxu0 0
        %3898 = vmatpush1.bf16.msra.mxu0 %v3822
        %3899 = vmatprep.subr.bf16.mxu0 0
        %3900 = vmatpush1.bf16.msra.mxu0 %v3821
        %3901 = vmatprep.subr.bf16.mxu0 0
        %3902 = vmatpush1.bf16.msra.mxu0 %v3820
        %3903 = vmatprep.subr.bf16.mxu0 0
        %3904 = vmatpush1.bf16.msra.mxu0 %v3819
        %3905 = vmatprep.subr.bf16.mxu0 0
        %3906 = vmatpush1.bf16.msra.mxu0 %v3818
        %3907 = vmatprep.subr.bf16.mxu0 0
        %3908 = vmatpush1.bf16.msra.mxu0 %v3817
        %3909 = vmatprep.subr.bf16.mxu0 0
        %3910 = vmatpush1.bf16.msra.mxu0 %v3816
        %3911 = vmatprep.subr.bf16.mxu0 0
        %3912 = vmatpush1.bf16.msra.mxu0 %v3815
        %3913 = vmatprep.subr.bf16.mxu0 0
        %3914 = vmatpush2.bf16.msra.mxu0 0
        %3915 = vmatprep.subr.bf16.mxu0 0
        %3916 = vmatpush2.bf16.msra.mxu0 0
        %3917 = vmatprep.subr.bf16.mxu0 0
        %3918 = vmatpush2.bf16.msra.mxu0 0
        %3919 = vmatprep.subr.bf16.mxu0 0
        %3920 = vmatpush2.bf16.msra.mxu0 0
        %3921 = vmatprep.subr.bf16.mxu0 0
        %3922 = vmatpush2.bf16.msra.mxu0 0
        %3923 = vmatprep.subr.bf16.mxu0 0
        %3924 = vmatpush2.bf16.msra.mxu0 %v3825
        %3925 = vmatprep.subr.bf16.mxu0 0
        %3926 = vmatpush2.bf16.msra.mxu0 %v3824
        %3927 = vmatprep.subr.bf16.mxu0 0
        %3928 = vmatpush2.bf16.msra.mxu0 %v3823
        %3929 = vmatprep.mubr.bf16.mxu0 %v3855
        %3930 = vmatmul.mubr.bf16.gmra.mxu0 %v3694
        %v3931 = vpop.f32.mrf.mxu0
        %v3932 = vadd.f32 %v3892, %v3931
        %v3933 = vpop.f32.mrf.mxu0
        %v3934 = vpop.f32.mrf.mxu0
        %v3935 = vpop.f32.mrf.mxu0
        %3936 = vdwg.mxu0
        %v3937 = vmax.f32 %v3932, 0.0
        %v3938 = vpack.c.bf16 %v3937, %v3937
        %3939 = vst [vmem:[#allocation2 + $0x4] sm:$0xf] %v3938
        %v3940 = vld [vmem:[#allocation2 + $0x4] sm:$0xf]
        %v3941 = vld [vmem:[#allocation2 + $0x4] sm:$0xff]
        %3943 = vrot.lane.b32.xlu0 %v3941, 127
        %v3944 = vpop.permute.xlu0 %3943
        %v3945 = vrot.slane %v3944, 4
        %v3946 = vsel %vm689, %v3944, %v3945
        %v3948 = vmax.bf16 %v3940, %v3946
        %3949 = vrot.lane.b32.xlu0 %v3941, 118
        %v3950 = vpop.permute.xlu0 %3949
        %v3951 = vrot.slane %v3950, 4
        %v3952 = vsel %vm3566, %v3950, %v3951
        %v3954 = vmax.bf16 %v3948, %v3952
        %3955 = vrot.lane.b32.xlu0 %v3941, 117
        %v3956 = vpop.permute.xlu0 %3955
        %v3957 = vrot.slane %v3956, 4
        %vm3958 = vcmask 957440
        %v3959 = vsel %vm3958, %v3956, %v3957
        %v3961 = vmax.bf16 %v3954, %v3959
        %v3962 = vld [vmem:[%s15] sm:$0xf]
        %v3963 = vld [vmem:[%s15 + $0x4] sm:$0xf]
        %v3964 = vld [vmem:[%s15 + $0x8] sm:$0xf]
        %v3965 = vld [vmem:[%s15 + $0xc] sm:$0xf]
        %v3966 = vld [vmem:[%s15 + $0x10] sm:$0xf]
        %v3967 = vld [vmem:[%s15 + $0x14] sm:$0xf]
        %v3968 = vld [vmem:[%s15 + $0x18] sm:$0xf]
        %v3969 = vld [vmem:[%s15 + $0x1c] sm:$0xf]
        %v3970 = vld [vmem:[%s15 + $0x20] sm:$0xf]
        %v3971 = vld [vmem:[%s15 + $0x24] sm:$0xf]
        %v3972 = vld [vmem:[%s15 + $0x28] sm:$0xf]
        %v3973 = vld [vmem:[%s15 + $0x2c] sm:$0xf]
        %v3974 = vld [vmem:[%s15 + $0x30] sm:$0xf]
        %v3975 = vld [vmem:[%s15 + $0x34] sm:$0xf]
        %v3976 = vld [vmem:[%s15 + $0x38] sm:$0xf]
        %v3977 = vld [vmem:[%s15 + $0x3c] sm:$0xf]
        %v3994 = vunpack.c.l.b16 %v3962
        %v3995 = vunpack.c.l.b16 %v3963
        %v3996 = vunpack.c.l.b16 %v3964
        %v3997 = vunpack.c.l.b16 %v3965
        %v3998 = vunpack.c.l.b16 %v3966
        %v3999 = vunpack.c.l.b16 %v3967
        %v4000 = vunpack.c.l.b16 %v3968
        %v4001 = vunpack.c.l.b16 %v3969
        %v4002 = vunpack.c.l.b16 %v3970
        %v4003 = vunpack.c.l.b16 %v3971
        %v4004 = vunpack.c.l.b16 %v3972
        %v4005 = vunpack.c.l.b16 %v3973
        %v4006 = vunpack.c.l.b16 %v3974
        %v4007 = vunpack.c.l.b16 %v3975
        %v4008 = vunpack.c.l.b16 %v3976
        %v4009 = vunpack.c.l.b16 %v3977
        %v4010 = vpack.c.b16 %v3995, %v3994
        %v4011 = vpack.c.b16 %v3997, %v3996
        %v4012 = vpack.c.b16 %v3999, %v3998
        %v4013 = vpack.c.b16 %v4001, %v4000
        %v4014 = vpack.c.b16 %v4003, %v4002
        %v4015 = vpack.c.b16 %v4005, %v4004
        %v4016 = vpack.c.b16 %v4007, %v4006
        %v4017 = vpack.c.b16 %v4009, %v4008
        %4026 = vmatprep.subr.bf16.mxu0 0
        %4027 = vmatpush1.bf16.msra.mxu0 %v4017
        %4028 = vmatprep.subr.bf16.mxu0 0
        %4029 = vmatpush1.bf16.msra.mxu0 %v4016
        %4030 = vmatprep.subr.bf16.mxu0 0
        %4031 = vmatpush1.bf16.msra.mxu0 %v4015
        %4032 = vmatprep.subr.bf16.mxu0 0
        %4033 = vmatpush1.bf16.msra.mxu0 %v4014
        %4034 = vmatprep.subr.bf16.mxu0 0
        %4035 = vmatpush1.bf16.msra.mxu0 %v4013
        %4036 = vmatprep.subr.bf16.mxu0 0
        %4037 = vmatpush1.bf16.msra.mxu0 %v4012
        %4038 = vmatprep.subr.bf16.mxu0 0
        %4039 = vmatpush1.bf16.msra.mxu0 %v4011
        %4040 = vmatprep.subr.bf16.mxu0 0
        %4041 = vmatpush1.bf16.msra.mxu0 %v4010
        %4042 = vmatprep.subr.bf16.mxu0 0
        %4043 = vmatpush2.bf16.msra.mxu0 0
        %4044 = vmatprep.subr.bf16.mxu0 0
        %4045 = vmatpush2.bf16.msra.mxu0 0
        %4046 = vmatprep.subr.bf16.mxu0 0
        %4047 = vmatpush2.bf16.msra.mxu0 0
        %4048 = vmatprep.subr.bf16.mxu0 0
        %4049 = vmatpush2.bf16.msra.mxu0 0
        %4050 = vmatprep.subr.bf16.mxu0 0
        %4051 = vmatpush2.bf16.msra.mxu0 0
        %4052 = vmatprep.subr.bf16.mxu0 0
        %4053 = vmatpush2.bf16.msra.mxu0 0
        %4054 = vmatprep.subr.bf16.mxu0 0
        %4055 = vmatpush2.bf16.msra.mxu0 0
        %4056 = vmatprep.subr.bf16.mxu0 0
        %4057 = vmatpush2.bf16.msra.mxu0 0
        %4058 = vmatprep.mubr.bf16.mxu0 0
        %4059 = vmatmul.mubr.bf16.gmra.mxu0 %v3961
        %v4060 = vpop.f32.mrf.mxu0
        %v4061 = vadd.f32 0.0, %v4060
        %v4062 = vpop.f32.mrf.mxu0
        %v4063 = vpop.f32.mrf.mxu0
        %v4064 = vpop.f32.mrf.mxu0
        %4065 = vdwg.mxu0
        %v4066 = vld [vmem:[%s16] sm:$0xff]
        %v4067 = vlaneseq
        %v4068 = vshrl.u32 %v4067, 7
        %v4069 = vsub.s32 0, %v4068
        %v4070 = vrot.slane %v4061, %v4069
        %v4071 = vmul.f32 %v4066, %v4070
        %v4072 = vld [vmem:[%s16 + $0x8] sm:$0xff]
        %v4073 = vlaneseq
        %v4074 = vshrl.u32 %v4073, 7
        %v4075 = vsub.s32 1, %v4074
        %v4076 = vrot.slane %v4061, %v4075
        %v4077 = vmul.f32 %v4072, %v4076
        %v4078 = vadd.f32 %v4071, %v4077
        %v4079 = vld [vmem:[%s16 + $0x10] sm:$0xff]
        %v4080 = vlaneseq
        %v4081 = vshrl.u32 %v4080, 7
        %v4082 = vsub.s32 2, %v4081
        %v4083 = vrot.slane %v4061, %v4082
        %v4084 = vmul.f32 %v4079, %v4083
        %v4085 = vadd.f32 %v4078, %v4084
        %v4086 = vld [vmem:[%s16 + $0x18] sm:$0xff]
        %v4087 = vlaneseq
        %v4088 = vshrl.u32 %v4087, 7
        %v4089 = vsub.s32 3, %v4088
        %v4090 = vrot.slane %v4061, %v4089
        %v4091 = vmul.f32 %v4086, %v4090
        %v4092 = vadd.f32 %v4085, %v4091
        %v4093 = vld [vmem:[%s16 + $0x20] sm:$0xff]
        %v4094 = vlaneseq
        %v4095 = vshrl.u32 %v4094, 7
        %v4096 = vsub.s32 4, %v4095
        %v4097 = vrot.slane %v4061, %v4096
        %v4098 = vmul.f32 %v4093, %v4097
        %v4099 = vadd.f32 %v4092, %v4098
        %v4100 = vld [vmem:[%s16 + $0x28] sm:$0xff]
        %v4101 = vlaneseq
        %v4102 = vshrl.u32 %v4101, 7
        %v4103 = vsub.s32 5, %v4102
        %v4104 = vrot.slane %v4061, %v4103
        %v4105 = vmul.f32 %v4100, %v4104
        %v4106 = vadd.f32 %v4099, %v4105
        %v4107 = vld [vmem:[%s16 + $0x30] sm:$0xff]
        %v4108 = vlaneseq
        %v4109 = vshrl.u32 %v4108, 7
        %v4110 = vsub.s32 6, %v4109
        %v4111 = vrot.slane %v4061, %v4110
        %v4112 = vmul.f32 %v4107, %v4111
        %v4113 = vadd.f32 %v4106, %v4112
        %v4114 = vld [vmem:[%s16 + $0x38] sm:$0xff]
        %v4115 = vlaneseq
        %v4116 = vshrl.u32 %v4115, 7
        %v4117 = vsub.s32 7, %v4116
        %v4118 = vrot.slane %v4061, %v4117
        %v4119 = vmul.f32 %v4114, %v4118
        %v4120 = vadd.f32 %v4113, %v4119
        %v4121 = vsel %vm945, %v4120, 0.0
        %4122 = vadd.xlane.f32.xlu0 %v4121
        %v4123 = vpop.xlane.xlu0 %4122
        %v4124 = vld [vmem:[%s17] sm:$0xff]
        %v4125 = vadd.f32 %v4123, %v4124
        %v4126 = vmax.f32 %v4125, 0.0
        %4128 = vset.pattern.permute.xlu0 0
        %4129 = vperm.xlu0 %4128, %v4126
        %v4130 = vpop.permute.xlu0 %4129
        %4132 = vst [vmem:[%s610] sm:$0xff] %v4130
        %p4133 = scmp.lt.s32.totalorder %s29, 1
        %s4134 = scalar_select %p4133, %s29, 1
        %s4135 = smul.addr %s4134, 8
        %s4136 = scalar_lea.vmem %s18, %s4135
        // Predicated region
        $region119: #{heads_forward.1} parent=113 // pred_check
          %p4137 = pneg %p430
        $region120: #{heads_forward.1} parent=113 // pred_check_branch
          %4139 = sbr.rel (%p4137) target = $region122
        $region121: #{heads_forward.1} parent=113 // pred_region
          _
        $region122: #{heads_forward.1} parent=113 // pred_fallthru
          _
      $region114: #{heads_forward.1} parent=5 // pred_fallthru
        _
      %p4140 = scmp.le.s32.totalorder 2, %s24
      // Predicated region
      $region123: #{heads_forward.1} parent=5 // pred_check
        %p4141 = pneg %p4140
      $region124: #{heads_forward.1} parent=5 // pred_check_branch
        %4143 = sbr.rel (%p4141) target = $region126
      $region125: #{heads_forward.1} parent=5 // pred_region
        %s4144 = ssub.s32 %s24, 2
        // Predicated region
        $region127: #{heads_forward.1} parent=125 // pred_check
          %p4145 = pneg %p436
        $region128: #{heads_forward.1} parent=125 // pred_check_branch
          %4147 = sbr.rel (%p4145) target = $region130
        $region129: #{heads_forward.1} parent=125 // pred_region
          %p4148 = scmp.lt.s32.totalorder %s30, 1
          %s4149 = scalar_select %p4148, %s30, 1
          %s4150 = smul.addr %s4149, 8
          %s4151 = scalar_lea.vmem %s18, %s4150
        $region130: #{heads_forward.1} parent=125 // pred_fallthru
          _
      $region126: #{heads_forward.1} parent=5 // pred_fallthru
        _
    $region6: #{heads_forward.1} parent=1 // loop_footer
      %s28 = sadd.s32 1, %s24
    $region7: #{heads_forward.1} parent=1 // loop_footer_branch
      %23 = sbr.rel target = $region3
    $region8: #{heads_forward.1} parent=1 // loop_exit
      _

</llo_original>
